<compile_context>
chip_gen: v7x
topology: tpu7x:2x2x1
jax: 0.10.0
libtpu: 0.0.40
codegen_flags: <defaults>
</compile_context>

<pallas_src>
import functools

import jax
import jax.numpy as jnp
from jax import lax
from jax.experimental import pallas as pl
from jax.experimental.pallas import tpu as pltpu


# ---------------------------------------------------------------------------
# Fused kernel: whole Denoise forward for a tile of `tb` batch rows
# Row convention: row = j*tb + b, j in [0,16) indexes a group of 6 consecutive
# samples of the length-96 signal; channels / positions sit in lanes.
# ---------------------------------------------------------------------------
def _denoise_kernel(p8_ref, w1_ref, wk_ref, w34_ref, w5_ref, wfc1_ref, a6_ref,
                    bias_ref, out_ref, g6_ref, *, tb):
    f32 = jnp.float32
    bf16 = jnp.bfloat16
    R = tb * 16

    def dot(a, b):
        return jnp.dot(a, b, preferred_element_type=f32)

    rr = lax.broadcasted_iota(jnp.int32, (R, 1), 0)
    not_first = rr >= tb          # group j > 0
    not_last = rr < (R - tb)      # group j < 15

    def sd(x):                    # value at group (j-1, same b); zero when j == 0
        return jnp.where(not_first, pltpu.roll(x, tb, 0), 0.0)

    def su(x):                    # value at group (j+1, same b); zero when j == 15
        return jnp.where(not_last, pltpu.roll(x, R - tb, 0), 0.0)

    p8 = p8_ref[...]                                                    # (R, 8) bf16

    # ---- L1: Conv1d(1,32,3,1,1)+BN+ReLU emitted directly as L2 im2col rows ----
    # g2[row, 96e + r*32 + c] = h1[b, c, 6j + 3e + r]
    g2 = jnp.maximum(dot(p8, w1_ref[...]) + bias_ref[0:1, :], 0.0)      # (R, 192)

    # ---- L2: Conv1d(32,64,3,3,0)+BN+ReLU, block-diag -> h2 = [even | odd] ----
    h2 = jnp.maximum(dot(g2.astype(bf16), wk_ref[0]) + bias_ref[1:2, 0:128], 0.0)

    # ---- L3: Conv1d(64,128,5,2,2)+BN+ReLU, 3 taps (j-1, j, j+1) ----
    h3 = (dot(sd(h2).astype(bf16), w34_ref[0])
          + dot(h2.astype(bf16), w34_ref[1])
          + dot(su(h2).astype(bf16), w34_ref[2]))
    h3 = jnp.maximum(h3 + bias_ref[2:3, 0:128], 0.0)                    # (R, 128)

    # ---- L4: ConvTranspose1d(128,64,5,2,2,1)+BN+ReLU -> h4 = [even | odd] ----
    h4 = (dot(su(h3).astype(bf16), w34_ref[3])
          + dot(h3.astype(bf16), w34_ref[4])
          + dot(sd(h3).astype(bf16), w34_ref[5]))
    h4 = jnp.maximum(h4 + bias_ref[3:4, 0:128], 0.0)                    # (R, 128)

    # ---- L5: ConvTranspose1d(64,32,3,3,0)+BN+ReLU, block-diag ----
    # h6[row, u*32 + c] = h5[b, c, 6j + u],  u in 0..5
    h6 = jnp.maximum(dot(h4.astype(bf16), w5_ref[...]) + bias_ref[4:5, :], 0.0)

    # ---- L6: ConvTranspose1d(32,1,3,1,1)+BN(1)+ReLU, 6 samples / row (pad to 8) ----
    g6 = (dot(h6.astype(bf16), a6_ref[0])
          + dot(sd(h6).astype(bf16), a6_ref[1])
          + dot(su(h6).astype(bf16), a6_ref[2]))
    g6 = jnp.maximum(g6 + bias_ref[5:6, 0:8], 0.0)                      # (R, 8)
    g6_ref[...] = g6

    # ---- fc1 folded over the 16 j-groups (relayout-free, contiguous row blocks) ----
    z1 = jnp.zeros((tb, 192), f32)
    for j in range(16):
        z1 = z1 + dot(g6_ref[j * tb:(j + 1) * tb, :], wfc1_ref[j])
    z1 = jnp.maximum(z1 + bias_ref[6:7, :], 0.0)                        # (tb, 192)

    # ---- fc2 (output padded to 128 lanes for an unmasked lane-dense store) ----
    out = dot(z1.astype(bf16), wk_ref[1]) + bias_ref[7:8, 0:128]
    out_ref[...] = out.astype(out_ref.dtype)


# ---------------------------------------------------------------------------
# Wrapper: tiny input-side patch grouping + single pallas_call
# ---------------------------------------------------------------------------
def denoise_forward(x, params, block_b=128):
    # block_b: sweep up to 256 on v5e/v6e (128 MiB VMEM); keep <=128 on v7x (64 MiB),
    # and prefer >=2 grid steps per chip on v7x so both TensorCores are used.
    B, L = x.shape
    assert L == 96, "Denoise expects sequence length 96"
    TB = min(block_b, B)
    Bp = ((B + TB - 1) // TB) * TB
    if Bp != B:
        x = jnp.pad(x, ((0, Bp - B), (0, 0)))
    nb = Bp // TB

    # p8[(i*16 + j)*TB + b, t] = xpad[i*TB + b, 6j + t]   (pad=1 each side)
    xpad = jnp.pad(x, ((0, 0), (1, 1))).reshape(nb, TB, 98)
    cols = [xpad[:, :, 6 * j:6 * j + 8] for j in range(16)]            # each (nb, TB, 8)
    p8 = jnp.stack(cols, axis=1).reshape(nb * 16 * TB, 8).astype(jnp.bfloat16)

    out = pl.pallas_call(
        functools.partial(_denoise_kernel, tb=TB),
        out_shape=jax.ShapeDtypeStruct((Bp, 128), jnp.float32),
        grid_spec=pltpu.PrefetchScalarGridSpec(
            num_scalar_prefetch=0,
            grid=(nb,),
            in_specs=[
                pl.BlockSpec((TB * 16, 8), lambda i: (i, 0)),          # input patches
                pl.BlockSpec((8, 192), lambda i: (0, 0)),              # L1 folded
                pl.BlockSpec((2, 192, 128), lambda i: (0, 0, 0)),      # [L2 blockdiag, fc2]
                pl.BlockSpec((6, 128, 128), lambda i: (0, 0, 0)),      # L3 / L4 taps
                pl.BlockSpec((128, 192), lambda i: (0, 0)),            # L5 blockdiag
                pl.BlockSpec((16, 8, 192), lambda i: (0, 0, 0)),       # fc1 per-group
                pl.BlockSpec((3, 192, 8), lambda i: (0, 0, 0)),        # L6 taps
                pl.BlockSpec((8, 192), lambda i: (0, 0)),              # bias table
            ],
            out_specs=pl.BlockSpec((TB, 128), lambda i: (i, 0)),
            scratch_shapes=[pltpu.VMEM((TB * 16, 8), jnp.float32)],    # L6 output
        ),
        compiler_params=pltpu.CompilerParams(
            dimension_semantics=("parallel",),
            vmem_limit_bytes=48 * 1024 * 1024,
        ),
    )(p8, params["w1"], params["wk"], params["w34"], params["w5"],
      params["wfc1"], params["a6"], params["bias"])
    return out[:B, :96]


# ---------------------------------------------------------------------------
# Deterministic synthetic parameters, folded (conv bias + eval-mode BN) at init
# ---------------------------------------------------------------------------
def init_params(key, dim=32):
    assert dim == 32, "weight packing below is specialised to dim=32"
    eps = 1e-5
    f32 = jnp.float32
    bf16 = jnp.bfloat16
    k1, k2, k3, k4, k5, k6, kfc = jax.random.split(key, 7)

    def bn_fold(k, c):
        kg, kb, km, kv = jax.random.split(k, 4)
        gamma = 1.0 + 0.1 * jax.random.normal(kg, (c,), f32)
        beta = 0.1 * jax.random.normal(kb, (c,), f32)
        mean = 0.1 * jax.random.normal(km, (c,), f32)
        var = 0.5 + jax.random.uniform(kv, (c,), f32)
        scale = gamma / jnp.sqrt(var + eps)
        return scale, beta - scale * mean

    def rnd(k, shape, fan_in):
        return jax.random.normal(k, shape, f32) / jnp.sqrt(float(fan_in))

    # ---- L1: Conv1d(1, 32, 3, 1, 1) + BN(32), emitted as L2 im2col rows ----
    kw, kb, kn = jax.random.split(k1, 3)
    W1 = rnd(kw, (32, 1, 3), 3)                                  # (C_out, C_in, K)
    b1 = 0.05 * jax.random.normal(kb, (32,), f32)
    s1, base1 = bn_fold(kn, 32)
    W1f = jnp.transpose(W1[:, 0, :]) * s1[None, :]               # (3, 32) scale folded
    shift1 = s1 * b1 + base1
    w1cat = jnp.zeros((8, 192), f32)
    for r in range(3):
        for k in range(3):
            w1cat = w1cat.at[r + k, r * 32:(r + 1) * 32].set(W1f[k])
            w1cat = w1cat.at[3 + r + k, 96 + r * 32:96 + (r + 1) * 32].set(W1f[k])
    b1cat = jnp.tile(jnp.tile(shift1, 3), 2)                     # (192,)

    # ---- L2: Conv1d(32, 64, 3, 3, 0) + BN(64), block-diagonal ----
    kw, kb, kn = jax.random.split(k2, 3)
    W2 = rnd(kw, (64, 32, 3), 32 * 3)
    b2 = 0.05 * jax.random.normal(kb, (64,), f32)
    s2, base2 = bn_fold(kn, 64)
    w2 = jnp.transpose(W2, (2, 1, 0)).reshape(96, 64) * s2[None, :]   # [r*32+c, co]
    shift2 = s2 * b2 + base2
    w2bd = jnp.zeros((192, 128), f32)
    w2bd = w2bd.at[0:96, 0:64].set(w2)
    w2bd = w2bd.at[96:192, 64:128].set(w2)
    b2cat = jnp.concatenate([shift2, shift2])                    # (128,)

    # ---- L3: Conv1d(64, 128, 5, 2, 2) + BN(128), taps folded per neighbour ----
    kw, kb, kn = jax.random.split(k3, 3)
    W3 = rnd(kw, (128, 64, 5), 64 * 5)
    b3 = 0.05 * jax.random.normal(kb, (128,), f32)
    s3, base3 = bn_fold(kn, 128)
    w3k = jnp.transpose(W3, (2, 1, 0)) * s3[None, None, :]       # (5, 64, 128) [k, c, co]
    shift3 = s3 * b3 + base3
    w3sd = jnp.concatenate([w3k[0], w3k[1]], axis=0)             # (128, 128) applied to sd
    w3c = jnp.concatenate([w3k[2], w3k[3]], axis=0)              # applied to current
    w3su = jnp.concatenate([w3k[4], jnp.zeros((64, 128), f32)], axis=0)   # applied to su

    # ---- L4: ConvTranspose1d(128, 64, 5, 2, 2, 1) + BN(64), taps folded ----
    kw, kb, kn = jax.random.split(k4, 3)
    W4 = rnd(kw, (128, 64, 5), 128 * 5)                          # (C_in, C_out, K)
    b4 = 0.05 * jax.random.normal(kb, (64,), f32)
    s4, base4 = bn_fold(kn, 64)
    w4k = jnp.transpose(W4, (2, 0, 1)) * s4[None, None, :]       # (5, 128, 64) [k, ci, co]
    shift4 = s4 * b4 + base4
    w4su = jnp.concatenate([w4k[0], w4k[1]], axis=1)             # (128, 128) applied to su
    w4c = jnp.concatenate([w4k[2], w4k[3]], axis=1)              # applied to current
    w4sd = jnp.concatenate([w4k[4], jnp.zeros((128, 64), f32)], axis=1)   # applied to sd
    b4cat = jnp.concatenate([shift4, shift4])                    # (128,)

    # ---- L5: ConvTranspose1d(64, 32, 3, 3, 0) + BN(32), block-diagonal ----
    kw, kb, kn = jax.random.split(k5, 3)
    W5 = rnd(kw, (64, 32, 3), 64 * 3)                            # (C_in, C_out, K)
    b5 = 0.05 * jax.random.normal(kb, (32,), f32)
    s5, base5 = bn_fold(kn, 32)
    W5s = W5 * s5[None, :, None]
    w5 = jnp.transpose(W5s, (0, 2, 1)).reshape(64, 96)           # [ci, u*32+co]
    shift5 = s5 * b5 + base5
    w5bd = jnp.zeros((128, 192), f32)
    w5bd = w5bd.at[0:64, 0:96].set(w5)
    w5bd = w5bd.at[64:128, 96:192].set(w5)
    b5cat = jnp.tile(jnp.tile(shift5, 3), 2)                     # (192,)

    # ---- L6: ConvTranspose1d(32, 1, 3, 1, 1) + BN(1) ----
    kw, kb, kn = jax.random.split(k6, 3)
    W6 = rnd(kw, (32, 1, 3), 32 * 3)                             # (C_in, 1, K)
    b6 = 0.05 * jax.random.normal(kb, (1,), f32)
    s6, base6 = bn_fold(kn, 1)
    w6s = W6[:, 0, :] * s6[0]                                    # (32, 3): [c, k]
    sh6 = s6[0] * b6[0] + base6[0]
    a_cur = jnp.zeros((192, 8), f32)
    for u in range(6):               # h5 position 6j+u -> y6[6j+v], tap k = v + 1 - u
        for v in range(6):
            kk = v + 1 - u
            if 0 <= kk <= 2:
                a_cur = a_cur.at[u * 32:(u + 1) * 32, v].set(w6s[:, kk])
    a_prev = jnp.zeros((192, 8), f32).at[160:192, 0].set(w6s[:, 2])   # h5[6(j-1)+5] -> y6[6j]
    a_next = jnp.zeros((192, 8), f32).at[0:32, 5].set(w6s[:, 0])      # h5[6(j+1)+0] -> y6[6j+5]
    b6pad = jnp.zeros((8,), f32).at[0:6].set(sh6)

    # ---- fc layers ----
    kw1, kb1, kw2, kb2 = jax.random.split(kfc, 4)
    wfc1 = rnd(kw1, (96, 192), 96)
    bfc1 = 0.05 * jax.random.normal(kb1, (192,), f32)
    wfc2 = rnd(kw2, (192, 96), 192)
    bfc2 = 0.05 * jax.random.normal(kb2, (96,), f32)
    wfc1s = jnp.zeros((16, 8, 192), f32)                         # per j-group, 8-lane padded
    for j in range(16):
        wfc1s = wfc1s.at[j, 0:6, :].set(wfc1[6 * j:6 * j + 6, :])
    wfc2x = jnp.zeros((192, 128), f32).at[:, 0:96].set(wfc2)     # output padded to 128

    # ---- packed per-layer bias/shift table (8, 192) f32 ----
    bias = jnp.zeros((8, 192), f32)
    bias = bias.at[0, :].set(b1cat)
    bias = bias.at[1, 0:128].set(b2cat)
    bias = bias.at[2, 0:128].set(shift3)
    bias = bias.at[3, 0:128].set(b4cat)
    bias = bias.at[4, :].set(b5cat)
    bias = bias.at[5, 0:8].set(b6pad)
    bias = bias.at[6, :].set(bfc1)
    bias = bias.at[7, 0:96].set(bfc2)

    return dict(
        w1=w1cat.astype(bf16),                                       # (8, 192)
        wk=jnp.stack([w2bd, wfc2x]).astype(bf16),                    # (2, 192, 128)
        w34=jnp.stack([w3sd, w3c, w3su, w4su, w4c, w4sd]).astype(bf16),  # (6, 128, 128)
        w5=w5bd.astype(bf16),                                        # (128, 192)
        wfc1=wfc1s,                                                  # (16, 8, 192) f32
        a6=jnp.stack([a_cur, a_prev, a_next]).astype(bf16),          # (3, 192, 8)
        bias=bias,                                                   # (8, 192) f32
    )


if __name__ == "__main__":
    key = jax.random.PRNGKey(0)
    kx, kp = jax.random.split(key)
    B = 2
    x = jax.random.normal(kx, (B, 96), jnp.float32)   # Denoise expects length-96 signals
    params = init_params(kp, dim=32)

    fwd = jax.jit(denoise_forward)
    out = jax.block_until_ready(fwd(x, params))
    assert out.shape == (B, 96), out.shape
    assert bool(jnp.all(jnp.isfinite(out)))
    print("KERNEL_OK")
</pallas_src>

<mosaic_0001>
module attributes {stable_mosaic.version = 11 : i64} {
  func.func @_denoise_kernel(%arg0: i32, %arg1: memref<32x8xbf16, #tpu.memory_space<vmem>>, %arg2: memref<8x192xbf16, #tpu.memory_space<vmem>>, %arg3: memref<2x192x128xbf16, #tpu.memory_space<vmem>>, %arg4: memref<6x128x128xbf16, #tpu.memory_space<vmem>>, %arg5: memref<128x192xbf16, #tpu.memory_space<vmem>>, %arg6: memref<16x8x192xf32, #tpu.memory_space<vmem>>, %arg7: memref<3x192x8xbf16, #tpu.memory_space<vmem>>, %arg8: memref<8x192xf32, #tpu.memory_space<vmem>>, %arg9: memref<2x128xf32, #tpu.memory_space<vmem>>, %arg10: memref<32x8xf32, #tpu.memory_space<vmem>>) attributes {dimension_semantics = [#tpu.dimension_semantics<parallel>], iteration_bounds = array<i64: 1>, scalar_prefetch = 0 : i64, scratch_operands = 1 : i64, tpu.core_type = #tpu.core_type<tc>, window_params = [{transform_indices = @transform_0, window_bounds = array<i64: 32, 8>}, {pipeline_mode = #tpu.pipeline_mode<synchronous>, transform_indices = @transform_1, window_bounds = array<i64: 8, 192>}, {pipeline_mode = #tpu.pipeline_mode<synchronous>, transform_indices = @transform_2, window_bounds = array<i64: 2, 192, 128>}, {pipeline_mode = #tpu.pipeline_mode<synchronous>, transform_indices = @transform_3, window_bounds = array<i64: 6, 128, 128>}, {pipeline_mode = #tpu.pipeline_mode<synchronous>, transform_indices = @transform_4, window_bounds = array<i64: 128, 192>}, {pipeline_mode = #tpu.pipeline_mode<synchronous>, transform_indices = @transform_5, window_bounds = array<i64: 16, 8, 192>}, {pipeline_mode = #tpu.pipeline_mode<synchronous>, transform_indices = @transform_6, window_bounds = array<i64: 3, 192, 8>}, {pipeline_mode = #tpu.pipeline_mode<synchronous>, transform_indices = @transform_7, window_bounds = array<i64: 8, 192>}, {transform_indices = @transform_8, window_bounds = array<i64: 2, 128>}]} {
    %0 = tpu.iota {dimensions = array<i32: 0>} : vector<32x1xi32>
    %c2_i32 = arith.constant 2 : i32
    %1 = vector.broadcast %c2_i32 : i32 to vector<32x1xi32>
    %2 = arith.cmpi sge, %0, %1 : vector<32x1xi32>
    %c30_i32 = arith.constant 30 : i32
    %3 = vector.broadcast %c30_i32 : i32 to vector<32x1xi32>
    %4 = arith.cmpi slt, %0, %3 : vector<32x1xi32>
    %c0 = arith.constant 0 : index
    %c0_0 = arith.constant 0 : index
    %5 = vector.load %arg1[%c0, %c0_0] : memref<32x8xbf16, #tpu.memory_space<vmem>>, vector<32x8xbf16>
    %c0_1 = arith.constant 0 : index
    %c0_2 = arith.constant 0 : index
    %6 = vector.load %arg2[%c0_1, %c0_2] : memref<8x192xbf16, #tpu.memory_space<vmem>>, vector<8x192xbf16>
    %cst = arith.constant dense<0.000000e+00> : vector<32x192xf32>
    %7 = tpu.matmul %5, %6, %cst {dimension_numbers = #tpu.dot_dimension_numbers<[1], [0], [0], [1], [0, 0, 1, 1], [], []>} : vector<32x8xbf16>, vector<8x192xbf16>, vector<32x192xf32> -> vector<32x192xf32>
    %c0_3 = arith.constant 0 : index
    %c0_4 = arith.constant 0 : index
    %8 = vector.load %arg8[%c0_3, %c0_4] : memref<8x192xf32, #tpu.memory_space<vmem>>, vector<1x192xf32>
    %9 = vector.broadcast %8 : vector<1x192xf32> to vector<32x192xf32>
    %10 = arith.addf %7, %9 : vector<32x192xf32>
    %cst_5 = arith.constant 0.000000e+00 : f32
    %11 = vector.broadcast %cst_5 : f32 to vector<32x192xf32>
    %12 = arith.maximumf %10, %11 : vector<32x192xf32>
    %13 = arith.truncf %12 : vector<32x192xf32> to vector<32x192xbf16>
    %c0_6 = arith.constant 0 : index
    %c0_7 = arith.constant 0 : index
    %c0_8 = arith.constant 0 : index
    %14 = vector.load %arg3[%c0_6, %c0_7, %c0_8] : memref<2x192x128xbf16, #tpu.memory_space<vmem>>, vector<1x192x128xbf16>
    %15 = vector.shape_cast %14 : vector<1x192x128xbf16> to vector<192x128xbf16>
    %cst_9 = arith.constant dense<0.000000e+00> : vector<32x128xf32>
    %16 = tpu.matmul %13, %15, %cst_9 {dimension_numbers = #tpu.dot_dimension_numbers<[1], [0], [0], [1], [0, 0, 1, 1], [], []>} : vector<32x192xbf16>, vector<192x128xbf16>, vector<32x128xf32> -> vector<32x128xf32>
    %c1 = arith.constant 1 : index
    %c0_10 = arith.constant 0 : index
    %17 = vector.load %arg8[%c1, %c0_10] : memref<8x192xf32, #tpu.memory_space<vmem>>, vector<1x128xf32>
    %18 = vector.broadcast %17 : vector<1x128xf32> to vector<32x128xf32>
    %19 = arith.addf %16, %18 : vector<32x128xf32>
    %cst_11 = arith.constant 0.000000e+00 : f32
    %20 = vector.broadcast %cst_11 : f32 to vector<32x128xf32>
    %21 = arith.maximumf %19, %20 : vector<32x128xf32>
    %c2_i32_12 = arith.constant 2 : i32
    %22 = tpu.dynamic_rotate %21 by %c2_i32_12 dim 0 : vector<32x128xf32>, i32 -> vector<32x128xf32>
    %cst_13 = arith.constant 0.000000e+00 : f32
    %23 = vector.shape_cast %2 : vector<32x1xi1> to vector<32x1xi1>
    %24 = vector.broadcast %23 : vector<32x1xi1> to vector<32x128xi1>
    %25 = vector.broadcast %cst_13 : f32 to vector<32x128xf32>
    %26 = arith.select %24, %22, %25 : vector<32x128xi1>, vector<32x128xf32>
    %27 = arith.truncf %26 : vector<32x128xf32> to vector<32x128xbf16>
    %c0_14 = arith.constant 0 : index
    %c0_15 = arith.constant 0 : index
    %c0_16 = arith.constant 0 : index
    %28 = vector.load %arg4[%c0_14, %c0_15, %c0_16] : memref<6x128x128xbf16, #tpu.memory_space<vmem>>, vector<1x128x128xbf16>
    %29 = vector.shape_cast %28 : vector<1x128x128xbf16> to vector<128x128xbf16>
    %cst_17 = arith.constant dense<0.000000e+00> : vector<32x128xf32>
    %30 = tpu.matmul %27, %29, %cst_17 {dimension_numbers = #tpu.dot_dimension_numbers<[1], [0], [0], [1], [0, 0, 1, 1], [], []>} : vector<32x128xbf16>, vector<128x128xbf16>, vector<32x128xf32> -> vector<32x128xf32>
    %31 = arith.truncf %21 : vector<32x128xf32> to vector<32x128xbf16>
    %c1_18 = arith.constant 1 : index
    %c0_19 = arith.constant 0 : index
    %c0_20 = arith.constant 0 : index
    %32 = vector.load %arg4[%c1_18, %c0_19, %c0_20] : memref<6x128x128xbf16, #tpu.memory_space<vmem>>, vector<1x128x128xbf16>
    %33 = vector.shape_cast %32 : vector<1x128x128xbf16> to vector<128x128xbf16>
    %cst_21 = arith.constant dense<0.000000e+00> : vector<32x128xf32>
    %34 = tpu.matmul %31, %33, %cst_21 {dimension_numbers = #tpu.dot_dimension_numbers<[1], [0], [0], [1], [0, 0, 1, 1], [], []>} : vector<32x128xbf16>, vector<128x128xbf16>, vector<32x128xf32> -> vector<32x128xf32>
    %35 = arith.addf %30, %34 : vector<32x128xf32>
    %c30_i32_22 = arith.constant 30 : i32
    %36 = tpu.dynamic_rotate %21 by %c30_i32_22 dim 0 : vector<32x128xf32>, i32 -> vector<32x128xf32>
    %cst_23 = arith.constant 0.000000e+00 : f32
    %37 = vector.shape_cast %4 : vector<32x1xi1> to vector<32x1xi1>
    %38 = vector.broadcast %37 : vector<32x1xi1> to vector<32x128xi1>
    %39 = vector.broadcast %cst_23 : f32 to vector<32x128xf32>
    %40 = arith.select %38, %36, %39 : vector<32x128xi1>, vector<32x128xf32>
    %41 = arith.truncf %40 : vector<32x128xf32> to vector<32x128xbf16>
    %c2 = arith.constant 2 : index
    %c0_24 = arith.constant 0 : index
    %c0_25 = arith.constant 0 : index
    %42 = vector.load %arg4[%c2, %c0_24, %c0_25] : memref<6x128x128xbf16, #tpu.memory_space<vmem>>, vector<1x128x128xbf16>
    %43 = vector.shape_cast %42 : vector<1x128x128xbf16> to vector<128x128xbf16>
    %cst_26 = arith.constant dense<0.000000e+00> : vector<32x128xf32>
    %44 = tpu.matmul %41, %43, %cst_26 {dimension_numbers = #tpu.dot_dimension_numbers<[1], [0], [0], [1], [0, 0, 1, 1], [], []>} : vector<32x128xbf16>, vector<128x128xbf16>, vector<32x128xf32> -> vector<32x128xf32>
    %45 = arith.addf %35, %44 : vector<32x128xf32>
    %c2_27 = arith.constant 2 : index
    %c0_28 = arith.constant 0 : index
    %46 = vector.load %arg8[%c2_27, %c0_28] : memref<8x192xf32, #tpu.memory_space<vmem>>, vector<1x128xf32>
    %47 = vector.broadcast %46 : vector<1x128xf32> to vector<32x128xf32>
    %48 = arith.addf %45, %47 : vector<32x128xf32>
    %cst_29 = arith.constant 0.000000e+00 : f32
    %49 = vector.broadcast %cst_29 : f32 to vector<32x128xf32>
    %50 = arith.maximumf %48, %49 : vector<32x128xf32>
    %c30_i32_30 = arith.constant 30 : i32
    %51 = tpu.dynamic_rotate %50 by %c30_i32_30 dim 0 : vector<32x128xf32>, i32 -> vector<32x128xf32>
    %cst_31 = arith.constant 0.000000e+00 : f32
    %52 = vector.shape_cast %4 : vector<32x1xi1> to vector<32x1xi1>
    %53 = vector.broadcast %52 : vector<32x1xi1> to vector<32x128xi1>
    %54 = vector.broadcast %cst_31 : f32 to vector<32x128xf32>
    %55 = arith.select %53, %51, %54 : vector<32x128xi1>, vector<32x128xf32>
    %56 = arith.truncf %55 : vector<32x128xf32> to vector<32x128xbf16>
    %c3 = arith.constant 3 : index
    %c0_32 = arith.constant 0 : index
    %c0_33 = arith.constant 0 : index
    %57 = vector.load %arg4[%c3, %c0_32, %c0_33] : memref<6x128x128xbf16, #tpu.memory_space<vmem>>, vector<1x128x128xbf16>
    %58 = vector.shape_cast %57 : vector<1x128x128xbf16> to vector<128x128xbf16>
    %cst_34 = arith.constant dense<0.000000e+00> : vector<32x128xf32>
    %59 = tpu.matmul %56, %58, %cst_34 {dimension_numbers = #tpu.dot_dimension_numbers<[1], [0], [0], [1], [0, 0, 1, 1], [], []>} : vector<32x128xbf16>, vector<128x128xbf16>, vector<32x128xf32> -> vector<32x128xf32>
    %60 = arith.truncf %50 : vector<32x128xf32> to vector<32x128xbf16>
    %c4 = arith.constant 4 : index
    %c0_35 = arith.constant 0 : index
    %c0_36 = arith.constant 0 : index
    %61 = vector.load %arg4[%c4, %c0_35, %c0_36] : memref<6x128x128xbf16, #tpu.memory_space<vmem>>, vector<1x128x128xbf16>
    %62 = vector.shape_cast %61 : vector<1x128x128xbf16> to vector<128x128xbf16>
    %cst_37 = arith.constant dense<0.000000e+00> : vector<32x128xf32>
    %63 = tpu.matmul %60, %62, %cst_37 {dimension_numbers = #tpu.dot_dimension_numbers<[1], [0], [0], [1], [0, 0, 1, 1], [], []>} : vector<32x128xbf16>, vector<128x128xbf16>, vector<32x128xf32> -> vector<32x128xf32>
    %64 = arith.addf %59, %63 : vector<32x128xf32>
    %c2_i32_38 = arith.constant 2 : i32
    %65 = tpu.dynamic_rotate %50 by %c2_i32_38 dim 0 : vector<32x128xf32>, i32 -> vector<32x128xf32>
    %cst_39 = arith.constant 0.000000e+00 : f32
    %66 = vector.shape_cast %2 : vector<32x1xi1> to vector<32x1xi1>
    %67 = vector.broadcast %66 : vector<32x1xi1> to vector<32x128xi1>
    %68 = vector.broadcast %cst_39 : f32 to vector<32x128xf32>
    %69 = arith.select %67, %65, %68 : vector<32x128xi1>, vector<32x128xf32>
    %70 = arith.truncf %69 : vector<32x128xf32> to vector<32x128xbf16>
    %c5 = arith.constant 5 : index
    %c0_40 = arith.constant 0 : index
    %c0_41 = arith.constant 0 : index
    %71 = vector.load %arg4[%c5, %c0_40, %c0_41] : memref<6x128x128xbf16, #tpu.memory_space<vmem>>, vector<1x128x128xbf16>
    %72 = vector.shape_cast %71 : vector<1x128x128xbf16> to vector<128x128xbf16>
    %cst_42 = arith.constant dense<0.000000e+00> : vector<32x128xf32>
    %73 = tpu.matmul %70, %72, %cst_42 {dimension_numbers = #tpu.dot_dimension_numbers<[1], [0], [0], [1], [0, 0, 1, 1], [], []>} : vector<32x128xbf16>, vector<128x128xbf16>, vector<32x128xf32> -> vector<32x128xf32>
    %74 = arith.addf %64, %73 : vector<32x128xf32>
    %c3_43 = arith.constant 3 : index
    %c0_44 = arith.constant 0 : index
    %75 = vector.load %arg8[%c3_43, %c0_44] : memref<8x192xf32, #tpu.memory_space<vmem>>, vector<1x128xf32>
    %76 = vector.broadcast %75 : vector<1x128xf32> to vector<32x128xf32>
    %77 = arith.addf %74, %76 : vector<32x128xf32>
    %cst_45 = arith.constant 0.000000e+00 : f32
    %78 = vector.broadcast %cst_45 : f32 to vector<32x128xf32>
    %79 = arith.maximumf %77, %78 : vector<32x128xf32>
    %80 = arith.truncf %79 : vector<32x128xf32> to vector<32x128xbf16>
    %c0_46 = arith.constant 0 : index
    %c0_47 = arith.constant 0 : index
    %81 = vector.load %arg5[%c0_46, %c0_47] : memref<128x192xbf16, #tpu.memory_space<vmem>>, vector<128x192xbf16>
    %cst_48 = arith.constant dense<0.000000e+00> : vector<32x192xf32>
    %82 = tpu.matmul %80, %81, %cst_48 {dimension_numbers = #tpu.dot_dimension_numbers<[1], [0], [0], [1], [0, 0, 1, 1], [], []>} : vector<32x128xbf16>, vector<128x192xbf16>, vector<32x192xf32> -> vector<32x192xf32>
    %c4_49 = arith.constant 4 : index
    %c0_50 = arith.constant 0 : index
    %83 = vector.load %arg8[%c4_49, %c0_50] : memref<8x192xf32, #tpu.memory_space<vmem>>, vector<1x192xf32>
    %84 = vector.broadcast %83 : vector<1x192xf32> to vector<32x192xf32>
    %85 = arith.addf %82, %84 : vector<32x192xf32>
    %cst_51 = arith.constant 0.000000e+00 : f32
    %86 = vector.broadcast %cst_51 : f32 to vector<32x192xf32>
    %87 = arith.maximumf %85, %86 : vector<32x192xf32>
    %88 = arith.truncf %87 : vector<32x192xf32> to vector<32x192xbf16>
    %c0_52 = arith.constant 0 : index
    %c0_53 = arith.constant 0 : index
    %c0_54 = arith.constant 0 : index
    %89 = vector.load %arg7[%c0_52, %c0_53, %c0_54] : memref<3x192x8xbf16, #tpu.memory_space<vmem>>, vector<1x192x8xbf16>
    %90 = vector.shape_cast %89 : vector<1x192x8xbf16> to vector<192x8xbf16>
    %cst_55 = arith.constant dense<0.000000e+00> : vector<32x8xf32>
    %91 = tpu.matmul %88, %90, %cst_55 {dimension_numbers = #tpu.dot_dimension_numbers<[1], [0], [0], [1], [0, 0, 1, 1], [], []>} : vector<32x192xbf16>, vector<192x8xbf16>, vector<32x8xf32> -> vector<32x8xf32>
    %c2_i32_56 = arith.constant 2 : i32
    %92 = tpu.dynamic_rotate %87 by %c2_i32_56 dim 0 : vector<32x192xf32>, i32 -> vector<32x192xf32>
    %cst_57 = arith.constant 0.000000e+00 : f32
    %93 = vector.shape_cast %2 : vector<32x1xi1> to vector<32x1xi1>
    %94 = vector.broadcast %93 : vector<32x1xi1> to vector<32x192xi1>
    %95 = vector.broadcast %cst_57 : f32 to vector<32x192xf32>
    %96 = arith.select %94, %92, %95 : vector<32x192xi1>, vector<32x192xf32>
    %97 = arith.truncf %96 : vector<32x192xf32> to vector<32x192xbf16>
    %c1_58 = arith.constant 1 : index
    %c0_59 = arith.constant 0 : index
    %c0_60 = arith.constant 0 : index
    %98 = vector.load %arg7[%c1_58, %c0_59, %c0_60] : memref<3x192x8xbf16, #tpu.memory_space<vmem>>, vector<1x192x8xbf16>
    %99 = vector.shape_cast %98 : vector<1x192x8xbf16> to vector<192x8xbf16>
    %cst_61 = arith.constant dense<0.000000e+00> : vector<32x8xf32>
    %100 = tpu.matmul %97, %99, %cst_61 {dimension_numbers = #tpu.dot_dimension_numbers<[1], [0], [0], [1], [0, 0, 1, 1], [], []>} : vector<32x192xbf16>, vector<192x8xbf16>, vector<32x8xf32> -> vector<32x8xf32>
    %101 = arith.addf %91, %100 : vector<32x8xf32>
    %c30_i32_62 = arith.constant 30 : i32
    %102 = tpu.dynamic_rotate %87 by %c30_i32_62 dim 0 : vector<32x192xf32>, i32 -> vector<32x192xf32>
    %cst_63 = arith.constant 0.000000e+00 : f32
    %103 = vector.shape_cast %4 : vector<32x1xi1> to vector<32x1xi1>
    %104 = vector.broadcast %103 : vector<32x1xi1> to vector<32x192xi1>
    %105 = vector.broadcast %cst_63 : f32 to vector<32x192xf32>
    %106 = arith.select %104, %102, %105 : vector<32x192xi1>, vector<32x192xf32>
    %107 = arith.truncf %106 : vector<32x192xf32> to vector<32x192xbf16>
    %c2_64 = arith.constant 2 : index
    %c0_65 = arith.constant 0 : index
    %c0_66 = arith.constant 0 : index
    %108 = vector.load %arg7[%c2_64, %c0_65, %c0_66] : memref<3x192x8xbf16, #tpu.memory_space<vmem>>, vector<1x192x8xbf16>
    %109 = vector.shape_cast %108 : vector<1x192x8xbf16> to vector<192x8xbf16>
    %cst_67 = arith.constant dense<0.000000e+00> : vector<32x8xf32>
    %110 = tpu.matmul %107, %109, %cst_67 {dimension_numbers = #tpu.dot_dimension_numbers<[1], [0], [0], [1], [0, 0, 1, 1], [], []>} : vector<32x192xbf16>, vector<192x8xbf16>, vector<32x8xf32> -> vector<32x8xf32>
    %111 = arith.addf %101, %110 : vector<32x8xf32>
    %c5_68 = arith.constant 5 : index
    %c0_69 = arith.constant 0 : index
    %112 = vector.load %arg8[%c5_68, %c0_69] : memref<8x192xf32, #tpu.memory_space<vmem>>, vector<1x8xf32>
    %113 = vector.broadcast %112 : vector<1x8xf32> to vector<32x8xf32>
    %114 = arith.addf %111, %113 : vector<32x8xf32>
    %cst_70 = arith.constant 0.000000e+00 : f32
    %115 = vector.broadcast %cst_70 : f32 to vector<32x8xf32>
    %116 = arith.maximumf %114, %115 : vector<32x8xf32>
    %c0_71 = arith.constant 0 : index
    %c0_72 = arith.constant 0 : index
    %117 = vector.load %arg10[%c0_71, %c0_72] : memref<32x8xf32, #tpu.memory_space<vmem>>, vector<32x8xf32>
    tpu.vector_store %arg10[%c0_71, %c0_72], %116 {strides = array<i32>} : memref<32x8xf32, #tpu.memory_space<vmem>>, vector<32x8xf32>,
    %cst_73 = arith.constant 0.000000e+00 : f32
    %118 = vector.broadcast %cst_73 : f32 to vector<2x192xf32>
    %c0_74 = arith.constant 0 : index
    %c0_75 = arith.constant 0 : index
    %119 = vector.load %arg10[%c0_74, %c0_75] : memref<32x8xf32, #tpu.memory_space<vmem>>, vector<2x8xf32>
    %c0_76 = arith.constant 0 : index
    %c0_77 = arith.constant 0 : index
    %c0_78 = arith.constant 0 : index
    %120 = vector.load %arg6[%c0_76, %c0_77, %c0_78] : memref<16x8x192xf32, #tpu.memory_space<vmem>>, vector<1x8x192xf32>
    %121 = vector.shape_cast %120 : vector<1x8x192xf32> to vector<8x192xf32>
    %cst_79 = arith.constant dense<0.000000e+00> : vector<2x192xf32>
    %122 = tpu.matmul %119, %121, %cst_79 {dimension_numbers = #tpu.dot_dimension_numbers<[1], [0], [0], [1], [0, 0, 1, 1], [], []>} : vector<2x8xf32>, vector<8x192xf32>, vector<2x192xf32> -> vector<2x192xf32>
    %123 = arith.addf %118, %122 : vector<2x192xf32>
    %c2_80 = arith.constant 2 : index
    %c0_81 = arith.constant 0 : index
    %124 = vector.load %arg10[%c2_80, %c0_81] : memref<32x8xf32, #tpu.memory_space<vmem>>, vector<2x8xf32>
    %c1_82 = arith.constant 1 : index
    %c0_83 = arith.constant 0 : index
    %c0_84 = arith.constant 0 : index
    %125 = vector.load %arg6[%c1_82, %c0_83, %c0_84] : memref<16x8x192xf32, #tpu.memory_space<vmem>>, vector<1x8x192xf32>
    %126 = vector.shape_cast %125 : vector<1x8x192xf32> to vector<8x192xf32>
    %cst_85 = arith.constant dense<0.000000e+00> : vector<2x192xf32>
    %127 = tpu.matmul %124, %126, %cst_85 {dimension_numbers = #tpu.dot_dimension_numbers<[1], [0], [0], [1], [0, 0, 1, 1], [], []>} : vector<2x8xf32>, vector<8x192xf32>, vector<2x192xf32> -> vector<2x192xf32>
    %128 = arith.addf %123, %127 : vector<2x192xf32>
    %c4_86 = arith.constant 4 : index
    %c0_87 = arith.constant 0 : index
    %129 = vector.load %arg10[%c4_86, %c0_87] : memref<32x8xf32, #tpu.memory_space<vmem>>, vector<2x8xf32>
    %c2_88 = arith.constant 2 : index
    %c0_89 = arith.constant 0 : index
    %c0_90 = arith.constant 0 : index
    %130 = vector.load %arg6[%c2_88, %c0_89, %c0_90] : memref<16x8x192xf32, #tpu.memory_space<vmem>>, vector<1x8x192xf32>
    %131 = vector.shape_cast %130 : vector<1x8x192xf32> to vector<8x192xf32>
    %cst_91 = arith.constant dense<0.000000e+00> : vector<2x192xf32>
    %132 = tpu.matmul %129, %131, %cst_91 {dimension_numbers = #tpu.dot_dimension_numbers<[1], [0], [0], [1], [0, 0, 1, 1], [], []>} : vector<2x8xf32>, vector<8x192xf32>, vector<2x192xf32> -> vector<2x192xf32>
    %133 = arith.addf %128, %132 : vector<2x192xf32>
    %c6 = arith.constant 6 : index
    %c0_92 = arith.constant 0 : index
    %134 = vector.load %arg10[%c6, %c0_92] : memref<32x8xf32, #tpu.memory_space<vmem>>, vector<2x8xf32>
    %c3_93 = arith.constant 3 : index
    %c0_94 = arith.constant 0 : index
    %c0_95 = arith.constant 0 : index
    %135 = vector.load %arg6[%c3_93, %c0_94, %c0_95] : memref<16x8x192xf32, #tpu.memory_space<vmem>>, vector<1x8x192xf32>
    %136 = vector.shape_cast %135 : vector<1x8x192xf32> to vector<8x192xf32>
    %cst_96 = arith.constant dense<0.000000e+00> : vector<2x192xf32>
    %137 = tpu.matmul %134, %136, %cst_96 {dimension_numbers = #tpu.dot_dimension_numbers<[1], [0], [0], [1], [0, 0, 1, 1], [], []>} : vector<2x8xf32>, vector<8x192xf32>, vector<2x192xf32> -> vector<2x192xf32>
    %138 = arith.addf %133, %137 : vector<2x192xf32>
    %c8 = arith.constant 8 : index
    %c0_97 = arith.constant 0 : index
    %139 = vector.load %arg10[%c8, %c0_97] : memref<32x8xf32, #tpu.memory_space<vmem>>, vector<2x8xf32>
    %c4_98 = arith.constant 4 : index
    %c0_99 = arith.constant 0 : index
    %c0_100 = arith.constant 0 : index
    %140 = vector.load %arg6[%c4_98, %c0_99, %c0_100] : memref<16x8x192xf32, #tpu.memory_space<vmem>>, vector<1x8x192xf32>
    %141 = vector.shape_cast %140 : vector<1x8x192xf32> to vector<8x192xf32>
    %cst_101 = arith.constant dense<0.000000e+00> : vector<2x192xf32>
    %142 = tpu.matmul %139, %141, %cst_101 {dimension_numbers = #tpu.dot_dimension_numbers<[1], [0], [0], [1], [0, 0, 1, 1], [], []>} : vector<2x8xf32>, vector<8x192xf32>, vector<2x192xf32> -> vector<2x192xf32>
    %143 = arith.addf %138, %142 : vector<2x192xf32>
    %c10 = arith.constant 10 : index
    %c0_102 = arith.constant 0 : index
    %144 = vector.load %arg10[%c10, %c0_102] : memref<32x8xf32, #tpu.memory_space<vmem>>, vector<2x8xf32>
    %c5_103 = arith.constant 5 : index
    %c0_104 = arith.constant 0 : index
    %c0_105 = arith.constant 0 : index
    %145 = vector.load %arg6[%c5_103, %c0_104, %c0_105] : memref<16x8x192xf32, #tpu.memory_space<vmem>>, vector<1x8x192xf32>
    %146 = vector.shape_cast %145 : vector<1x8x192xf32> to vector<8x192xf32>
    %cst_106 = arith.constant dense<0.000000e+00> : vector<2x192xf32>
    %147 = tpu.matmul %144, %146, %cst_106 {dimension_numbers = #tpu.dot_dimension_numbers<[1], [0], [0], [1], [0, 0, 1, 1], [], []>} : vector<2x8xf32>, vector<8x192xf32>, vector<2x192xf32> -> vector<2x192xf32>
    %148 = arith.addf %143, %147 : vector<2x192xf32>
    %c12 = arith.constant 12 : index
    %c0_107 = arith.constant 0 : index
    %149 = vector.load %arg10[%c12, %c0_107] : memref<32x8xf32, #tpu.memory_space<vmem>>, vector<2x8xf32>
    %c6_108 = arith.constant 6 : index
    %c0_109 = arith.constant 0 : index
    %c0_110 = arith.constant 0 : index
    %150 = vector.load %arg6[%c6_108, %c0_109, %c0_110] : memref<16x8x192xf32, #tpu.memory_space<vmem>>, vector<1x8x192xf32>
    %151 = vector.shape_cast %150 : vector<1x8x192xf32> to vector<8x192xf32>
    %cst_111 = arith.constant dense<0.000000e+00> : vector<2x192xf32>
    %152 = tpu.matmul %149, %151, %cst_111 {dimension_numbers = #tpu.dot_dimension_numbers<[1], [0], [0], [1], [0, 0, 1, 1], [], []>} : vector<2x8xf32>, vector<8x192xf32>, vector<2x192xf32> -> vector<2x192xf32>
    %153 = arith.addf %148, %152 : vector<2x192xf32>
    %c14 = arith.constant 14 : index
    %c0_112 = arith.constant 0 : index
    %154 = vector.load %arg10[%c14, %c0_112] : memref<32x8xf32, #tpu.memory_space<vmem>>, vector<2x8xf32>
    %c7 = arith.constant 7 : index
    %c0_113 = arith.constant 0 : index
    %c0_114 = arith.constant 0 : index
    %155 = vector.load %arg6[%c7, %c0_113, %c0_114] : memref<16x8x192xf32, #tpu.memory_space<vmem>>, vector<1x8x192xf32>
    %156 = vector.shape_cast %155 : vector<1x8x192xf32> to vector<8x192xf32>
    %cst_115 = arith.constant dense<0.000000e+00> : vector<2x192xf32>
    %157 = tpu.matmul %154, %156, %cst_115 {dimension_numbers = #tpu.dot_dimension_numbers<[1], [0], [0], [1], [0, 0, 1, 1], [], []>} : vector<2x8xf32>, vector<8x192xf32>, vector<2x192xf32> -> vector<2x192xf32>
    %158 = arith.addf %153, %157 : vector<2x192xf32>
    %c16 = arith.constant 16 : index
    %c0_116 = arith.constant 0 : index
    %159 = vector.load %arg10[%c16, %c0_116] : memref<32x8xf32, #tpu.memory_space<vmem>>, vector<2x8xf32>
    %c8_117 = arith.constant 8 : index
    %c0_118 = arith.constant 0 : index
    %c0_119 = arith.constant 0 : index
    %160 = vector.load %arg6[%c8_117, %c0_118, %c0_119] : memref<16x8x192xf32, #tpu.memory_space<vmem>>, vector<1x8x192xf32>
    %161 = vector.shape_cast %160 : vector<1x8x192xf32> to vector<8x192xf32>
    %cst_120 = arith.constant dense<0.000000e+00> : vector<2x192xf32>
    %162 = tpu.matmul %159, %161, %cst_120 {dimension_numbers = #tpu.dot_dimension_numbers<[1], [0], [0], [1], [0, 0, 1, 1], [], []>} : vector<2x8xf32>, vector<8x192xf32>, vector<2x192xf32> -> vector<2x192xf32>
    %163 = arith.addf %158, %162 : vector<2x192xf32>
    %c18 = arith.constant 18 : index
    %c0_121 = arith.constant 0 : index
    %164 = vector.load %arg10[%c18, %c0_121] : memref<32x8xf32, #tpu.memory_space<vmem>>, vector<2x8xf32>
    %c9 = arith.constant 9 : index
    %c0_122 = arith.constant 0 : index
    %c0_123 = arith.constant 0 : index
    %165 = vector.load %arg6[%c9, %c0_122, %c0_123] : memref<16x8x192xf32, #tpu.memory_space<vmem>>, vector<1x8x192xf32>
    %166 = vector.shape_cast %165 : vector<1x8x192xf32> to vector<8x192xf32>
    %cst_124 = arith.constant dense<0.000000e+00> : vector<2x192xf32>
    %167 = tpu.matmul %164, %166, %cst_124 {dimension_numbers = #tpu.dot_dimension_numbers<[1], [0], [0], [1], [0, 0, 1, 1], [], []>} : vector<2x8xf32>, vector<8x192xf32>, vector<2x192xf32> -> vector<2x192xf32>
    %168 = arith.addf %163, %167 : vector<2x192xf32>
    %c20 = arith.constant 20 : index
    %c0_125 = arith.constant 0 : index
    %169 = vector.load %arg10[%c20, %c0_125] : memref<32x8xf32, #tpu.memory_space<vmem>>, vector<2x8xf32>
    %c10_126 = arith.constant 10 : index
    %c0_127 = arith.constant 0 : index
    %c0_128 = arith.constant 0 : index
    %170 = vector.load %arg6[%c10_126, %c0_127, %c0_128] : memref<16x8x192xf32, #tpu.memory_space<vmem>>, vector<1x8x192xf32>
    %171 = vector.shape_cast %170 : vector<1x8x192xf32> to vector<8x192xf32>
    %cst_129 = arith.constant dense<0.000000e+00> : vector<2x192xf32>
    %172 = tpu.matmul %169, %171, %cst_129 {dimension_numbers = #tpu.dot_dimension_numbers<[1], [0], [0], [1], [0, 0, 1, 1], [], []>} : vector<2x8xf32>, vector<8x192xf32>, vector<2x192xf32> -> vector<2x192xf32>
    %173 = arith.addf %168, %172 : vector<2x192xf32>
    %c22 = arith.constant 22 : index
    %c0_130 = arith.constant 0 : index
    %174 = vector.load %arg10[%c22, %c0_130] : memref<32x8xf32, #tpu.memory_space<vmem>>, vector<2x8xf32>
    %c11 = arith.constant 11 : index
    %c0_131 = arith.constant 0 : index
    %c0_132 = arith.constant 0 : index
    %175 = vector.load %arg6[%c11, %c0_131, %c0_132] : memref<16x8x192xf32, #tpu.memory_space<vmem>>, vector<1x8x192xf32>
    %176 = vector.shape_cast %175 : vector<1x8x192xf32> to vector<8x192xf32>
    %cst_133 = arith.constant dense<0.000000e+00> : vector<2x192xf32>
    %177 = tpu.matmul %174, %176, %cst_133 {dimension_numbers = #tpu.dot_dimension_numbers<[1], [0], [0], [1], [0, 0, 1, 1], [], []>} : vector<2x8xf32>, vector<8x192xf32>, vector<2x192xf32> -> vector<2x192xf32>
    %178 = arith.addf %173, %177 : vector<2x192xf32>
    %c24 = arith.constant 24 : index
    %c0_134 = arith.constant 0 : index
    %179 = vector.load %arg10[%c24, %c0_134] : memref<32x8xf32, #tpu.memory_space<vmem>>, vector<2x8xf32>
    %c12_135 = arith.constant 12 : index
    %c0_136 = arith.constant 0 : index
    %c0_137 = arith.constant 0 : index
    %180 = vector.load %arg6[%c12_135, %c0_136, %c0_137] : memref<16x8x192xf32, #tpu.memory_space<vmem>>, vector<1x8x192xf32>
    %181 = vector.shape_cast %180 : vector<1x8x192xf32> to vector<8x192xf32>
    %cst_138 = arith.constant dense<0.000000e+00> : vector<2x192xf32>
    %182 = tpu.matmul %179, %181, %cst_138 {dimension_numbers = #tpu.dot_dimension_numbers<[1], [0], [0], [1], [0, 0, 1, 1], [], []>} : vector<2x8xf32>, vector<8x192xf32>, vector<2x192xf32> -> vector<2x192xf32>
    %183 = arith.addf %178, %182 : vector<2x192xf32>
    %c26 = arith.constant 26 : index
    %c0_139 = arith.constant 0 : index
    %184 = vector.load %arg10[%c26, %c0_139] : memref<32x8xf32, #tpu.memory_space<vmem>>, vector<2x8xf32>
    %c13 = arith.constant 13 : index
    %c0_140 = arith.constant 0 : index
    %c0_141 = arith.constant 0 : index
    %185 = vector.load %arg6[%c13, %c0_140, %c0_141] : memref<16x8x192xf32, #tpu.memory_space<vmem>>, vector<1x8x192xf32>
    %186 = vector.shape_cast %185 : vector<1x8x192xf32> to vector<8x192xf32>
    %cst_142 = arith.constant dense<0.000000e+00> : vector<2x192xf32>
    %187 = tpu.matmul %184, %186, %cst_142 {dimension_numbers = #tpu.dot_dimension_numbers<[1], [0], [0], [1], [0, 0, 1, 1], [], []>} : vector<2x8xf32>, vector<8x192xf32>, vector<2x192xf32> -> vector<2x192xf32>
    %188 = arith.addf %183, %187 : vector<2x192xf32>
    %c28 = arith.constant 28 : index
    %c0_143 = arith.constant 0 : index
    %189 = vector.load %arg10[%c28, %c0_143] : memref<32x8xf32, #tpu.memory_space<vmem>>, vector<2x8xf32>
    %c14_144 = arith.constant 14 : index
    %c0_145 = arith.constant 0 : index
    %c0_146 = arith.constant 0 : index
    %190 = vector.load %arg6[%c14_144, %c0_145, %c0_146] : memref<16x8x192xf32, #tpu.memory_space<vmem>>, vector<1x8x192xf32>
    %191 = vector.shape_cast %190 : vector<1x8x192xf32> to vector<8x192xf32>
    %cst_147 = arith.constant dense<0.000000e+00> : vector<2x192xf32>
    %192 = tpu.matmul %189, %191, %cst_147 {dimension_numbers = #tpu.dot_dimension_numbers<[1], [0], [0], [1], [0, 0, 1, 1], [], []>} : vector<2x8xf32>, vector<8x192xf32>, vector<2x192xf32> -> vector<2x192xf32>
    %193 = arith.addf %188, %192 : vector<2x192xf32>
    %c30 = arith.constant 30 : index
    %c0_148 = arith.constant 0 : index
    %194 = vector.load %arg10[%c30, %c0_148] : memref<32x8xf32, #tpu.memory_space<vmem>>, vector<2x8xf32>
    %c15 = arith.constant 15 : index
    %c0_149 = arith.constant 0 : index
    %c0_150 = arith.constant 0 : index
    %195 = vector.load %arg6[%c15, %c0_149, %c0_150] : memref<16x8x192xf32, #tpu.memory_space<vmem>>, vector<1x8x192xf32>
    %196 = vector.shape_cast %195 : vector<1x8x192xf32> to vector<8x192xf32>
    %cst_151 = arith.constant dense<0.000000e+00> : vector<2x192xf32>
    %197 = tpu.matmul %194, %196, %cst_151 {dimension_numbers = #tpu.dot_dimension_numbers<[1], [0], [0], [1], [0, 0, 1, 1], [], []>} : vector<2x8xf32>, vector<8x192xf32>, vector<2x192xf32> -> vector<2x192xf32>
    %198 = arith.addf %193, %197 : vector<2x192xf32>
    %c6_152 = arith.constant 6 : index
    %c0_153 = arith.constant 0 : index
    %199 = vector.load %arg8[%c6_152, %c0_153] : memref<8x192xf32, #tpu.memory_space<vmem>>, vector<1x192xf32>
    %200 = vector.broadcast %199 : vector<1x192xf32> to vector<2x192xf32>
    %201 = arith.addf %198, %200 : vector<2x192xf32>
    %cst_154 = arith.constant 0.000000e+00 : f32
    %202 = vector.broadcast %cst_154 : f32 to vector<2x192xf32>
    %203 = arith.maximumf %201, %202 : vector<2x192xf32>
    %204 = arith.truncf %203 : vector<2x192xf32> to vector<2x192xbf16>
    %c1_155 = arith.constant 1 : index
    %c0_156 = arith.constant 0 : index
    %c0_157 = arith.constant 0 : index
    %205 = vector.load %arg3[%c1_155, %c0_156, %c0_157] : memref<2x192x128xbf16, #tpu.memory_space<vmem>>, vector<1x192x128xbf16>
    %206 = vector.shape_cast %205 : vector<1x192x128xbf16> to vector<192x128xbf16>
    %cst_158 = arith.constant dense<0.000000e+00> : vector<2x128xf32>
    %207 = tpu.matmul %204, %206, %cst_158 {dimension_numbers = #tpu.dot_dimension_numbers<[1], [0], [0], [1], [0, 0, 1, 1], [], []>} : vector<2x192xbf16>, vector<192x128xbf16>, vector<2x128xf32> -> vector<2x128xf32>
    %c7_159 = arith.constant 7 : index
    %c0_160 = arith.constant 0 : index
    %208 = vector.load %arg8[%c7_159, %c0_160] : memref<8x192xf32, #tpu.memory_space<vmem>>, vector<1x128xf32>
    %209 = vector.broadcast %208 : vector<1x128xf32> to vector<2x128xf32>
    %210 = arith.addf %207, %209 : vector<2x128xf32>
    %c0_161 = arith.constant 0 : index
    %c0_162 = arith.constant 0 : index
    %211 = vector.load %arg9[%c0_161, %c0_162] : memref<2x128xf32, #tpu.memory_space<vmem>>, vector<2x128xf32>
    tpu.vector_store %arg9[%c0_161, %c0_162], %210 {strides = array<i32>} : memref<2x128xf32, #tpu.memory_space<vmem>>, vector<2x128xf32>,
    return
  }
  func.func @transform_0(%arg0: i32) -> (i32, i32) {
    %c0_i32 = arith.constant 0 : i32
    %c0_i32_0 = arith.constant 0 : i32
    return %arg0, %c0_i32 : i32, i32
  }
  func.func @transform_1(%arg0: i32) -> (i32, i32) {
    %c0_i32 = arith.constant 0 : i32
    %c0_i32_0 = arith.constant 0 : i32
    %c0_i32_1 = arith.constant 0 : i32
    return %c0_i32, %c0_i32_0 : i32, i32
  }
  func.func @transform_2(%arg0: i32) -> (i32, i32, i32) {
    %c0_i32 = arith.constant 0 : i32
    %c0_i32_0 = arith.constant 0 : i32
    %c0_i32_1 = arith.constant 0 : i32
    %c0_i32_2 = arith.constant 0 : i32
    return %c0_i32, %c0_i32_0, %c0_i32_1 : i32, i32, i32
  }
  func.func @transform_3(%arg0: i32) -> (i32, i32, i32) {
    %c0_i32 = arith.constant 0 : i32
    %c0_i32_0 = arith.constant 0 : i32
    %c0_i32_1 = arith.constant 0 : i32
    %c0_i32_2 = arith.constant 0 : i32
    return %c0_i32, %c0_i32_0, %c0_i32_1 : i32, i32, i32
  }
  func.func @transform_4(%arg0: i32) -> (i32, i32) {
    %c0_i32 = arith.constant 0 : i32
    %c0_i32_0 = arith.constant 0 : i32
    %c0_i32_1 = arith.constant 0 : i32
    return %c0_i32, %c0_i32_0 : i32, i32
  }
  func.func @transform_5(%arg0: i32) -> (i32, i32, i32) {
    %c0_i32 = arith.constant 0 : i32
    %c0_i32_0 = arith.constant 0 : i32
    %c0_i32_1 = arith.constant 0 : i32
    %c0_i32_2 = arith.constant 0 : i32
    return %c0_i32, %c0_i32_0, %c0_i32_1 : i32, i32, i32
  }
  func.func @transform_6(%arg0: i32) -> (i32, i32, i32) {
    %c0_i32 = arith.constant 0 : i32
    %c0_i32_0 = arith.constant 0 : i32
    %c0_i32_1 = arith.constant 0 : i32
    %c0_i32_2 = arith.constant 0 : i32
    return %c0_i32, %c0_i32_0, %c0_i32_1 : i32, i32, i32
  }
  func.func @transform_7(%arg0: i32) -> (i32, i32) {
    %c0_i32 = arith.constant 0 : i32
    %c0_i32_0 = arith.constant 0 : i32
    %c0_i32_1 = arith.constant 0 : i32
    return %c0_i32, %c0_i32_0 : i32, i32
  }
  func.func @transform_8(%arg0: i32) -> (i32, i32) {
    %c0_i32 = arith.constant 0 : i32
    %c0_i32_0 = arith.constant 0 : i32
    return %arg0, %c0_i32 : i32, i32
  }
}

</mosaic_0001>

<llo_original>
// kernel: denoise_forward.1
$region0: #{denoise_forward.1}
  #allocation0 [shape = 'u32[]', space=smem, size = 0x4, offset = 0x4, fixed_abs, tag = 'smem constant byte address 0x4 - core index']
  #allocation1 [shape = 'u32[144,128]{1,0:T(1,128)}', space=vmem, size = 0x12000, scoped, tag = 'internal scratch']
  #allocation2 [shape = 'f32[32,8]{1,0:T(8,128)}', space=vmem, size = 0x4000, scoped, tag = 'scratch operand']
  %s0 = inlined_call_operand.vmem [shape: bf16[32,8], index: 0, kind: input, shape index: {}]
  %s1 = inlined_call_operand.vmem [shape: bf16[8,192], index: 1, kind: input, shape index: {}]
  %s2 = inlined_call_operand.vmem [shape: bf16[2,192,128], index: 2, kind: input, shape index: {}]
  %s3 = inlined_call_operand.vmem [shape: bf16[6,128,128], index: 3, kind: input, shape index: {}]
  %s4 = inlined_call_operand.vmem [shape: bf16[128,192], index: 4, kind: input, shape index: {}]
  %s5 = inlined_call_operand.hbm [shape: f32[16,8,192], index: 5, kind: input, shape index: {}]
  %s6 = inlined_call_operand.vmem [shape: bf16[3,192,8], index: 6, kind: input, shape index: {}]
  %s7 = inlined_call_operand.vmem [shape: f32[8,192], index: 7, kind: input, shape index: {}]
  %s8 = inlined_call_operand.hbm [shape: f32[2,128], index: 8, kind: output, shape index: {}]
  %s9 = sld [smem:[#allocation0]]
  $region46: #{denoise_forward.1} parent=0
    _
  %s11 = ssub.s32 1, %s9
  %s12 = scalar_select 0, %s11, %s9
  $region1: #{denoise_forward.1} parent=0
    #allocation3 [shape = 'u8[131072]{0}', space=vmem, size = 0x20000, scoped, tag = 'input window, operand 5, single buffered']
    #allocation4 [shape = 's32[1]{0}', space=sflag, size = 0x4, scoped, tag = 'scoped memory for denoise_forward.1']
    #allocation5 [shape = 's32[1]{0}', space=sflag, size = 0x4, scoped, tag = 'scoped memory for denoise_forward.1']
    #allocation6 [shape = 'u8[1024]{0}', space=vmem, size = 0x400, scoped, tag = 'output window, operand 0, single buffered']
    %13 = vsyncpa [#allocation4], 0
    %14 = vsyncpa [#allocation5], 0
    // Predicated region
    $region2: #{denoise_forward.1} parent=1 // pred_check
      _
    $region3: #{denoise_forward.1} parent=1 // pred_check_branch
      %16 = sbr.rel (0) target = $region5
    $region4: #{denoise_forward.1} parent=1 // pred_region
      _
    $region5: #{denoise_forward.1} parent=1 // pred_fallthru
      _
    // Predicated region
    $region6: #{denoise_forward.1} parent=1 // pred_check
      _
    $region7: #{denoise_forward.1} parent=1 // pred_check_branch
      %18 = sbr.rel (0) target = $region9
    $region8: #{denoise_forward.1} parent=1 // pred_region
      _
    $region9: #{denoise_forward.1} parent=1 // pred_fallthru
      _
    // Predicated region
    $region10: #{denoise_forward.1} parent=1 // pred_check
      _
    $region11: #{denoise_forward.1} parent=1 // pred_check_branch
      %20 = sbr.rel (0) target = $region13
    $region12: #{denoise_forward.1} parent=1 // pred_region
      _
    $region13: #{denoise_forward.1} parent=1 // pred_fallthru
      _
    // Predicated region
    $region14: #{denoise_forward.1} parent=1 // pred_check
      _
    $region15: #{denoise_forward.1} parent=1 // pred_check_branch
      %22 = sbr.rel (0) target = $region17
    $region16: #{denoise_forward.1} parent=1 // pred_region
      _
    $region17: #{denoise_forward.1} parent=1 // pred_fallthru
      _
    // Predicated region
    $region18: #{denoise_forward.1} parent=1 // pred_check
      _
    $region19: #{denoise_forward.1} parent=1 // pred_check_branch
      %24 = sbr.rel (0) target = $region21
    $region20: #{denoise_forward.1} parent=1 // pred_region
      _
    $region21: #{denoise_forward.1} parent=1 // pred_fallthru
      _
    // Predicated region
    $region22: #{denoise_forward.1} parent=1 // pred_check
      _
    $region23: #{denoise_forward.1} parent=1 // pred_check_branch
      %26 = sbr.rel (0) target = $region25
    $region24: #{denoise_forward.1} parent=1 // pred_region
      %s28 = ssub.s32 4096, 4096
      %29 = vsyncadd [#allocation4], %s28
      %s30 = sshll.u32 [#allocation3], 4
      %s31 = int_to_ptr.vmem [resolvable:$true] %s30
      %36 = dma.hbm_to_vmem [thread:$0]  %s5, 4096, %s31, [#allocation4], 256, 256, 16
    $region25: #{denoise_forward.1} parent=1 // pred_fallthru
      _
    // Predicated region
    $region26: #{denoise_forward.1} parent=1 // pred_check
      _
    $region27: #{denoise_forward.1} parent=1 // pred_check_branch
      %38 = sbr.rel (0) target = $region29
    $region28: #{denoise_forward.1} parent=1 // pred_region
      _
    $region29: #{denoise_forward.1} parent=1 // pred_fallthru
      _
    // Predicated region
    $region30: #{denoise_forward.1} parent=1 // pred_check
      _
    $region31: #{denoise_forward.1} parent=1 // pred_check_branch
      %40 = sbr.rel (0) target = $region33
    $region32: #{denoise_forward.1} parent=1 // pred_region
      _
    $region33: #{denoise_forward.1} parent=1 // pred_fallthru
      _
    // Predicated region
    $region34: #{denoise_forward.1} parent=1 // pred_check
      _
    $region35: #{denoise_forward.1} parent=1 // pred_check_branch
      %42 = sbr.rel (0) target = $region37
    $region36: #{denoise_forward.1} parent=1 // pred_region
      %43 = dma.done [#allocation4], 4096
    $region37: #{denoise_forward.1} parent=1 // pred_fallthru
      _
    %v45 = vlaneseq
    %v46 = vshrl.u32 %v45, 7
    %v47 = vadd.s32 %v46, 8
    %v48 = vadd.s32 %v46, 16
    %v49 = vadd.s32 %v46, 24
    %vm50 = vcmp.ge.s32.totalorder %v46, 2
    %vm51 = vcmp.ge.s32.totalorder %v47, 2
    %vm52 = vcmp.ge.s32.totalorder %v48, 2
    %vm53 = vcmp.ge.s32.totalorder %v49, 2
    %vm54 = vcmp.lt.s32.totalorder %v46, 30
    %vm55 = vcmp.lt.s32.totalorder %v47, 30
    %vm56 = vcmp.lt.s32.totalorder %v48, 30
    %vm57 = vcmp.lt.s32.totalorder %v49, 30
    %v58 = vld [vmem:[%s0] sm:$0xf]
    %v59 = vld [vmem:[%s0 + $0x4] sm:$0xf]
    %v60 = vld [vmem:[%s0 + $0x8] sm:$0xf]
    %v61 = vld [vmem:[%s0 + $0xc] sm:$0xf]
    %v62 = vld [vmem:[%s1] sm:$0xff]
    %v63 = vld [vmem:[%s7] ss:$8 sm:$0x3]
    %v65 = vlaneseq
    %v66 = vshrl.u32 %v65, 7
    %v67 = vsub.s32 0, %v66
    %v68 = vrot.slane %v63, %v67
    %v69 = vlaneseq
    %v70 = vshrl.u32 %v69, 7
    %v71 = vsub.s32 1, %v70
    %v72 = vrot.slane %v63, %v71
    %v79 = vunpack.c.l.b16 %v58
    %v80 = vunpack.c.l.b16 %v59
    %v81 = vunpack.c.l.b16 %v60
    %v82 = vunpack.c.l.b16 %v61
    %v83 = vpack.c.b16 %v80, %v79
    %v84 = vpack.c.b16 %v82, %v81
    %v86 = vunpack.c.l.b16 %v62
    %v87 = vunpack.c.h.b16 %v62
    %v88 = vpack.c.b16 %v86, %v86
    %v89 = vpack.c.b16 %v87, %v87
    %vm90 = vcmask 64512
    %v92 = vsel %vm90, %v83, 0
    %v95 = vsel %vm90, %v84, 0
    %vm97 = vcmask 1043456
    %v99 = vsel %vm97, %v88, 0
    %v102 = vsel %vm97, %v89, 0
    %104 = vmatprep.subr.bf16.mxu0 %v102
    %105 = vmatpush1.bf16.msra.mxu0 %v99
    %106 = vmatprep.subr.bf16.mxu0 0
    %107 = vmatpush1.bf16.msra.mxu0 0
    %108 = vmatprep.subr.bf16.mxu0 0
    %109 = vmatpush1.bf16.msra.mxu0 0
    %110 = vmatprep.subr.bf16.mxu0 0
    %111 = vmatpush1.bf16.msra.mxu0 0
    %112 = vmatprep.subr.bf16.mxu0 0
    %113 = vmatpush1.bf16.msra.mxu0 0
    %114 = vmatprep.subr.bf16.mxu0 0
    %115 = vmatpush1.bf16.msra.mxu0 0
    %116 = vmatprep.subr.bf16.mxu0 0
    %117 = vmatpush1.bf16.msra.mxu0 0
    %118 = vmatprep.subr.bf16.mxu0 0
    %119 = vmatpush1.bf16.msra.mxu0 0
    %120 = vmatprep.subr.bf16.mxu0 0
    %121 = vmatpush1.bf16.msra.mxu0 0
    %122 = vmatprep.subr.bf16.mxu0 0
    %123 = vmatpush1.bf16.msra.mxu0 0
    %124 = vmatprep.subr.bf16.mxu0 0
    %125 = vmatpush1.bf16.msra.mxu0 0
    %126 = vmatprep.subr.bf16.mxu0 0
    %127 = vmatpush1.bf16.msra.mxu0 0
    %128 = vmatprep.subr.bf16.mxu0 0
    %129 = vmatpush1.bf16.msra.mxu0 0
    %130 = vmatprep.subr.bf16.mxu0 0
    %131 = vmatpush1.bf16.msra.mxu0 0
    %132 = vmatprep.subr.bf16.mxu0 0
    %133 = vmatpush1.bf16.msra.mxu0 0
    %134 = vmatprep.subr.bf16.mxu0 0
    %135 = vmatpush1.bf16.msra.mxu0 0
    %136 = vmatprep.mubr.bf16.mxu0 0
    %137 = vmatmul.mubr.bf16.gmra.mrb[0].mxu0 %v92
    %v138 = vpop.f32.mrb[0].mxu0
    %v139 = vadd.f32 %v68, %v138
    %v140 = vpop.f32.mrb[0].mxu0
    %v141 = vadd.f32 %v72, %v140
    %v142 = vpop.f32.mrb[0].mxu0
    %v143 = vadd.f32 %v68, %v142
    %v144 = vpop.f32.mrb[0].mxu0
    %v145 = vadd.f32 %v72, %v144
    %146 = vmatprep.mubr.bf16.mxu0 0
    %147 = vmatmul.mubr.bf16.gmra.mrb[0].mxu0 %v95
    %v148 = vpop.f32.mrb[0].mxu0
    %v149 = vadd.f32 %v68, %v148
    %v150 = vpop.f32.mrb[0].mxu0
    %v151 = vadd.f32 %v72, %v150
    %v152 = vpop.f32.mrb[0].mxu0
    %v153 = vadd.f32 %v68, %v152
    %v154 = vpop.f32.mrb[0].mxu0
    %v155 = vadd.f32 %v72, %v154
    %156 = vdwg.mxu0
    %v157 = vmax.f32 %v139, 0.0
    %v158 = vmax.f32 %v141, 0.0
    %v159 = vmax.f32 %v143, 0.0
    %v160 = vmax.f32 %v145, 0.0
    %v161 = vmax.f32 %v149, 0.0
    %v162 = vmax.f32 %v151, 0.0
    %v163 = vmax.f32 %v153, 0.0
    %v164 = vmax.f32 %v155, 0.0
    %v165 = vpack.c.bf16 %v159, %v157
    %v166 = vpack.c.bf16 %v160, %v158
    %v167 = vpack.c.bf16 %v163, %v161
    %v168 = vpack.c.bf16 %v164, %v162
    %v169 = vld [vmem:[%s2] sm:$0xf]
    %v170 = vld [vmem:[%s2 + $0x4] sm:$0xf]
    %v171 = vld [vmem:[%s2 + $0x8] sm:$0xf]
    %v172 = vld [vmem:[%s2 + $0xc] sm:$0xf]
    %v173 = vld [vmem:[%s2 + $0x10] sm:$0xf]
    %v174 = vld [vmem:[%s2 + $0x14] sm:$0xf]
    %v175 = vld [vmem:[%s2 + $0x18] sm:$0xf]
    %v176 = vld [vmem:[%s2 + $0x1c] sm:$0xf]
    %v177 = vld [vmem:[%s2 + $0x20] sm:$0xf]
    %v178 = vld [vmem:[%s2 + $0x24] sm:$0xf]
    %v179 = vld [vmem:[%s2 + $0x28] sm:$0xf]
    %v180 = vld [vmem:[%s2 + $0x2c] sm:$0xf]
    %v181 = vld [vmem:[%s2 + $0x30] sm:$0xf]
    %v182 = vld [vmem:[%s2 + $0x34] sm:$0xf]
    %v183 = vld [vmem:[%s2 + $0x38] sm:$0xf]
    %v184 = vld [vmem:[%s2 + $0x3c] sm:$0xf]
    %v185 = vld [vmem:[%s2 + $0x40] sm:$0xf]
    %v186 = vld [vmem:[%s2 + $0x44] sm:$0xf]
    %v187 = vld [vmem:[%s2 + $0x48] sm:$0xf]
    %v188 = vld [vmem:[%s2 + $0x4c] sm:$0xf]
    %v189 = vld [vmem:[%s2 + $0x50] sm:$0xf]
    %v190 = vld [vmem:[%s2 + $0x54] sm:$0xf]
    %v191 = vld [vmem:[%s2 + $0x58] sm:$0xf]
    %v192 = vld [vmem:[%s2 + $0x5c] sm:$0xf]
    %v193 = vld [vmem:[%s7 + $0x1] ss:$0 sm:$0xff]
    %v218 = vunpack.c.l.b16 %v169
    %v219 = vunpack.c.l.b16 %v170
    %v220 = vunpack.c.l.b16 %v171
    %v221 = vunpack.c.l.b16 %v172
    %v222 = vunpack.c.l.b16 %v173
    %v223 = vunpack.c.l.b16 %v174
    %v224 = vunpack.c.l.b16 %v175
    %v225 = vunpack.c.l.b16 %v176
    %v226 = vunpack.c.l.b16 %v177
    %v227 = vunpack.c.l.b16 %v178
    %v228 = vunpack.c.l.b16 %v179
    %v229 = vunpack.c.l.b16 %v180
    %v230 = vunpack.c.l.b16 %v181
    %v231 = vunpack.c.l.b16 %v182
    %v232 = vunpack.c.l.b16 %v183
    %v233 = vunpack.c.l.b16 %v184
    %v234 = vunpack.c.l.b16 %v185
    %v235 = vunpack.c.l.b16 %v186
    %v236 = vunpack.c.l.b16 %v187
    %v237 = vunpack.c.l.b16 %v188
    %v238 = vunpack.c.l.b16 %v189
    %v239 = vunpack.c.l.b16 %v190
    %v240 = vunpack.c.l.b16 %v191
    %v241 = vunpack.c.l.b16 %v192
    %v242 = vpack.c.b16 %v219, %v218
    %v243 = vpack.c.b16 %v221, %v220
    %v244 = vpack.c.b16 %v223, %v222
    %v245 = vpack.c.b16 %v225, %v224
    %v246 = vpack.c.b16 %v227, %v226
    %v247 = vpack.c.b16 %v229, %v228
    %v248 = vpack.c.b16 %v231, %v230
    %v249 = vpack.c.b16 %v233, %v232
    %v250 = vpack.c.b16 %v235, %v234
    %v251 = vpack.c.b16 %v237, %v236
    %v252 = vpack.c.b16 %v239, %v238
    %v253 = vpack.c.b16 %v241, %v240
    %vm266 = vcmask 523264
    %v268 = vsel %vm266, %v166, 0
    %v271 = vsel %vm266, %v168, 0
    %273 = vmatprep.subr.bf16.mxu0 0
    %274 = vmatpush1.bf16.msra.mxu0 %v242
    %275 = vmatprep.subr.bf16.mxu0 0
    %276 = vmatpush1.bf16.msra.mxu0 %v243
    %277 = vmatprep.subr.bf16.mxu0 0
    %278 = vmatpush1.bf16.msra.mxu0 %v244
    %279 = vmatprep.subr.bf16.mxu0 0
    %280 = vmatpush1.bf16.msra.mxu0 %v245
    %281 = vmatprep.subr.bf16.mxu0 0
    %282 = vmatpush1.bf16.msra.mxu0 %v246
    %283 = vmatprep.subr.bf16.mxu0 0
    %284 = vmatpush1.bf16.msra.mxu0 %v247
    %285 = vmatprep.subr.bf16.mxu0 0
    %286 = vmatpush1.bf16.msra.mxu0 %v248
    %287 = vmatprep.subr.bf16.mxu0 0
    %288 = vmatpush1.bf16.msra.mxu0 %v249
    %289 = vmatprep.subr.bf16.mxu0 0
    %290 = vmatpush1.bf16.msra.mxu0 %v250
    %291 = vmatprep.subr.bf16.mxu0 0
    %292 = vmatpush1.bf16.msra.mxu0 %v251
    %293 = vmatprep.subr.bf16.mxu0 0
    %294 = vmatpush1.bf16.msra.mxu0 %v252
    %295 = vmatprep.subr.bf16.mxu0 0
    %296 = vmatpush1.bf16.msra.mxu0 %v253
    %297 = vmatprep.subr.bf16.mxu0 0
    %298 = vmatpush1.bf16.msra.mxu0 0
    %299 = vmatprep.subr.bf16.mxu0 0
    %300 = vmatpush1.bf16.msra.mxu0 0
    %301 = vmatprep.subr.bf16.mxu0 0
    %302 = vmatpush1.bf16.msra.mxu0 0
    %303 = vmatprep.subr.bf16.mxu0 0
    %304 = vmatpush1.bf16.msra.mxu0 0
    %305 = vmatprep.mubr.bf16.mxu0 %v268
    %306 = vmatmul.mubr.bf16.gmra.mrb[0].mxu0 %v165
    %v307 = vpop.f32.mrb[0].mxu0
    %v308 = vadd.f32 %v193, %v307
    %v309 = vpop.f32.mrb[0].mxu0
    %v310 = vpop.f32.mrb[0].mxu0
    %v311 = vadd.f32 %v193, %v310
    %v312 = vpop.f32.mrb[0].mxu0
    %313 = vmatprep.mubr.bf16.mxu0 %v271
    %314 = vmatmul.mubr.bf16.gmra.mrb[0].mxu0 %v167
    %v315 = vpop.f32.mrb[0].mxu0
    %v316 = vadd.f32 %v193, %v315
    %v317 = vpop.f32.mrb[0].mxu0
    %v318 = vpop.f32.mrb[0].mxu0
    %v319 = vadd.f32 %v193, %v318
    %v320 = vpop.f32.mrb[0].mxu0
    %321 = vdwg.mxu0
    %v322 = vmax.f32 %v308, 0.0
    %v323 = vmax.f32 %v311, 0.0
    %v324 = vmax.f32 %v316, 0.0
    %v325 = vmax.f32 %v319, 0.0
    %v326 = vrot.slane %v322, 6
    %v327 = vrot.slane %v323, 6
    %v328 = vrot.slane %v324, 6
    %v329 = vrot.slane %v325, 6
    %vm330 = vcmp.lt.s32.totalorder %v46, 2
    %v331 = vsel %vm330, %v328, %v329
    %v332 = vsel %vm330, %v327, %v328
    %v333 = vsel %vm330, %v326, %v327
    %v334 = vsel %vm330, %v329, %v326
    %v335 = vsel %vm50, 1, 0
    %v336 = vsel %vm51, 1, 0
    %v337 = vsel %vm52, 1, 0
    %v338 = vsel %vm53, 1, 0
    %vm339 = vcmp.eq.s32.totalorder %v335, 1
    %vm340 = vcmp.eq.s32.totalorder %v336, 1
    %vm341 = vcmp.eq.s32.totalorder %v337, 1
    %vm342 = vcmp.eq.s32.totalorder %v338, 1
    %v343 = vsel %vm339, %v334, 0.0
    %v344 = vsel %vm340, %v333, 0.0
    %v345 = vsel %vm341, %v332, 0.0
    %v346 = vsel %vm342, %v331, 0.0
    %v347 = vpack.c.bf16 %v344, %v343
    %v348 = vpack.c.bf16 %v346, %v345
    %v349 = vld [vmem:[%s3] sm:$0xf]
    %v350 = vld [vmem:[%s3 + $0x4] sm:$0xf]
    %v351 = vld [vmem:[%s3 + $0x8] sm:$0xf]
    %v352 = vld [vmem:[%s3 + $0xc] sm:$0xf]
    %v353 = vld [vmem:[%s3 + $0x10] sm:$0xf]
    %v354 = vld [vmem:[%s3 + $0x14] sm:$0xf]
    %v355 = vld [vmem:[%s3 + $0x18] sm:$0xf]
    %v356 = vld [vmem:[%s3 + $0x1c] sm:$0xf]
    %v357 = vld [vmem:[%s3 + $0x20] sm:$0xf]
    %v358 = vld [vmem:[%s3 + $0x24] sm:$0xf]
    %v359 = vld [vmem:[%s3 + $0x28] sm:$0xf]
    %v360 = vld [vmem:[%s3 + $0x2c] sm:$0xf]
    %v361 = vld [vmem:[%s3 + $0x30] sm:$0xf]
    %v362 = vld [vmem:[%s3 + $0x34] sm:$0xf]
    %v363 = vld [vmem:[%s3 + $0x38] sm:$0xf]
    %v364 = vld [vmem:[%s3 + $0x3c] sm:$0xf]
    %v365 = vpack.c.bf16 %v323, %v322
    %v366 = vpack.c.bf16 %v325, %v324
    %s367 = scalar_lea.vmem %s3, 64
    %v368 = vld [vmem:[%s367] sm:$0xf]
    %v369 = vld [vmem:[%s367 + $0x4] sm:$0xf]
    %v370 = vld [vmem:[%s367 + $0x8] sm:$0xf]
    %v371 = vld [vmem:[%s367 + $0xc] sm:$0xf]
    %v372 = vld [vmem:[%s367 + $0x10] sm:$0xf]
    %v373 = vld [vmem:[%s367 + $0x14] sm:$0xf]
    %v374 = vld [vmem:[%s367 + $0x18] sm:$0xf]
    %v375 = vld [vmem:[%s367 + $0x1c] sm:$0xf]
    %v376 = vld [vmem:[%s367 + $0x20] sm:$0xf]
    %v377 = vld [vmem:[%s367 + $0x24] sm:$0xf]
    %v378 = vld [vmem:[%s367 + $0x28] sm:$0xf]
    %v379 = vld [vmem:[%s367 + $0x2c] sm:$0xf]
    %v380 = vld [vmem:[%s367 + $0x30] sm:$0xf]
    %v381 = vld [vmem:[%s367 + $0x34] sm:$0xf]
    %v382 = vld [vmem:[%s367 + $0x38] sm:$0xf]
    %v383 = vld [vmem:[%s367 + $0x3c] sm:$0xf]
    %v400 = vunpack.c.l.b16 %v368
    %v401 = vunpack.c.l.b16 %v369
    %v402 = vunpack.c.l.b16 %v370
    %v403 = vunpack.c.l.b16 %v371
    %v404 = vunpack.c.l.b16 %v372
    %v405 = vunpack.c.l.b16 %v373
    %v406 = vunpack.c.l.b16 %v374
    %v407 = vunpack.c.l.b16 %v375
    %v408 = vunpack.c.l.b16 %v376
    %v409 = vunpack.c.l.b16 %v377
    %v410 = vunpack.c.l.b16 %v378
    %v411 = vunpack.c.l.b16 %v379
    %v412 = vunpack.c.l.b16 %v380
    %v413 = vunpack.c.l.b16 %v381
    %v414 = vunpack.c.l.b16 %v382
    %v415 = vunpack.c.l.b16 %v383
    %v416 = vpack.c.b16 %v401, %v400
    %v417 = vpack.c.b16 %v403, %v402
    %v418 = vpack.c.b16 %v405, %v404
    %v419 = vpack.c.b16 %v407, %v406
    %v420 = vpack.c.b16 %v409, %v408
    %v421 = vpack.c.b16 %v411, %v410
    %v422 = vpack.c.b16 %v413, %v412
    %v423 = vpack.c.b16 %v415, %v414
    %432 = vmatprep.subr.bf16.mxu0 0
    %433 = vmatpush1.bf16.msra.mxu0 %v416
    %434 = vmatprep.subr.bf16.mxu0 0
    %435 = vmatpush1.bf16.msra.mxu0 %v417
    %436 = vmatprep.subr.bf16.mxu0 0
    %437 = vmatpush1.bf16.msra.mxu0 %v418
    %438 = vmatprep.subr.bf16.mxu0 0
    %439 = vmatpush1.bf16.msra.mxu0 %v419
    %440 = vmatprep.subr.bf16.mxu0 0
    %441 = vmatpush1.bf16.msra.mxu0 %v420
    %442 = vmatprep.subr.bf16.mxu0 0
    %443 = vmatpush1.bf16.msra.mxu0 %v421
    %444 = vmatprep.subr.bf16.mxu0 0
    %445 = vmatpush1.bf16.msra.mxu0 %v422
    %446 = vmatprep.subr.bf16.mxu0 0
    %447 = vmatpush1.bf16.msra.mxu0 %v423
    %448 = vmatprep.subr.bf16.mxu0 0
    %449 = vmatpush1.bf16.msra.mxu0 0
    %450 = vmatprep.subr.bf16.mxu0 0
    %451 = vmatpush1.bf16.msra.mxu0 0
    %452 = vmatprep.subr.bf16.mxu0 0
    %453 = vmatpush1.bf16.msra.mxu0 0
    %454 = vmatprep.subr.bf16.mxu0 0
    %455 = vmatpush1.bf16.msra.mxu0 0
    %456 = vmatprep.subr.bf16.mxu0 0
    %457 = vmatpush1.bf16.msra.mxu0 0
    %458 = vmatprep.subr.bf16.mxu0 0
    %459 = vmatpush1.bf16.msra.mxu0 0
    %460 = vmatprep.subr.bf16.mxu0 0
    %461 = vmatpush1.bf16.msra.mxu0 0
    %462 = vmatprep.subr.bf16.mxu0 0
    %463 = vmatpush1.bf16.msra.mxu0 0
    %464 = vmatprep.mubr.bf16.mxu0 0
    %465 = vmatmul.mubr.bf16.gmra.mrb[0].mxu0 %v365
    %v466 = vpop.f32.mrb[0].mxu0
    %v467 = vadd.f32 0.0, %v466
    %v468 = vpop.f32.mrb[0].mxu0
    %v469 = vpop.f32.mrb[0].mxu0
    %v470 = vadd.f32 0.0, %v469
    %v471 = vpop.f32.mrb[0].mxu0
    %472 = vmatprep.mubr.bf16.mxu0 0
    %473 = vmatmul.mubr.bf16.gmra.mrb[0].mxu0 %v366
    %v474 = vpop.f32.mrb[0].mxu0
    %v475 = vadd.f32 0.0, %v474
    %v476 = vpop.f32.mrb[0].mxu0
    %v477 = vpop.f32.mrb[0].mxu0
    %v478 = vadd.f32 0.0, %v477
    %v479 = vpop.f32.mrb[0].mxu0
    %480 = vdwg.mxu0
    %v497 = vunpack.c.l.b16 %v349
    %v498 = vunpack.c.l.b16 %v350
    %v499 = vunpack.c.l.b16 %v351
    %v500 = vunpack.c.l.b16 %v352
    %v501 = vunpack.c.l.b16 %v353
    %v502 = vunpack.c.l.b16 %v354
    %v503 = vunpack.c.l.b16 %v355
    %v504 = vunpack.c.l.b16 %v356
    %v505 = vunpack.c.l.b16 %v357
    %v506 = vunpack.c.l.b16 %v358
    %v507 = vunpack.c.l.b16 %v359
    %v508 = vunpack.c.l.b16 %v360
    %v509 = vunpack.c.l.b16 %v361
    %v510 = vunpack.c.l.b16 %v362
    %v511 = vunpack.c.l.b16 %v363
    %v512 = vunpack.c.l.b16 %v364
    %v513 = vpack.c.b16 %v498, %v497
    %v514 = vpack.c.b16 %v500, %v499
    %v515 = vpack.c.b16 %v502, %v501
    %v516 = vpack.c.b16 %v504, %v503
    %v517 = vpack.c.b16 %v506, %v505
    %v518 = vpack.c.b16 %v508, %v507
    %v519 = vpack.c.b16 %v510, %v509
    %v520 = vpack.c.b16 %v512, %v511
    %529 = vmatprep.subr.bf16.mxu0 0
    %530 = vmatpush1.bf16.msra.mxu0 %v513
    %531 = vmatprep.subr.bf16.mxu0 0
    %532 = vmatpush1.bf16.msra.mxu0 %v514
    %533 = vmatprep.subr.bf16.mxu0 0
    %534 = vmatpush1.bf16.msra.mxu0 %v515
    %535 = vmatprep.subr.bf16.mxu0 0
    %536 = vmatpush1.bf16.msra.mxu0 %v516
    %537 = vmatprep.subr.bf16.mxu0 0
    %538 = vmatpush1.bf16.msra.mxu0 %v517
    %539 = vmatprep.subr.bf16.mxu0 0
    %540 = vmatpush1.bf16.msra.mxu0 %v518
    %541 = vmatprep.subr.bf16.mxu0 0
    %542 = vmatpush1.bf16.msra.mxu0 %v519
    %543 = vmatprep.subr.bf16.mxu0 0
    %544 = vmatpush1.bf16.msra.mxu0 %v520
    %545 = vmatprep.subr.bf16.mxu0 0
    %546 = vmatpush1.bf16.msra.mxu0 0
    %547 = vmatprep.subr.bf16.mxu0 0
    %548 = vmatpush1.bf16.msra.mxu0 0
    %549 = vmatprep.subr.bf16.mxu0 0
    %550 = vmatpush1.bf16.msra.mxu0 0
    %551 = vmatprep.subr.bf16.mxu0 0
    %552 = vmatpush1.bf16.msra.mxu0 0
    %553 = vmatprep.subr.bf16.mxu0 0
    %554 = vmatpush1.bf16.msra.mxu0 0
    %555 = vmatprep.subr.bf16.mxu0 0
    %556 = vmatpush1.bf16.msra.mxu0 0
    %557 = vmatprep.subr.bf16.mxu0 0
    %558 = vmatpush1.bf16.msra.mxu0 0
    %559 = vmatprep.subr.bf16.mxu0 0
    %560 = vmatpush1.bf16.msra.mxu0 0
    %561 = vmatprep.mubr.bf16.mxu0 0
    %562 = vmatmul.mubr.bf16.gmra.mrb[0].mxu0 %v347
    %v563 = vpop.f32.mrb[0].mxu0
    %v564 = vadd.f32 %v467, %v563
    %v565 = vpop.f32.mrb[0].mxu0
    %v566 = vpop.f32.mrb[0].mxu0
    %v567 = vadd.f32 %v470, %v566
    %v568 = vpop.f32.mrb[0].mxu0
    %569 = vmatprep.mubr.bf16.mxu0 0
    %570 = vmatmul.mubr.bf16.gmra.mrb[0].mxu0 %v348
    %v571 = vpop.f32.mrb[0].mxu0
    %v572 = vadd.f32 %v475, %v571
    %v573 = vpop.f32.mrb[0].mxu0
    %v574 = vpop.f32.mrb[0].mxu0
    %v575 = vadd.f32 %v478, %v574
    %v576 = vpop.f32.mrb[0].mxu0
    %577 = vdwg.mxu0
    %v578 = vrot.slane %v322, 2
    %v579 = vrot.slane %v323, 2
    %v580 = vrot.slane %v324, 2
    %v581 = vrot.slane %v325, 2
    %vm582 = vcmp.lt.s32.totalorder %v46, 6
    %v583 = vsel %vm582, %v580, %v581
    %v584 = vsel %vm582, %v579, %v580
    %v585 = vsel %vm582, %v578, %v579
    %v586 = vsel %vm582, %v581, %v578
    %v587 = vsel %vm54, 1, 0
    %v588 = vsel %vm55, 1, 0
    %v589 = vsel %vm56, 1, 0
    %v590 = vsel %vm57, 1, 0
    %vm591 = vcmp.eq.s32.totalorder %v587, 1
    %vm592 = vcmp.eq.s32.totalorder %v588, 1
    %vm593 = vcmp.eq.s32.totalorder %v589, 1
    %vm594 = vcmp.eq.s32.totalorder %v590, 1
    %v595 = vsel %vm591, %v585, 0.0
    %v596 = vsel %vm592, %v584, 0.0
    %v597 = vsel %vm593, %v583, 0.0
    %v598 = vsel %vm594, %v586, 0.0
    %v599 = vpack.c.bf16 %v596, %v595
    %v600 = vpack.c.bf16 %v598, %v597
    %s601 = scalar_lea.vmem %s3, 128
    %v602 = vld [vmem:[%s601] sm:$0xf]
    %v603 = vld [vmem:[%s601 + $0x4] sm:$0xf]
    %v604 = vld [vmem:[%s601 + $0x8] sm:$0xf]
    %v605 = vld [vmem:[%s601 + $0xc] sm:$0xf]
    %v606 = vld [vmem:[%s601 + $0x10] sm:$0xf]
    %v607 = vld [vmem:[%s601 + $0x14] sm:$0xf]
    %v608 = vld [vmem:[%s601 + $0x18] sm:$0xf]
    %v609 = vld [vmem:[%s601 + $0x1c] sm:$0xf]
    %v610 = vld [vmem:[%s601 + $0x20] sm:$0xf]
    %v611 = vld [vmem:[%s601 + $0x24] sm:$0xf]
    %v612 = vld [vmem:[%s601 + $0x28] sm:$0xf]
    %v613 = vld [vmem:[%s601 + $0x2c] sm:$0xf]
    %v614 = vld [vmem:[%s601 + $0x30] sm:$0xf]
    %v615 = vld [vmem:[%s601 + $0x34] sm:$0xf]
    %v616 = vld [vmem:[%s601 + $0x38] sm:$0xf]
    %v617 = vld [vmem:[%s601 + $0x3c] sm:$0xf]
    %v634 = vunpack.c.l.b16 %v602
    %v635 = vunpack.c.l.b16 %v603
    %v636 = vunpack.c.l.b16 %v604
    %v637 = vunpack.c.l.b16 %v605
    %v638 = vunpack.c.l.b16 %v606
    %v639 = vunpack.c.l.b16 %v607
    %v640 = vunpack.c.l.b16 %v608
    %v641 = vunpack.c.l.b16 %v609
    %v642 = vunpack.c.l.b16 %v610
    %v643 = vunpack.c.l.b16 %v611
    %v644 = vunpack.c.l.b16 %v612
    %v645 = vunpack.c.l.b16 %v613
    %v646 = vunpack.c.l.b16 %v614
    %v647 = vunpack.c.l.b16 %v615
    %v648 = vunpack.c.l.b16 %v616
    %v649 = vunpack.c.l.b16 %v617
    %v650 = vpack.c.b16 %v635, %v634
    %v651 = vpack.c.b16 %v637, %v636
    %v652 = vpack.c.b16 %v639, %v638
    %v653 = vpack.c.b16 %v641, %v640
    %v654 = vpack.c.b16 %v643, %v642
    %v655 = vpack.c.b16 %v645, %v644
    %v656 = vpack.c.b16 %v647, %v646
    %v657 = vpack.c.b16 %v649, %v648
    %666 = vmatprep.subr.bf16.mxu0 0
    %667 = vmatpush1.bf16.msra.mxu0 %v650
    %668 = vmatprep.subr.bf16.mxu0 0
    %669 = vmatpush1.bf16.msra.mxu0 %v651
    %670 = vmatprep.subr.bf16.mxu0 0
    %671 = vmatpush1.bf16.msra.mxu0 %v652
    %672 = vmatprep.subr.bf16.mxu0 0
    %673 = vmatpush1.bf16.msra.mxu0 %v653
    %674 = vmatprep.subr.bf16.mxu0 0
    %675 = vmatpush1.bf16.msra.mxu0 %v654
    %676 = vmatprep.subr.bf16.mxu0 0
    %677 = vmatpush1.bf16.msra.mxu0 %v655
    %678 = vmatprep.subr.bf16.mxu0 0
    %679 = vmatpush1.bf16.msra.mxu0 %v656
    %680 = vmatprep.subr.bf16.mxu0 0
    %681 = vmatpush1.bf16.msra.mxu0 %v657
    %682 = vmatprep.subr.bf16.mxu0 0
    %683 = vmatpush1.bf16.msra.mxu0 0
    %684 = vmatprep.subr.bf16.mxu0 0
    %685 = vmatpush1.bf16.msra.mxu0 0
    %686 = vmatprep.subr.bf16.mxu0 0
    %687 = vmatpush1.bf16.msra.mxu0 0
    %688 = vmatprep.subr.bf16.mxu0 0
    %689 = vmatpush1.bf16.msra.mxu0 0
    %690 = vmatprep.subr.bf16.mxu0 0
    %691 = vmatpush1.bf16.msra.mxu0 0
    %692 = vmatprep.subr.bf16.mxu0 0
    %693 = vmatpush1.bf16.msra.mxu0 0
    %694 = vmatprep.subr.bf16.mxu0 0
    %695 = vmatpush1.bf16.msra.mxu0 0
    %696 = vmatprep.subr.bf16.mxu0 0
    %697 = vmatpush1.bf16.msra.mxu0 0
    %698 = vmatprep.mubr.bf16.mxu0 0
    %699 = vmatmul.mubr.bf16.gmra.mrb[0].mxu0 %v599
    %v700 = vpop.f32.mrb[0].mxu0
    %v701 = vadd.f32 0.0, %v700
    %v702 = vpop.f32.mrb[0].mxu0
    %v703 = vpop.f32.mrb[0].mxu0
    %v704 = vadd.f32 0.0, %v703
    %v705 = vpop.f32.mrb[0].mxu0
    %706 = vmatprep.mubr.bf16.mxu0 0
    %707 = vmatmul.mubr.bf16.gmra.mrb[0].mxu0 %v600
    %v708 = vpop.f32.mrb[0].mxu0
    %v709 = vadd.f32 0.0, %v708
    %v710 = vpop.f32.mrb[0].mxu0
    %v711 = vpop.f32.mrb[0].mxu0
    %v712 = vadd.f32 0.0, %v711
    %v713 = vpop.f32.mrb[0].mxu0
    %714 = vdwg.mxu0
    %v715 = vadd.f32 %v564, %v701
    %v716 = vadd.f32 %v567, %v704
    %v717 = vadd.f32 %v572, %v709
    %v718 = vadd.f32 %v575, %v712
    %v719 = vld [vmem:[%s7 + $0x2] ss:$0 sm:$0xff]
    %v720 = vadd.f32 %v715, %v719
    %v721 = vadd.f32 %v716, %v719
    %v722 = vadd.f32 %v717, %v719
    %v723 = vadd.f32 %v718, %v719
    %v724 = vmax.f32 %v720, 0.0
    %v725 = vmax.f32 %v721, 0.0
    %v726 = vmax.f32 %v722, 0.0
    %v727 = vmax.f32 %v723, 0.0
    %v728 = vrot.slane %v724, 2
    %v729 = vrot.slane %v725, 2
    %v730 = vrot.slane %v726, 2
    %v731 = vrot.slane %v727, 2
    %v732 = vsel %vm582, %v730, %v731
    %v733 = vsel %vm582, %v729, %v730
    %v734 = vsel %vm582, %v728, %v729
    %v735 = vsel %vm582, %v731, %v728
    %v736 = vsel %vm591, %v734, 0.0
    %v737 = vsel %vm592, %v733, 0.0
    %v738 = vsel %vm593, %v732, 0.0
    %v739 = vsel %vm594, %v735, 0.0
    %v740 = vpack.c.bf16 %v737, %v736
    %v741 = vpack.c.bf16 %v739, %v738
    %s742 = scalar_lea.vmem %s3, 192
    %v743 = vld [vmem:[%s742] sm:$0xf]
    %v744 = vld [vmem:[%s742 + $0x4] sm:$0xf]
    %v745 = vld [vmem:[%s742 + $0x8] sm:$0xf]
    %v746 = vld [vmem:[%s742 + $0xc] sm:$0xf]
    %v747 = vld [vmem:[%s742 + $0x10] sm:$0xf]
    %v748 = vld [vmem:[%s742 + $0x14] sm:$0xf]
    %v749 = vld [vmem:[%s742 + $0x18] sm:$0xf]
    %v750 = vld [vmem:[%s742 + $0x1c] sm:$0xf]
    %v751 = vld [vmem:[%s742 + $0x20] sm:$0xf]
    %v752 = vld [vmem:[%s742 + $0x24] sm:$0xf]
    %v753 = vld [vmem:[%s742 + $0x28] sm:$0xf]
    %v754 = vld [vmem:[%s742 + $0x2c] sm:$0xf]
    %v755 = vld [vmem:[%s742 + $0x30] sm:$0xf]
    %v756 = vld [vmem:[%s742 + $0x34] sm:$0xf]
    %v757 = vld [vmem:[%s742 + $0x38] sm:$0xf]
    %v758 = vld [vmem:[%s742 + $0x3c] sm:$0xf]
    %v759 = vpack.c.bf16 %v725, %v724
    %v760 = vpack.c.bf16 %v727, %v726
    %s761 = scalar_lea.vmem %s3, 256
    %v762 = vld [vmem:[%s761] sm:$0xf]
    %v763 = vld [vmem:[%s761 + $0x4] sm:$0xf]
    %v764 = vld [vmem:[%s761 + $0x8] sm:$0xf]
    %v765 = vld [vmem:[%s761 + $0xc] sm:$0xf]
    %v766 = vld [vmem:[%s761 + $0x10] sm:$0xf]
    %v767 = vld [vmem:[%s761 + $0x14] sm:$0xf]
    %v768 = vld [vmem:[%s761 + $0x18] sm:$0xf]
    %v769 = vld [vmem:[%s761 + $0x1c] sm:$0xf]
    %v770 = vld [vmem:[%s761 + $0x20] sm:$0xf]
    %v771 = vld [vmem:[%s761 + $0x24] sm:$0xf]
    %v772 = vld [vmem:[%s761 + $0x28] sm:$0xf]
    %v773 = vld [vmem:[%s761 + $0x2c] sm:$0xf]
    %v774 = vld [vmem:[%s761 + $0x30] sm:$0xf]
    %v775 = vld [vmem:[%s761 + $0x34] sm:$0xf]
    %v776 = vld [vmem:[%s761 + $0x38] sm:$0xf]
    %v777 = vld [vmem:[%s761 + $0x3c] sm:$0xf]
    %v794 = vunpack.c.l.b16 %v762
    %v795 = vunpack.c.l.b16 %v763
    %v796 = vunpack.c.l.b16 %v764
    %v797 = vunpack.c.l.b16 %v765
    %v798 = vunpack.c.l.b16 %v766
    %v799 = vunpack.c.l.b16 %v767
    %v800 = vunpack.c.l.b16 %v768
    %v801 = vunpack.c.l.b16 %v769
    %v802 = vunpack.c.l.b16 %v770
    %v803 = vunpack.c.l.b16 %v771
    %v804 = vunpack.c.l.b16 %v772
    %v805 = vunpack.c.l.b16 %v773
    %v806 = vunpack.c.l.b16 %v774
    %v807 = vunpack.c.l.b16 %v775
    %v808 = vunpack.c.l.b16 %v776
    %v809 = vunpack.c.l.b16 %v777
    %v810 = vpack.c.b16 %v795, %v794
    %v811 = vpack.c.b16 %v797, %v796
    %v812 = vpack.c.b16 %v799, %v798
    %v813 = vpack.c.b16 %v801, %v800
    %v814 = vpack.c.b16 %v803, %v802
    %v815 = vpack.c.b16 %v805, %v804
    %v816 = vpack.c.b16 %v807, %v806
    %v817 = vpack.c.b16 %v809, %v808
    %826 = vmatprep.subr.bf16.mxu0 0
    %827 = vmatpush1.bf16.msra.mxu0 %v810
    %828 = vmatprep.subr.bf16.mxu0 0
    %829 = vmatpush1.bf16.msra.mxu0 %v811
    %830 = vmatprep.subr.bf16.mxu0 0
    %831 = vmatpush1.bf16.msra.mxu0 %v812
    %832 = vmatprep.subr.bf16.mxu0 0
    %833 = vmatpush1.bf16.msra.mxu0 %v813
    %834 = vmatprep.subr.bf16.mxu0 0
    %835 = vmatpush1.bf16.msra.mxu0 %v814
    %836 = vmatprep.subr.bf16.mxu0 0
    %837 = vmatpush1.bf16.msra.mxu0 %v815
    %838 = vmatprep.subr.bf16.mxu0 0
    %839 = vmatpush1.bf16.msra.mxu0 %v816
    %840 = vmatprep.subr.bf16.mxu0 0
    %841 = vmatpush1.bf16.msra.mxu0 %v817
    %842 = vmatprep.subr.bf16.mxu0 0
    %843 = vmatpush1.bf16.msra.mxu0 0
    %844 = vmatprep.subr.bf16.mxu0 0
    %845 = vmatpush1.bf16.msra.mxu0 0
    %846 = vmatprep.subr.bf16.mxu0 0
    %847 = vmatpush1.bf16.msra.mxu0 0
    %848 = vmatprep.subr.bf16.mxu0 0
    %849 = vmatpush1.bf16.msra.mxu0 0
    %850 = vmatprep.subr.bf16.mxu0 0
    %851 = vmatpush1.bf16.msra.mxu0 0
    %852 = vmatprep.subr.bf16.mxu0 0
    %853 = vmatpush1.bf16.msra.mxu0 0
    %854 = vmatprep.subr.bf16.mxu0 0
    %855 = vmatpush1.bf16.msra.mxu0 0
    %856 = vmatprep.subr.bf16.mxu0 0
    %857 = vmatpush1.bf16.msra.mxu0 0
    %858 = vmatprep.mubr.bf16.mxu0 0
    %859 = vmatmul.mubr.bf16.gmra.mrb[0].mxu0 %v759
    %v860 = vpop.f32.mrb[0].mxu0
    %v861 = vadd.f32 0.0, %v860
    %v862 = vpop.f32.mrb[0].mxu0
    %v863 = vpop.f32.mrb[0].mxu0
    %v864 = vadd.f32 0.0, %v863
    %v865 = vpop.f32.mrb[0].mxu0
    %866 = vmatprep.mubr.bf16.mxu0 0
    %867 = vmatmul.mubr.bf16.gmra.mrb[0].mxu0 %v760
    %v868 = vpop.f32.mrb[0].mxu0
    %v869 = vadd.f32 0.0, %v868
    %v870 = vpop.f32.mrb[0].mxu0
    %v871 = vpop.f32.mrb[0].mxu0
    %v872 = vadd.f32 0.0, %v871
    %v873 = vpop.f32.mrb[0].mxu0
    %874 = vdwg.mxu0
    %v891 = vunpack.c.l.b16 %v743
    %v892 = vunpack.c.l.b16 %v744
    %v893 = vunpack.c.l.b16 %v745
    %v894 = vunpack.c.l.b16 %v746
    %v895 = vunpack.c.l.b16 %v747
    %v896 = vunpack.c.l.b16 %v748
    %v897 = vunpack.c.l.b16 %v749
    %v898 = vunpack.c.l.b16 %v750
    %v899 = vunpack.c.l.b16 %v751
    %v900 = vunpack.c.l.b16 %v752
    %v901 = vunpack.c.l.b16 %v753
    %v902 = vunpack.c.l.b16 %v754
    %v903 = vunpack.c.l.b16 %v755
    %v904 = vunpack.c.l.b16 %v756
    %v905 = vunpack.c.l.b16 %v757
    %v906 = vunpack.c.l.b16 %v758
    %v907 = vpack.c.b16 %v892, %v891
    %v908 = vpack.c.b16 %v894, %v893
    %v909 = vpack.c.b16 %v896, %v895
    %v910 = vpack.c.b16 %v898, %v897
    %v911 = vpack.c.b16 %v900, %v899
    %v912 = vpack.c.b16 %v902, %v901
    %v913 = vpack.c.b16 %v904, %v903
    %v914 = vpack.c.b16 %v906, %v905
    %923 = vmatprep.subr.bf16.mxu0 0
    %924 = vmatpush1.bf16.msra.mxu0 %v907
    %925 = vmatprep.subr.bf16.mxu0 0
    %926 = vmatpush1.bf16.msra.mxu0 %v908
    %927 = vmatprep.subr.bf16.mxu0 0
    %928 = vmatpush1.bf16.msra.mxu0 %v909
    %929 = vmatprep.subr.bf16.mxu0 0
    %930 = vmatpush1.bf16.msra.mxu0 %v910
    %931 = vmatprep.subr.bf16.mxu0 0
    %932 = vmatpush1.bf16.msra.mxu0 %v911
    %933 = vmatprep.subr.bf16.mxu0 0
    %934 = vmatpush1.bf16.msra.mxu0 %v912
    %935 = vmatprep.subr.bf16.mxu0 0
    %936 = vmatpush1.bf16.msra.mxu0 %v913
    %937 = vmatprep.subr.bf16.mxu0 0
    %938 = vmatpush1.bf16.msra.mxu0 %v914
    %939 = vmatprep.subr.bf16.mxu0 0
    %940 = vmatpush1.bf16.msra.mxu0 0
    %941 = vmatprep.subr.bf16.mxu0 0
    %942 = vmatpush1.bf16.msra.mxu0 0
    %943 = vmatprep.subr.bf16.mxu0 0
    %944 = vmatpush1.bf16.msra.mxu0 0
    %945 = vmatprep.subr.bf16.mxu0 0
    %946 = vmatpush1.bf16.msra.mxu0 0
    %947 = vmatprep.subr.bf16.mxu0 0
    %948 = vmatpush1.bf16.msra.mxu0 0
    %949 = vmatprep.subr.bf16.mxu0 0
    %950 = vmatpush1.bf16.msra.mxu0 0
    %951 = vmatprep.subr.bf16.mxu0 0
    %952 = vmatpush1.bf16.msra.mxu0 0
    %953 = vmatprep.subr.bf16.mxu0 0
    %954 = vmatpush1.bf16.msra.mxu0 0
    %955 = vmatprep.mubr.bf16.mxu0 0
    %956 = vmatmul.mubr.bf16.gmra.mrb[0].mxu0 %v740
    %v957 = vpop.f32.mrb[0].mxu0
    %v958 = vadd.f32 %v861, %v957
    %v959 = vpop.f32.mrb[0].mxu0
    %v960 = vpop.f32.mrb[0].mxu0
    %v961 = vadd.f32 %v864, %v960
    %v962 = vpop.f32.mrb[0].mxu0
    %963 = vmatprep.mubr.bf16.mxu0 0
    %964 = vmatmul.mubr.bf16.gmra.mrb[0].mxu0 %v741
    %v965 = vpop.f32.mrb[0].mxu0
    %v966 = vadd.f32 %v869, %v965
    %v967 = vpop.f32.mrb[0].mxu0
    %v968 = vpop.f32.mrb[0].mxu0
    %v969 = vadd.f32 %v872, %v968
    %v970 = vpop.f32.mrb[0].mxu0
    %971 = vdwg.mxu0
    %v972 = vrot.slane %v724, 6
    %v973 = vrot.slane %v725, 6
    %v974 = vrot.slane %v726, 6
    %v975 = vrot.slane %v727, 6
    %v976 = vsel %vm330, %v974, %v975
    %v977 = vsel %vm330, %v973, %v974
    %v978 = vsel %vm330, %v972, %v973
    %v979 = vsel %vm330, %v975, %v972
    %v980 = vsel %vm339, %v979, 0.0
    %v981 = vsel %vm340, %v978, 0.0
    %v982 = vsel %vm341, %v977, 0.0
    %v983 = vsel %vm342, %v976, 0.0
    %v984 = vpack.c.bf16 %v981, %v980
    %v985 = vpack.c.bf16 %v983, %v982
    %s986 = scalar_lea.vmem %s3, 320
    %v987 = vld [vmem:[%s986] sm:$0xf]
    %v988 = vld [vmem:[%s986 + $0x4] sm:$0xf]
    %v989 = vld [vmem:[%s986 + $0x8] sm:$0xf]
    %v990 = vld [vmem:[%s986 + $0xc] sm:$0xf]
    %v991 = vld [vmem:[%s986 + $0x10] sm:$0xf]
    %v992 = vld [vmem:[%s986 + $0x14] sm:$0xf]
    %v993 = vld [vmem:[%s986 + $0x18] sm:$0xf]
    %v994 = vld [vmem:[%s986 + $0x1c] sm:$0xf]
    %v995 = vld [vmem:[%s986 + $0x20] sm:$0xf]
    %v996 = vld [vmem:[%s986 + $0x24] sm:$0xf]
    %v997 = vld [vmem:[%s986 + $0x28] sm:$0xf]
    %v998 = vld [vmem:[%s986 + $0x2c] sm:$0xf]
    %v999 = vld [vmem:[%s986 + $0x30] sm:$0xf]
    %v1000 = vld [vmem:[%s986 + $0x34] sm:$0xf]
    %v1001 = vld [vmem:[%s986 + $0x38] sm:$0xf]
    %v1002 = vld [vmem:[%s986 + $0x3c] sm:$0xf]
    %v1019 = vunpack.c.l.b16 %v987
    %v1020 = vunpack.c.l.b16 %v988
    %v1021 = vunpack.c.l.b16 %v989
    %v1022 = vunpack.c.l.b16 %v990
    %v1023 = vunpack.c.l.b16 %v991
    %v1024 = vunpack.c.l.b16 %v992
    %v1025 = vunpack.c.l.b16 %v993
    %v1026 = vunpack.c.l.b16 %v994
    %v1027 = vunpack.c.l.b16 %v995
    %v1028 = vunpack.c.l.b16 %v996
    %v1029 = vunpack.c.l.b16 %v997
    %v1030 = vunpack.c.l.b16 %v998
    %v1031 = vunpack.c.l.b16 %v999
    %v1032 = vunpack.c.l.b16 %v1000
    %v1033 = vunpack.c.l.b16 %v1001
    %v1034 = vunpack.c.l.b16 %v1002
    %v1035 = vpack.c.b16 %v1020, %v1019
    %v1036 = vpack.c.b16 %v1022, %v1021
    %v1037 = vpack.c.b16 %v1024, %v1023
    %v1038 = vpack.c.b16 %v1026, %v1025
    %v1039 = vpack.c.b16 %v1028, %v1027
    %v1040 = vpack.c.b16 %v1030, %v1029
    %v1041 = vpack.c.b16 %v1032, %v1031
    %v1042 = vpack.c.b16 %v1034, %v1033
    %1051 = vmatprep.subr.bf16.mxu0 0
    %1052 = vmatpush1.bf16.msra.mxu0 %v1035
    %1053 = vmatprep.subr.bf16.mxu0 0
    %1054 = vmatpush1.bf16.msra.mxu0 %v1036
    %1055 = vmatprep.subr.bf16.mxu0 0
    %1056 = vmatpush1.bf16.msra.mxu0 %v1037
    %1057 = vmatprep.subr.bf16.mxu0 0
    %1058 = vmatpush1.bf16.msra.mxu0 %v1038
    %1059 = vmatprep.subr.bf16.mxu0 0
    %1060 = vmatpush1.bf16.msra.mxu0 %v1039
    %1061 = vmatprep.subr.bf16.mxu0 0
    %1062 = vmatpush1.bf16.msra.mxu0 %v1040
    %1063 = vmatprep.subr.bf16.mxu0 0
    %1064 = vmatpush1.bf16.msra.mxu0 %v1041
    %1065 = vmatprep.subr.bf16.mxu0 0
    %1066 = vmatpush1.bf16.msra.mxu0 %v1042
    %1067 = vmatprep.subr.bf16.mxu0 0
    %1068 = vmatpush1.bf16.msra.mxu0 0
    %1069 = vmatprep.subr.bf16.mxu0 0
    %1070 = vmatpush1.bf16.msra.mxu0 0
    %1071 = vmatprep.subr.bf16.mxu0 0
    %1072 = vmatpush1.bf16.msra.mxu0 0
    %1073 = vmatprep.subr.bf16.mxu0 0
    %1074 = vmatpush1.bf16.msra.mxu0 0
    %1075 = vmatprep.subr.bf16.mxu0 0
    %1076 = vmatpush1.bf16.msra.mxu0 0
    %1077 = vmatprep.subr.bf16.mxu0 0
    %1078 = vmatpush1.bf16.msra.mxu0 0
    %1079 = vmatprep.subr.bf16.mxu0 0
    %1080 = vmatpush1.bf16.msra.mxu0 0
    %1081 = vmatprep.subr.bf16.mxu0 0
    %1082 = vmatpush1.bf16.msra.mxu0 0
    %1083 = vmatprep.mubr.bf16.mxu0 0
    %1084 = vmatmul.mubr.bf16.gmra.mrb[0].mxu0 %v984
    %v1085 = vpop.f32.mrb[0].mxu0
    %v1086 = vadd.f32 0.0, %v1085
    %v1087 = vpop.f32.mrb[0].mxu0
    %v1088 = vpop.f32.mrb[0].mxu0
    %v1089 = vadd.f32 0.0, %v1088
    %v1090 = vpop.f32.mrb[0].mxu0
    %1091 = vmatprep.mubr.bf16.mxu0 0
    %1092 = vmatmul.mubr.bf16.gmra.mrb[0].mxu0 %v985
    %v1093 = vpop.f32.mrb[0].mxu0
    %v1094 = vadd.f32 0.0, %v1093
    %v1095 = vpop.f32.mrb[0].mxu0
    %v1096 = vpop.f32.mrb[0].mxu0
    %v1097 = vadd.f32 0.0, %v1096
    %v1098 = vpop.f32.mrb[0].mxu0
    %1099 = vdwg.mxu0
    %v1100 = vadd.f32 %v958, %v1086
    %v1101 = vadd.f32 %v961, %v1089
    %v1102 = vadd.f32 %v966, %v1094
    %v1103 = vadd.f32 %v969, %v1097
    %v1104 = vld [vmem:[%s7 + $0x3] ss:$0 sm:$0xff]
    %v1105 = vadd.f32 %v1100, %v1104
    %v1106 = vadd.f32 %v1101, %v1104
    %v1107 = vadd.f32 %v1102, %v1104
    %v1108 = vadd.f32 %v1103, %v1104
    %v1109 = vmax.f32 %v1105, 0.0
    %v1110 = vmax.f32 %v1106, 0.0
    %v1111 = vmax.f32 %v1107, 0.0
    %v1112 = vmax.f32 %v1108, 0.0
    %v1113 = vpack.c.bf16 %v1110, %v1109
    %v1114 = vpack.c.bf16 %v1112, %v1111
    %v1115 = vld [vmem:[%s4] sm:$0xff]
    %v1116 = vld [vmem:[%s4 + $0x8] sm:$0xff]
    %v1117 = vld [vmem:[%s4 + $0x10] sm:$0xff]
    %v1118 = vld [vmem:[%s4 + $0x18] sm:$0xff]
    %v1119 = vld [vmem:[%s4 + $0x20] sm:$0xff]
    %v1120 = vld [vmem:[%s4 + $0x28] sm:$0xff]
    %v1121 = vld [vmem:[%s4 + $0x30] sm:$0xff]
    %v1122 = vld [vmem:[%s4 + $0x38] sm:$0xff]
    %v1123 = vld [vmem:[%s4 + $0x40] sm:$0xff]
    %v1124 = vld [vmem:[%s4 + $0x48] sm:$0xff]
    %v1125 = vld [vmem:[%s4 + $0x50] sm:$0xff]
    %v1126 = vld [vmem:[%s4 + $0x58] sm:$0xff]
    %v1127 = vld [vmem:[%s4 + $0x60] sm:$0xff]
    %v1128 = vld [vmem:[%s4 + $0x68] sm:$0xff]
    %v1129 = vld [vmem:[%s4 + $0x70] sm:$0xff]
    %v1130 = vld [vmem:[%s4 + $0x78] sm:$0xff]
    %s1131 = scalar_lea.vmem %s7, 4
    %v1132 = vld [vmem:[%s1131] ss:$8 sm:$0x3]
    %v1134 = vlaneseq
    %v1135 = vshrl.u32 %v1134, 7
    %v1136 = vsub.s32 0, %v1135
    %v1137 = vrot.slane %v1132, %v1136
    %v1138 = vlaneseq
    %v1139 = vshrl.u32 %v1138, 7
    %v1140 = vsub.s32 1, %v1139
    %v1141 = vrot.slane %v1132, %v1140
    %v1160 = vunpack.c.l.b16 %v1115
    %v1161 = vunpack.c.h.b16 %v1115
    %v1162 = vunpack.c.l.b16 %v1116
    %v1163 = vunpack.c.h.b16 %v1116
    %v1164 = vunpack.c.l.b16 %v1117
    %v1165 = vunpack.c.h.b16 %v1117
    %v1166 = vunpack.c.l.b16 %v1118
    %v1167 = vunpack.c.h.b16 %v1118
    %v1168 = vunpack.c.l.b16 %v1119
    %v1169 = vunpack.c.h.b16 %v1119
    %v1170 = vunpack.c.l.b16 %v1120
    %v1171 = vunpack.c.h.b16 %v1120
    %v1172 = vunpack.c.l.b16 %v1121
    %v1173 = vunpack.c.h.b16 %v1121
    %v1174 = vunpack.c.l.b16 %v1122
    %v1175 = vunpack.c.h.b16 %v1122
    %v1176 = vunpack.c.l.b16 %v1123
    %v1177 = vunpack.c.h.b16 %v1123
    %v1178 = vunpack.c.l.b16 %v1124
    %v1179 = vunpack.c.h.b16 %v1124
    %v1180 = vunpack.c.l.b16 %v1125
    %v1181 = vunpack.c.h.b16 %v1125
    %v1182 = vunpack.c.l.b16 %v1126
    %v1183 = vunpack.c.h.b16 %v1126
    %v1184 = vunpack.c.l.b16 %v1127
    %v1185 = vunpack.c.h.b16 %v1127
    %v1186 = vunpack.c.l.b16 %v1128
    %v1187 = vunpack.c.h.b16 %v1128
    %v1188 = vunpack.c.l.b16 %v1129
    %v1189 = vunpack.c.h.b16 %v1129
    %v1190 = vunpack.c.l.b16 %v1130
    %v1191 = vunpack.c.h.b16 %v1130
    %v1192 = vpack.c.b16 %v1162, %v1160
    %v1193 = vpack.c.b16 %v1163, %v1161
    %v1194 = vpack.c.b16 %v1166, %v1164
    %v1195 = vpack.c.b16 %v1167, %v1165
    %v1196 = vpack.c.b16 %v1170, %v1168
    %v1197 = vpack.c.b16 %v1171, %v1169
    %v1198 = vpack.c.b16 %v1174, %v1172
    %v1199 = vpack.c.b16 %v1175, %v1173
    %v1200 = vpack.c.b16 %v1178, %v1176
    %v1201 = vpack.c.b16 %v1179, %v1177
    %v1202 = vpack.c.b16 %v1182, %v1180
    %v1203 = vpack.c.b16 %v1183, %v1181
    %v1204 = vpack.c.b16 %v1186, %v1184
    %v1205 = vpack.c.b16 %v1187, %v1185
    %v1206 = vpack.c.b16 %v1190, %v1188
    %v1207 = vpack.c.b16 %v1191, %v1189
    %1224 = vmatprep.subr.bf16.mxu0 %v1193
    %1225 = vmatpush1.bf16.msra.mxu0 %v1192
    %1226 = vmatprep.subr.bf16.mxu0 %v1195
    %1227 = vmatpush1.bf16.msra.mxu0 %v1194
    %1228 = vmatprep.subr.bf16.mxu0 %v1197
    %1229 = vmatpush1.bf16.msra.mxu0 %v1196
    %1230 = vmatprep.subr.bf16.mxu0 %v1199
    %1231 = vmatpush1.bf16.msra.mxu0 %v1198
    %1232 = vmatprep.subr.bf16.mxu0 %v1201
    %1233 = vmatpush1.bf16.msra.mxu0 %v1200
    %1234 = vmatprep.subr.bf16.mxu0 %v1203
    %1235 = vmatpush1.bf16.msra.mxu0 %v1202
    %1236 = vmatprep.subr.bf16.mxu0 %v1205
    %1237 = vmatpush1.bf16.msra.mxu0 %v1204
    %1238 = vmatprep.subr.bf16.mxu0 %v1207
    %1239 = vmatpush1.bf16.msra.mxu0 %v1206
    %1240 = vmatprep.subr.bf16.mxu0 0
    %1241 = vmatpush1.bf16.msra.mxu0 0
    %1242 = vmatprep.subr.bf16.mxu0 0
    %1243 = vmatpush1.bf16.msra.mxu0 0
    %1244 = vmatprep.subr.bf16.mxu0 0
    %1245 = vmatpush1.bf16.msra.mxu0 0
    %1246 = vmatprep.subr.bf16.mxu0 0
    %1247 = vmatpush1.bf16.msra.mxu0 0
    %1248 = vmatprep.subr.bf16.mxu0 0
    %1249 = vmatpush1.bf16.msra.mxu0 0
    %1250 = vmatprep.subr.bf16.mxu0 0
    %1251 = vmatpush1.bf16.msra.mxu0 0
    %1252 = vmatprep.subr.bf16.mxu0 0
    %1253 = vmatpush1.bf16.msra.mxu0 0
    %1254 = vmatprep.subr.bf16.mxu0 0
    %1255 = vmatpush1.bf16.msra.mxu0 0
    %1256 = vmatprep.mubr.bf16.mxu0 0
    %1257 = vmatmul.mubr.bf16.gmra.mrb[0].mxu0 %v1113
    %v1258 = vpop.f32.mrb[0].mxu0
    %v1259 = vadd.f32 %v1137, %v1258
    %v1260 = vpop.f32.mrb[0].mxu0
    %v1261 = vadd.f32 %v1141, %v1260
    %v1262 = vpop.f32.mrb[0].mxu0
    %v1263 = vadd.f32 %v1137, %v1262
    %v1264 = vpop.f32.mrb[0].mxu0
    %v1265 = vadd.f32 %v1141, %v1264
    %1266 = vmatprep.mubr.bf16.mxu0 0
    %1267 = vmatmul.mubr.bf16.gmra.mrb[0].mxu0 %v1114
    %v1268 = vpop.f32.mrb[0].mxu0
    %v1269 = vadd.f32 %v1137, %v1268
    %v1270 = vpop.f32.mrb[0].mxu0
    %v1271 = vadd.f32 %v1141, %v1270
    %v1272 = vpop.f32.mrb[0].mxu0
    %v1273 = vadd.f32 %v1137, %v1272
    %v1274 = vpop.f32.mrb[0].mxu0
    %v1275 = vadd.f32 %v1141, %v1274
    %1276 = vdwg.mxu0
    %v1277 = vmax.f32 %v1259, 0.0
    %v1278 = vmax.f32 %v1261, 0.0
    %v1279 = vmax.f32 %v1263, 0.0
    %v1280 = vmax.f32 %v1265, 0.0
    %v1281 = vmax.f32 %v1269, 0.0
    %v1282 = vmax.f32 %v1271, 0.0
    %v1283 = vmax.f32 %v1273, 0.0
    %v1284 = vmax.f32 %v1275, 0.0
    %v1285 = vpack.c.bf16 %v1279, %v1277
    %v1286 = vpack.c.bf16 %v1280, %v1278
    %v1287 = vpack.c.bf16 %v1283, %v1281
    %v1288 = vpack.c.bf16 %v1284, %v1282
    %v1289 = vld [vmem:[%s6] sm:$0xf]
    %v1290 = vld [vmem:[%s6 + $0x4] sm:$0xf]
    %v1291 = vld [vmem:[%s6 + $0x8] sm:$0xf]
    %v1292 = vld [vmem:[%s6 + $0xc] sm:$0xf]
    %v1293 = vld [vmem:[%s6 + $0x10] sm:$0xf]
    %v1294 = vld [vmem:[%s6 + $0x14] sm:$0xf]
    %v1295 = vld [vmem:[%s6 + $0x18] sm:$0xf]
    %v1296 = vld [vmem:[%s6 + $0x1c] sm:$0xf]
    %v1297 = vld [vmem:[%s6 + $0x20] sm:$0xf]
    %v1298 = vld [vmem:[%s6 + $0x24] sm:$0xf]
    %v1299 = vld [vmem:[%s6 + $0x28] sm:$0xf]
    %v1300 = vld [vmem:[%s6 + $0x2c] sm:$0xf]
    %v1301 = vld [vmem:[%s6 + $0x30] sm:$0xf]
    %v1302 = vld [vmem:[%s6 + $0x34] sm:$0xf]
    %v1303 = vld [vmem:[%s6 + $0x38] sm:$0xf]
    %v1304 = vld [vmem:[%s6 + $0x3c] sm:$0xf]
    %v1305 = vld [vmem:[%s6 + $0x40] sm:$0xf]
    %v1306 = vld [vmem:[%s6 + $0x44] sm:$0xf]
    %v1307 = vld [vmem:[%s6 + $0x48] sm:$0xf]
    %v1308 = vld [vmem:[%s6 + $0x4c] sm:$0xf]
    %v1309 = vld [vmem:[%s6 + $0x50] sm:$0xf]
    %v1310 = vld [vmem:[%s6 + $0x54] sm:$0xf]
    %v1311 = vld [vmem:[%s6 + $0x58] sm:$0xf]
    %v1312 = vld [vmem:[%s6 + $0x5c] sm:$0xf]
    %v1313 = vrot.slane %v1277, 6
    %v1314 = vrot.slane %v1278, 6
    %v1315 = vrot.slane %v1279, 6
    %v1316 = vrot.slane %v1280, 6
    %v1317 = vrot.slane %v1281, 6
    %v1318 = vrot.slane %v1282, 6
    %v1319 = vrot.slane %v1283, 6
    %v1320 = vrot.slane %v1284, 6
    %v1321 = vsel %vm330, %v1317, %v1319
    %v1322 = vsel %vm330, %v1318, %v1320
    %v1323 = vsel %vm330, %v1315, %v1317
    %v1324 = vsel %vm330, %v1316, %v1318
    %v1325 = vsel %vm330, %v1313, %v1315
    %v1326 = vsel %vm330, %v1314, %v1316
    %v1327 = vsel %vm330, %v1319, %v1313
    %v1328 = vsel %vm330, %v1320, %v1314
    %v1329 = vsel %vm339, %v1327, 0.0
    %v1330 = vsel %vm339, %v1328, 0.0
    %v1331 = vsel %vm340, %v1325, 0.0
    %v1332 = vsel %vm340, %v1326, 0.0
    %v1333 = vsel %vm341, %v1323, 0.0
    %v1334 = vsel %vm341, %v1324, 0.0
    %v1335 = vsel %vm342, %v1321, 0.0
    %v1336 = vsel %vm342, %v1322, 0.0
    %v1337 = vpack.c.bf16 %v1331, %v1329
    %v1338 = vpack.c.bf16 %v1332, %v1330
    %v1339 = vpack.c.bf16 %v1335, %v1333
    %v1340 = vpack.c.bf16 %v1336, %v1334
    %s1341 = scalar_lea.vmem %s6, 96
    %v1342 = vld [vmem:[%s1341] sm:$0xf]
    %v1343 = vld [vmem:[%s1341 + $0x4] sm:$0xf]
    %v1344 = vld [vmem:[%s1341 + $0x8] sm:$0xf]
    %v1345 = vld [vmem:[%s1341 + $0xc] sm:$0xf]
    %v1346 = vld [vmem:[%s1341 + $0x10] sm:$0xf]
    %v1347 = vld [vmem:[%s1341 + $0x14] sm:$0xf]
    %v1348 = vld [vmem:[%s1341 + $0x18] sm:$0xf]
    %v1349 = vld [vmem:[%s1341 + $0x1c] sm:$0xf]
    %v1350 = vld [vmem:[%s1341 + $0x20] sm:$0xf]
    %v1351 = vld [vmem:[%s1341 + $0x24] sm:$0xf]
    %v1352 = vld [vmem:[%s1341 + $0x28] sm:$0xf]
    %v1353 = vld [vmem:[%s1341 + $0x2c] sm:$0xf]
    %v1354 = vld [vmem:[%s1341 + $0x30] sm:$0xf]
    %v1355 = vld [vmem:[%s1341 + $0x34] sm:$0xf]
    %v1356 = vld [vmem:[%s1341 + $0x38] sm:$0xf]
    %v1357 = vld [vmem:[%s1341 + $0x3c] sm:$0xf]
    %v1358 = vld [vmem:[%s1341 + $0x40] sm:$0xf]
    %v1359 = vld [vmem:[%s1341 + $0x44] sm:$0xf]
    %v1360 = vld [vmem:[%s1341 + $0x48] sm:$0xf]
    %v1361 = vld [vmem:[%s1341 + $0x4c] sm:$0xf]
    %v1362 = vld [vmem:[%s1341 + $0x50] sm:$0xf]
    %v1363 = vld [vmem:[%s1341 + $0x54] sm:$0xf]
    %v1364 = vld [vmem:[%s1341 + $0x58] sm:$0xf]
    %v1365 = vld [vmem:[%s1341 + $0x5c] sm:$0xf]
    %v1390 = vunpack.c.l.b16 %v1342
    %v1391 = vunpack.c.l.b16 %v1343
    %v1392 = vunpack.c.l.b16 %v1344
    %v1393 = vunpack.c.l.b16 %v1345
    %v1394 = vunpack.c.l.b16 %v1346
    %v1395 = vunpack.c.l.b16 %v1347
    %v1396 = vunpack.c.l.b16 %v1348
    %v1397 = vunpack.c.l.b16 %v1349
    %v1398 = vunpack.c.l.b16 %v1350
    %v1399 = vunpack.c.l.b16 %v1351
    %v1400 = vunpack.c.l.b16 %v1352
    %v1401 = vunpack.c.l.b16 %v1353
    %v1402 = vunpack.c.l.b16 %v1354
    %v1403 = vunpack.c.l.b16 %v1355
    %v1404 = vunpack.c.l.b16 %v1356
    %v1405 = vunpack.c.l.b16 %v1357
    %v1406 = vunpack.c.l.b16 %v1358
    %v1407 = vunpack.c.l.b16 %v1359
    %v1408 = vunpack.c.l.b16 %v1360
    %v1409 = vunpack.c.l.b16 %v1361
    %v1410 = vunpack.c.l.b16 %v1362
    %v1411 = vunpack.c.l.b16 %v1363
    %v1412 = vunpack.c.l.b16 %v1364
    %v1413 = vunpack.c.l.b16 %v1365
    %v1414 = vpack.c.b16 %v1391, %v1390
    %v1415 = vpack.c.b16 %v1393, %v1392
    %v1416 = vpack.c.b16 %v1395, %v1394
    %v1417 = vpack.c.b16 %v1397, %v1396
    %v1418 = vpack.c.b16 %v1399, %v1398
    %v1419 = vpack.c.b16 %v1401, %v1400
    %v1420 = vpack.c.b16 %v1403, %v1402
    %v1421 = vpack.c.b16 %v1405, %v1404
    %v1422 = vpack.c.b16 %v1407, %v1406
    %v1423 = vpack.c.b16 %v1409, %v1408
    %v1424 = vpack.c.b16 %v1411, %v1410
    %v1425 = vpack.c.b16 %v1413, %v1412
    %v1439 = vsel %vm266, %v1338, 0
    %v1442 = vsel %vm266, %v1340, 0
    %1444 = vmatprep.subr.bf16.mxu0 0
    %1445 = vmatpush1.bf16.msra.mxu0 %v1414
    %1446 = vmatprep.subr.bf16.mxu0 0
    %1447 = vmatpush1.bf16.msra.mxu0 %v1415
    %1448 = vmatprep.subr.bf16.mxu0 0
    %1449 = vmatpush1.bf16.msra.mxu0 %v1416
    %1450 = vmatprep.subr.bf16.mxu0 0
    %1451 = vmatpush1.bf16.msra.mxu0 %v1417
    %1452 = vmatprep.subr.bf16.mxu0 0
    %1453 = vmatpush1.bf16.msra.mxu0 %v1418
    %1454 = vmatprep.subr.bf16.mxu0 0
    %1455 = vmatpush1.bf16.msra.mxu0 %v1419
    %1456 = vmatprep.subr.bf16.mxu0 0
    %1457 = vmatpush1.bf16.msra.mxu0 %v1420
    %1458 = vmatprep.subr.bf16.mxu0 0
    %1459 = vmatpush1.bf16.msra.mxu0 %v1421
    %1460 = vmatprep.subr.bf16.mxu0 0
    %1461 = vmatpush1.bf16.msra.mxu0 %v1422
    %1462 = vmatprep.subr.bf16.mxu0 0
    %1463 = vmatpush1.bf16.msra.mxu0 %v1423
    %1464 = vmatprep.subr.bf16.mxu0 0
    %1465 = vmatpush1.bf16.msra.mxu0 %v1424
    %1466 = vmatprep.subr.bf16.mxu0 0
    %1467 = vmatpush1.bf16.msra.mxu0 %v1425
    %1468 = vmatprep.subr.bf16.mxu0 0
    %1469 = vmatpush1.bf16.msra.mxu0 0
    %1470 = vmatprep.subr.bf16.mxu0 0
    %1471 = vmatpush1.bf16.msra.mxu0 0
    %1472 = vmatprep.subr.bf16.mxu0 0
    %1473 = vmatpush1.bf16.msra.mxu0 0
    %1474 = vmatprep.subr.bf16.mxu0 0
    %1475 = vmatpush1.bf16.msra.mxu0 0
    %1476 = vmatprep.mubr.bf16.mxu0 %v1439
    %1477 = vmatmul.mubr.bf16.gmra.mrb[0].mxu0 %v1337
    %v1478 = vpop.f32.mrb[0].mxu0
    %v1479 = vadd.f32 0.0, %v1478
    %v1480 = vpop.f32.mrb[0].mxu0
    %v1481 = vpop.f32.mrb[0].mxu0
    %v1482 = vadd.f32 0.0, %v1481
    %v1483 = vpop.f32.mrb[0].mxu0
    %1484 = vmatprep.mubr.bf16.mxu0 %v1442
    %1485 = vmatmul.mubr.bf16.gmra.mrb[0].mxu0 %v1339
    %v1486 = vpop.f32.mrb[0].mxu0
    %v1487 = vadd.f32 0.0, %v1486
    %v1488 = vpop.f32.mrb[0].mxu0
    %v1489 = vpop.f32.mrb[0].mxu0
    %v1490 = vadd.f32 0.0, %v1489
    %v1491 = vpop.f32.mrb[0].mxu0
    %1492 = vdwg.mxu0
    %v1517 = vunpack.c.l.b16 %v1289
    %v1518 = vunpack.c.l.b16 %v1290
    %v1519 = vunpack.c.l.b16 %v1291
    %v1520 = vunpack.c.l.b16 %v1292
    %v1521 = vunpack.c.l.b16 %v1293
    %v1522 = vunpack.c.l.b16 %v1294
    %v1523 = vunpack.c.l.b16 %v1295
    %v1524 = vunpack.c.l.b16 %v1296
    %v1525 = vunpack.c.l.b16 %v1297
    %v1526 = vunpack.c.l.b16 %v1298
    %v1527 = vunpack.c.l.b16 %v1299
    %v1528 = vunpack.c.l.b16 %v1300
    %v1529 = vunpack.c.l.b16 %v1301
    %v1530 = vunpack.c.l.b16 %v1302
    %v1531 = vunpack.c.l.b16 %v1303
    %v1532 = vunpack.c.l.b16 %v1304
    %v1533 = vunpack.c.l.b16 %v1305
    %v1534 = vunpack.c.l.b16 %v1306
    %v1535 = vunpack.c.l.b16 %v1307
    %v1536 = vunpack.c.l.b16 %v1308
    %v1537 = vunpack.c.l.b16 %v1309
    %v1538 = vunpack.c.l.b16 %v1310
    %v1539 = vunpack.c.l.b16 %v1311
    %v1540 = vunpack.c.l.b16 %v1312
    %v1541 = vpack.c.b16 %v1518, %v1517
    %v1542 = vpack.c.b16 %v1520, %v1519
    %v1543 = vpack.c.b16 %v1522, %v1521
    %v1544 = vpack.c.b16 %v1524, %v1523
    %v1545 = vpack.c.b16 %v1526, %v1525
    %v1546 = vpack.c.b16 %v1528, %v1527
    %v1547 = vpack.c.b16 %v1530, %v1529
    %v1548 = vpack.c.b16 %v1532, %v1531
    %v1549 = vpack.c.b16 %v1534, %v1533
    %v1550 = vpack.c.b16 %v1536, %v1535
    %v1551 = vpack.c.b16 %v1538, %v1537
    %v1552 = vpack.c.b16 %v1540, %v1539
    %v1566 = vsel %vm266, %v1286, 0
    %v1569 = vsel %vm266, %v1288, 0
    %1571 = vmatprep.subr.bf16.mxu0 0
    %1572 = vmatpush1.bf16.msra.mxu0 %v1541
    %1573 = vmatprep.subr.bf16.mxu0 0
    %1574 = vmatpush1.bf16.msra.mxu0 %v1542
    %1575 = vmatprep.subr.bf16.mxu0 0
    %1576 = vmatpush1.bf16.msra.mxu0 %v1543
    %1577 = vmatprep.subr.bf16.mxu0 0
    %1578 = vmatpush1.bf16.msra.mxu0 %v1544
    %1579 = vmatprep.subr.bf16.mxu0 0
    %1580 = vmatpush1.bf16.msra.mxu0 %v1545
    %1581 = vmatprep.subr.bf16.mxu0 0
    %1582 = vmatpush1.bf16.msra.mxu0 %v1546
    %1583 = vmatprep.subr.bf16.mxu0 0
    %1584 = vmatpush1.bf16.msra.mxu0 %v1547
    %1585 = vmatprep.subr.bf16.mxu0 0
    %1586 = vmatpush1.bf16.msra.mxu0 %v1548
    %1587 = vmatprep.subr.bf16.mxu0 0
    %1588 = vmatpush1.bf16.msra.mxu0 %v1549
    %1589 = vmatprep.subr.bf16.mxu0 0
    %1590 = vmatpush1.bf16.msra.mxu0 %v1550
    %1591 = vmatprep.subr.bf16.mxu0 0
    %1592 = vmatpush1.bf16.msra.mxu0 %v1551
    %1593 = vmatprep.subr.bf16.mxu0 0
    %1594 = vmatpush1.bf16.msra.mxu0 %v1552
    %1595 = vmatprep.subr.bf16.mxu0 0
    %1596 = vmatpush1.bf16.msra.mxu0 0
    %1597 = vmatprep.subr.bf16.mxu0 0
    %1598 = vmatpush1.bf16.msra.mxu0 0
    %1599 = vmatprep.subr.bf16.mxu0 0
    %1600 = vmatpush1.bf16.msra.mxu0 0
    %1601 = vmatprep.subr.bf16.mxu0 0
    %1602 = vmatpush1.bf16.msra.mxu0 0
    %1603 = vmatprep.mubr.bf16.mxu0 %v1566
    %1604 = vmatmul.mubr.bf16.gmra.mrb[0].mxu0 %v1285
    %v1605 = vpop.f32.mrb[0].mxu0
    %v1606 = vadd.f32 %v1479, %v1605
    %v1607 = vpop.f32.mrb[0].mxu0
    %v1608 = vpop.f32.mrb[0].mxu0
    %v1609 = vadd.f32 %v1482, %v1608
    %v1610 = vpop.f32.mrb[0].mxu0
    %1611 = vmatprep.mubr.bf16.mxu0 %v1569
    %1612 = vmatmul.mubr.bf16.gmra.mrb[0].mxu0 %v1287
    %v1613 = vpop.f32.mrb[0].mxu0
    %v1614 = vadd.f32 %v1487, %v1613
    %v1615 = vpop.f32.mrb[0].mxu0
    %v1616 = vpop.f32.mrb[0].mxu0
    %v1617 = vadd.f32 %v1490, %v1616
    %v1618 = vpop.f32.mrb[0].mxu0
    %1619 = vdwg.mxu0
    %v1620 = vrot.slane %v1277, 2
    %v1621 = vrot.slane %v1278, 2
    %v1622 = vrot.slane %v1279, 2
    %v1623 = vrot.slane %v1280, 2
    %v1624 = vrot.slane %v1281, 2
    %v1625 = vrot.slane %v1282, 2
    %v1626 = vrot.slane %v1283, 2
    %v1627 = vrot.slane %v1284, 2
    %v1628 = vsel %vm582, %v1624, %v1626
    %v1629 = vsel %vm582, %v1625, %v1627
    %v1630 = vsel %vm582, %v1622, %v1624
    %v1631 = vsel %vm582, %v1623, %v1625
    %v1632 = vsel %vm582, %v1620, %v1622
    %v1633 = vsel %vm582, %v1621, %v1623
    %v1634 = vsel %vm582, %v1626, %v1620
    %v1635 = vsel %vm582, %v1627, %v1621
    %v1636 = vsel %vm591, %v1632, 0.0
    %v1637 = vsel %vm591, %v1633, 0.0
    %v1638 = vsel %vm592, %v1630, 0.0
    %v1639 = vsel %vm592, %v1631, 0.0
    %v1640 = vsel %vm593, %v1628, 0.0
    %v1641 = vsel %vm593, %v1629, 0.0
    %v1642 = vsel %vm594, %v1634, 0.0
    %v1643 = vsel %vm594, %v1635, 0.0
    %v1644 = vpack.c.bf16 %v1638, %v1636
    %v1645 = vpack.c.bf16 %v1639, %v1637
    %v1646 = vpack.c.bf16 %v1642, %v1640
    %v1647 = vpack.c.bf16 %v1643, %v1641
    %s1648 = scalar_lea.vmem %s6, 192
    %v1649 = vld [vmem:[%s1648] sm:$0xf]
    %v1650 = vld [vmem:[%s1648 + $0x4] sm:$0xf]
    %v1651 = vld [vmem:[%s1648 + $0x8] sm:$0xf]
    %v1652 = vld [vmem:[%s1648 + $0xc] sm:$0xf]
    %v1653 = vld [vmem:[%s1648 + $0x10] sm:$0xf]
    %v1654 = vld [vmem:[%s1648 + $0x14] sm:$0xf]
    %v1655 = vld [vmem:[%s1648 + $0x18] sm:$0xf]
    %v1656 = vld [vmem:[%s1648 + $0x1c] sm:$0xf]
    %v1657 = vld [vmem:[%s1648 + $0x20] sm:$0xf]
    %v1658 = vld [vmem:[%s1648 + $0x24] sm:$0xf]
    %v1659 = vld [vmem:[%s1648 + $0x28] sm:$0xf]
    %v1660 = vld [vmem:[%s1648 + $0x2c] sm:$0xf]
    %v1661 = vld [vmem:[%s1648 + $0x30] sm:$0xf]
    %v1662 = vld [vmem:[%s1648 + $0x34] sm:$0xf]
    %v1663 = vld [vmem:[%s1648 + $0x38] sm:$0xf]
    %v1664 = vld [vmem:[%s1648 + $0x3c] sm:$0xf]
    %v1665 = vld [vmem:[%s1648 + $0x40] sm:$0xf]
    %v1666 = vld [vmem:[%s1648 + $0x44] sm:$0xf]
    %v1667 = vld [vmem:[%s1648 + $0x48] sm:$0xf]
    %v1668 = vld [vmem:[%s1648 + $0x4c] sm:$0xf]
    %v1669 = vld [vmem:[%s1648 + $0x50] sm:$0xf]
    %v1670 = vld [vmem:[%s1648 + $0x54] sm:$0xf]
    %v1671 = vld [vmem:[%s1648 + $0x58] sm:$0xf]
    %v1672 = vld [vmem:[%s1648 + $0x5c] sm:$0xf]
    %v1697 = vunpack.c.l.b16 %v1649
    %v1698 = vunpack.c.l.b16 %v1650
    %v1699 = vunpack.c.l.b16 %v1651
    %v1700 = vunpack.c.l.b16 %v1652
    %v1701 = vunpack.c.l.b16 %v1653
    %v1702 = vunpack.c.l.b16 %v1654
    %v1703 = vunpack.c.l.b16 %v1655
    %v1704 = vunpack.c.l.b16 %v1656
    %v1705 = vunpack.c.l.b16 %v1657
    %v1706 = vunpack.c.l.b16 %v1658
    %v1707 = vunpack.c.l.b16 %v1659
    %v1708 = vunpack.c.l.b16 %v1660
    %v1709 = vunpack.c.l.b16 %v1661
    %v1710 = vunpack.c.l.b16 %v1662
    %v1711 = vunpack.c.l.b16 %v1663
    %v1712 = vunpack.c.l.b16 %v1664
    %v1713 = vunpack.c.l.b16 %v1665
    %v1714 = vunpack.c.l.b16 %v1666
    %v1715 = vunpack.c.l.b16 %v1667
    %v1716 = vunpack.c.l.b16 %v1668
    %v1717 = vunpack.c.l.b16 %v1669
    %v1718 = vunpack.c.l.b16 %v1670
    %v1719 = vunpack.c.l.b16 %v1671
    %v1720 = vunpack.c.l.b16 %v1672
    %v1721 = vpack.c.b16 %v1698, %v1697
    %v1722 = vpack.c.b16 %v1700, %v1699
    %v1723 = vpack.c.b16 %v1702, %v1701
    %v1724 = vpack.c.b16 %v1704, %v1703
    %v1725 = vpack.c.b16 %v1706, %v1705
    %v1726 = vpack.c.b16 %v1708, %v1707
    %v1727 = vpack.c.b16 %v1710, %v1709
    %v1728 = vpack.c.b16 %v1712, %v1711
    %v1729 = vpack.c.b16 %v1714, %v1713
    %v1730 = vpack.c.b16 %v1716, %v1715
    %v1731 = vpack.c.b16 %v1718, %v1717
    %v1732 = vpack.c.b16 %v1720, %v1719
    %v1746 = vsel %vm266, %v1645, 0
    %v1749 = vsel %vm266, %v1647, 0
    %1751 = vmatprep.subr.bf16.mxu0 0
    %1752 = vmatpush1.bf16.msra.mxu0 %v1721
    %1753 = vmatprep.subr.bf16.mxu0 0
    %1754 = vmatpush1.bf16.msra.mxu0 %v1722
    %1755 = vmatprep.subr.bf16.mxu0 0
    %1756 = vmatpush1.bf16.msra.mxu0 %v1723
    %1757 = vmatprep.subr.bf16.mxu0 0
    %1758 = vmatpush1.bf16.msra.mxu0 %v1724
    %1759 = vmatprep.subr.bf16.mxu0 0
    %1760 = vmatpush1.bf16.msra.mxu0 %v1725
    %1761 = vmatprep.subr.bf16.mxu0 0
    %1762 = vmatpush1.bf16.msra.mxu0 %v1726
    %1763 = vmatprep.subr.bf16.mxu0 0
    %1764 = vmatpush1.bf16.msra.mxu0 %v1727
    %1765 = vmatprep.subr.bf16.mxu0 0
    %1766 = vmatpush1.bf16.msra.mxu0 %v1728
    %1767 = vmatprep.subr.bf16.mxu0 0
    %1768 = vmatpush1.bf16.msra.mxu0 %v1729
    %1769 = vmatprep.subr.bf16.mxu0 0
    %1770 = vmatpush1.bf16.msra.mxu0 %v1730
    %1771 = vmatprep.subr.bf16.mxu0 0
    %1772 = vmatpush1.bf16.msra.mxu0 %v1731
    %1773 = vmatprep.subr.bf16.mxu0 0
    %1774 = vmatpush1.bf16.msra.mxu0 %v1732
    %1775 = vmatprep.subr.bf16.mxu0 0
    %1776 = vmatpush1.bf16.msra.mxu0 0
    %1777 = vmatprep.subr.bf16.mxu0 0
    %1778 = vmatpush1.bf16.msra.mxu0 0
    %1779 = vmatprep.subr.bf16.mxu0 0
    %1780 = vmatpush1.bf16.msra.mxu0 0
    %1781 = vmatprep.subr.bf16.mxu0 0
    %1782 = vmatpush1.bf16.msra.mxu0 0
    %1783 = vmatprep.mubr.bf16.mxu0 %v1746
    %1784 = vmatmul.mubr.bf16.gmra.mrb[0].mxu0 %v1644
    %v1785 = vpop.f32.mrb[0].mxu0
    %v1786 = vadd.f32 0.0, %v1785
    %v1787 = vpop.f32.mrb[0].mxu0
    %v1788 = vpop.f32.mrb[0].mxu0
    %v1789 = vadd.f32 0.0, %v1788
    %v1790 = vpop.f32.mrb[0].mxu0
    %1791 = vmatprep.mubr.bf16.mxu0 %v1749
    %1792 = vmatmul.mubr.bf16.gmra.mrb[0].mxu0 %v1646
    %v1793 = vpop.f32.mrb[0].mxu0
    %v1794 = vadd.f32 0.0, %v1793
    %v1795 = vpop.f32.mrb[0].mxu0
    %v1796 = vpop.f32.mrb[0].mxu0
    %v1797 = vadd.f32 0.0, %v1796
    %v1798 = vpop.f32.mrb[0].mxu0
    %1799 = vdwg.mxu0
    %v1800 = vadd.f32 %v1606, %v1786
    %v1801 = vadd.f32 %v1609, %v1789
    %v1802 = vadd.f32 %v1614, %v1794
    %v1803 = vadd.f32 %v1617, %v1797
    %v1804 = vld [vmem:[%s7 + $0x5] ss:$0 sm:$0xff]
    %v1805 = vadd.f32 %v1800, %v1804
    %v1806 = vadd.f32 %v1801, %v1804
    %v1807 = vadd.f32 %v1802, %v1804
    %v1808 = vadd.f32 %v1803, %v1804
    %v1809 = vmax.f32 %v1805, 0.0
    %v1810 = vmax.f32 %v1806, 0.0
    %v1811 = vmax.f32 %v1807, 0.0
    %v1812 = vmax.f32 %v1808, 0.0
    %1813 = vst.msk [vmem:[#allocation2] sm:$0xff] %vm90, %v1809
    %1814 = vst.msk [vmem:[#allocation2 + $0x8] sm:$0xff] %vm90, %v1810
    %1815 = vst.msk [vmem:[#allocation2 + $0x10] sm:$0xff] %vm90, %v1811
    %1816 = vst.msk [vmem:[#allocation2 + $0x18] sm:$0xff] %vm90, %v1812
    %v1817 = vld [vmem:[#allocation2] sm:$0x3]
    %v1818 = vld [vmem:[#allocation3] sm:$0xff]
    %v1819 = vld [vmem:[#allocation3 + $0x8] sm:$0xff]
    %v1820 = vld [vmem:[#allocation2 + $0x2] sm:$0x3]
    %s1821 = scalar_lea.vmem [#allocation3], 16
    %v1822 = vld [vmem:[%s1821] sm:$0xff]
    %v1823 = vld [vmem:[%s1821 + $0x8] sm:$0xff]
    %v1825 = vsel %vm90, %v1820, 0
    %1827 = vmatprep.subr.mxu0 %v1823
    %1828 = vmatpush1.msra.mxu0 %v1822
    %1829 = vmatprep.subr.mxu0 0.0
    %1830 = vmatpush1.msra.mxu0 0.0
    %1831 = vmatprep.subr.mxu0 0.0
    %1832 = vmatpush1.msra.mxu0 0.0
    %1833 = vmatprep.subr.mxu0 0.0
    %1834 = vmatpush1.msra.mxu0 0.0
    %1835 = vmatprep.subr.mxu0 0.0
    %1836 = vmatpush1.msra.mxu0 0.0
    %1837 = vmatprep.subr.mxu0 0.0
    %1838 = vmatpush1.msra.mxu0 0.0
    %1839 = vmatprep.subr.mxu0 0.0
    %1840 = vmatpush1.msra.mxu0 0.0
    %1841 = vmatprep.subr.mxu0 0.0
    %1842 = vmatpush1.msra.mxu0 0.0
    %1843 = vmatprep.subr.mxu0 0.0
    %1844 = vmatpush1.msra.mxu0 0.0
    %1845 = vmatprep.subr.mxu0 0.0
    %1846 = vmatpush1.msra.mxu0 0.0
    %1847 = vmatprep.subr.mxu0 0.0
    %1848 = vmatpush1.msra.mxu0 0.0
    %1849 = vmatprep.subr.mxu0 0.0
    %1850 = vmatpush1.msra.mxu0 0.0
    %1851 = vmatprep.subr.mxu0 0.0
    %1852 = vmatpush1.msra.mxu0 0.0
    %1853 = vmatprep.subr.mxu0 0.0
    %1854 = vmatpush1.msra.mxu0 0.0
    %1855 = vmatprep.subr.mxu0 0.0
    %1856 = vmatpush1.msra.mxu0 0.0
    %1857 = vmatprep.subr.mxu0 0.0
    %1858 = vmatpush1.msra.mxu0 0.0
    %1859 = vmatprep.subr.mxu0 0.0
    %1860 = vmatpush1.msra.mxu0 0.0
    %1861 = vmatprep.subr.mxu0 0.0
    %1862 = vmatpush1.msra.mxu0 0.0
    %1863 = vmatprep.subr.mxu0 0.0
    %1864 = vmatpush1.msra.mxu0 0.0
    %1865 = vmatprep.subr.mxu0 0.0
    %1866 = vmatpush1.msra.mxu0 0.0
    %1867 = vmatprep.subr.mxu0 0.0
    %1868 = vmatpush1.msra.mxu0 0.0
    %1869 = vmatprep.subr.mxu0 0.0
    %1870 = vmatpush1.msra.mxu0 0.0
    %1871 = vmatprep.subr.mxu0 0.0
    %1872 = vmatpush1.msra.mxu0 0.0
    %1873 = vmatprep.subr.mxu0 0.0
    %1874 = vmatpush1.msra.mxu0 0.0
    %1875 = vmatprep.subr.mxu0 0.0
    %1876 = vmatpush1.msra.mxu0 0.0
    %1877 = vmatprep.subr.mxu0 0.0
    %1878 = vmatpush1.msra.mxu0 0.0
    %1879 = vmatprep.subr.mxu0 0.0
    %1880 = vmatpush1.msra.mxu0 0.0
    %1881 = vmatprep.subr.mxu0 0.0
    %1882 = vmatpush1.msra.mxu0 0.0
    %1883 = vmatprep.subr.mxu0 0.0
    %1884 = vmatpush1.msra.mxu0 0.0
    %1885 = vmatprep.subr.mxu0 0.0
    %1886 = vmatpush1.msra.mxu0 0.0
    %1887 = vmatprep.subr.mxu0 0.0
    %1888 = vmatpush1.msra.mxu0 0.0
    %1889 = vmatprep.subr.mxu0 0.0
    %1890 = vmatpush1.msra.mxu0 0.0
    %1891 = vmatprep.mubr.f32.mxu0 0.0
    %1892 = vmatmul.mubr.f32.gmra.mrb[0].mxu0 %v1825
    %v1893 = vpop.f32.mrb[0].mxu0
    %v1894 = vadd.f32 0.0, %v1893
    %v1895 = vpop.f32.mrb[0].mxu0
    %v1896 = vadd.f32 0.0, %v1895
    %1897 = vdwg.mxu0
    %v1899 = vsel %vm90, %v1817, 0
    %1901 = vmatprep.subr.mxu0 %v1819
    %1902 = vmatpush1.msra.mxu0 %v1818
    %1903 = vmatprep.subr.mxu0 0.0
    %1904 = vmatpush1.msra.mxu0 0.0
    %1905 = vmatprep.subr.mxu0 0.0
    %1906 = vmatpush1.msra.mxu0 0.0
    %1907 = vmatprep.subr.mxu0 0.0
    %1908 = vmatpush1.msra.mxu0 0.0
    %1909 = vmatprep.subr.mxu0 0.0
    %1910 = vmatpush1.msra.mxu0 0.0
    %1911 = vmatprep.subr.mxu0 0.0
    %1912 = vmatpush1.msra.mxu0 0.0
    %1913 = vmatprep.subr.mxu0 0.0
    %1914 = vmatpush1.msra.mxu0 0.0
    %1915 = vmatprep.subr.mxu0 0.0
    %1916 = vmatpush1.msra.mxu0 0.0
    %1917 = vmatprep.subr.mxu0 0.0
    %1918 = vmatpush1.msra.mxu0 0.0
    %1919 = vmatprep.subr.mxu0 0.0
    %1920 = vmatpush1.msra.mxu0 0.0
    %1921 = vmatprep.subr.mxu0 0.0
    %1922 = vmatpush1.msra.mxu0 0.0
    %1923 = vmatprep.subr.mxu0 0.0
    %1924 = vmatpush1.msra.mxu0 0.0
    %1925 = vmatprep.subr.mxu0 0.0
    %1926 = vmatpush1.msra.mxu0 0.0
    %1927 = vmatprep.subr.mxu0 0.0
    %1928 = vmatpush1.msra.mxu0 0.0
    %1929 = vmatprep.subr.mxu0 0.0
    %1930 = vmatpush1.msra.mxu0 0.0
    %1931 = vmatprep.subr.mxu0 0.0
    %1932 = vmatpush1.msra.mxu0 0.0
    %1933 = vmatprep.subr.mxu0 0.0
    %1934 = vmatpush1.msra.mxu0 0.0
    %1935 = vmatprep.subr.mxu0 0.0
    %1936 = vmatpush1.msra.mxu0 0.0
    %1937 = vmatprep.subr.mxu0 0.0
    %1938 = vmatpush1.msra.mxu0 0.0
    %1939 = vmatprep.subr.mxu0 0.0
    %1940 = vmatpush1.msra.mxu0 0.0
    %1941 = vmatprep.subr.mxu0 0.0
    %1942 = vmatpush1.msra.mxu0 0.0
    %1943 = vmatprep.subr.mxu0 0.0
    %1944 = vmatpush1.msra.mxu0 0.0
    %1945 = vmatprep.subr.mxu0 0.0
    %1946 = vmatpush1.msra.mxu0 0.0
    %1947 = vmatprep.subr.mxu0 0.0
    %1948 = vmatpush1.msra.mxu0 0.0
    %1949 = vmatprep.subr.mxu0 0.0
    %1950 = vmatpush1.msra.mxu0 0.0
    %1951 = vmatprep.subr.mxu0 0.0
    %1952 = vmatpush1.msra.mxu0 0.0
    %1953 = vmatprep.subr.mxu0 0.0
    %1954 = vmatpush1.msra.mxu0 0.0
    %1955 = vmatprep.subr.mxu0 0.0
    %1956 = vmatpush1.msra.mxu0 0.0
    %1957 = vmatprep.subr.mxu0 0.0
    %1958 = vmatpush1.msra.mxu0 0.0
    %1959 = vmatprep.subr.mxu0 0.0
    %1960 = vmatpush1.msra.mxu0 0.0
    %1961 = vmatprep.subr.mxu0 0.0
    %1962 = vmatpush1.msra.mxu0 0.0
    %1963 = vmatprep.subr.mxu0 0.0
    %1964 = vmatpush1.msra.mxu0 0.0
    %1965 = vmatprep.mubr.f32.mxu0 0.0
    %1966 = vmatmul.mubr.f32.gmra.mrb[0].mxu0 %v1899
    %v1967 = vpop.f32.mrb[0].mxu0
    %v1968 = vadd.f32 %v1894, %v1967
    %v1969 = vpop.f32.mrb[0].mxu0
    %v1970 = vadd.f32 %v1896, %v1969
    %1971 = vdwg.mxu0
    %v1972 = vld [vmem:[#allocation2 + $0x4] sm:$0x3]
    %s1973 = scalar_lea.vmem [#allocation3], 32
    %v1974 = vld [vmem:[%s1973] sm:$0xff]
    %v1975 = vld [vmem:[%s1973 + $0x8] sm:$0xff]
    %v1977 = vsel %vm90, %v1972, 0
    %1979 = vmatprep.subr.mxu0 %v1975
    %1980 = vmatpush1.msra.mxu0 %v1974
    %1981 = vmatprep.subr.mxu0 0.0
    %1982 = vmatpush1.msra.mxu0 0.0
    %1983 = vmatprep.subr.mxu0 0.0
    %1984 = vmatpush1.msra.mxu0 0.0
    %1985 = vmatprep.subr.mxu0 0.0
    %1986 = vmatpush1.msra.mxu0 0.0
    %1987 = vmatprep.subr.mxu0 0.0
    %1988 = vmatpush1.msra.mxu0 0.0
    %1989 = vmatprep.subr.mxu0 0.0
    %1990 = vmatpush1.msra.mxu0 0.0
    %1991 = vmatprep.subr.mxu0 0.0
    %1992 = vmatpush1.msra.mxu0 0.0
    %1993 = vmatprep.subr.mxu0 0.0
    %1994 = vmatpush1.msra.mxu0 0.0
    %1995 = vmatprep.subr.mxu0 0.0
    %1996 = vmatpush1.msra.mxu0 0.0
    %1997 = vmatprep.subr.mxu0 0.0
    %1998 = vmatpush1.msra.mxu0 0.0
    %1999 = vmatprep.subr.mxu0 0.0
    %2000 = vmatpush1.msra.mxu0 0.0
    %2001 = vmatprep.subr.mxu0 0.0
    %2002 = vmatpush1.msra.mxu0 0.0
    %2003 = vmatprep.subr.mxu0 0.0
    %2004 = vmatpush1.msra.mxu0 0.0
    %2005 = vmatprep.subr.mxu0 0.0
    %2006 = vmatpush1.msra.mxu0 0.0
    %2007 = vmatprep.subr.mxu0 0.0
    %2008 = vmatpush1.msra.mxu0 0.0
    %2009 = vmatprep.subr.mxu0 0.0
    %2010 = vmatpush1.msra.mxu0 0.0
    %2011 = vmatprep.subr.mxu0 0.0
    %2012 = vmatpush1.msra.mxu0 0.0
    %2013 = vmatprep.subr.mxu0 0.0
    %2014 = vmatpush1.msra.mxu0 0.0
    %2015 = vmatprep.subr.mxu0 0.0
    %2016 = vmatpush1.msra.mxu0 0.0
    %2017 = vmatprep.subr.mxu0 0.0
    %2018 = vmatpush1.msra.mxu0 0.0
    %2019 = vmatprep.subr.mxu0 0.0
    %2020 = vmatpush1.msra.mxu0 0.0
    %2021 = vmatprep.subr.mxu0 0.0
    %2022 = vmatpush1.msra.mxu0 0.0
    %2023 = vmatprep.subr.mxu0 0.0
    %2024 = vmatpush1.msra.mxu0 0.0
    %2025 = vmatprep.subr.mxu0 0.0
    %2026 = vmatpush1.msra.mxu0 0.0
    %2027 = vmatprep.subr.mxu0 0.0
    %2028 = vmatpush1.msra.mxu0 0.0
    %2029 = vmatprep.subr.mxu0 0.0
    %2030 = vmatpush1.msra.mxu0 0.0
    %2031 = vmatprep.subr.mxu0 0.0
    %2032 = vmatpush1.msra.mxu0 0.0
    %2033 = vmatprep.subr.mxu0 0.0
    %2034 = vmatpush1.msra.mxu0 0.0
    %2035 = vmatprep.subr.mxu0 0.0
    %2036 = vmatpush1.msra.mxu0 0.0
    %2037 = vmatprep.subr.mxu0 0.0
    %2038 = vmatpush1.msra.mxu0 0.0
    %2039 = vmatprep.subr.mxu0 0.0
    %2040 = vmatpush1.msra.mxu0 0.0
    %2041 = vmatprep.subr.mxu0 0.0
    %2042 = vmatpush1.msra.mxu0 0.0
    %2043 = vmatprep.mubr.f32.mxu0 0.0
    %2044 = vmatmul.mubr.f32.gmra.mrb[0].mxu0 %v1977
    %v2045 = vpop.f32.mrb[0].mxu0
    %v2046 = vadd.f32 0.0, %v2045
    %v2047 = vpop.f32.mrb[0].mxu0
    %v2048 = vadd.f32 0.0, %v2047
    %2049 = vdwg.mxu0
    %v2050 = vadd.f32 %v1968, %v2046
    %v2051 = vadd.f32 %v1970, %v2048
    %v2052 = vld [vmem:[#allocation2 + $0x6] sm:$0x3]
    %s2053 = scalar_lea.vmem [#allocation3], 48
    %v2054 = vld [vmem:[%s2053] sm:$0xff]
    %v2055 = vld [vmem:[%s2053 + $0x8] sm:$0xff]
    %v2057 = vsel %vm90, %v2052, 0
    %2059 = vmatprep.subr.mxu0 %v2055
    %2060 = vmatpush1.msra.mxu0 %v2054
    %2061 = vmatprep.subr.mxu0 0.0
    %2062 = vmatpush1.msra.mxu0 0.0
    %2063 = vmatprep.subr.mxu0 0.0
    %2064 = vmatpush1.msra.mxu0 0.0
    %2065 = vmatprep.subr.mxu0 0.0
    %2066 = vmatpush1.msra.mxu0 0.0
    %2067 = vmatprep.subr.mxu0 0.0
    %2068 = vmatpush1.msra.mxu0 0.0
    %2069 = vmatprep.subr.mxu0 0.0
    %2070 = vmatpush1.msra.mxu0 0.0
    %2071 = vmatprep.subr.mxu0 0.0
    %2072 = vmatpush1.msra.mxu0 0.0
    %2073 = vmatprep.subr.mxu0 0.0
    %2074 = vmatpush1.msra.mxu0 0.0
    %2075 = vmatprep.subr.mxu0 0.0
    %2076 = vmatpush1.msra.mxu0 0.0
    %2077 = vmatprep.subr.mxu0 0.0
    %2078 = vmatpush1.msra.mxu0 0.0
    %2079 = vmatprep.subr.mxu0 0.0
    %2080 = vmatpush1.msra.mxu0 0.0
    %2081 = vmatprep.subr.mxu0 0.0
    %2082 = vmatpush1.msra.mxu0 0.0
    %2083 = vmatprep.subr.mxu0 0.0
    %2084 = vmatpush1.msra.mxu0 0.0
    %2085 = vmatprep.subr.mxu0 0.0
    %2086 = vmatpush1.msra.mxu0 0.0
    %2087 = vmatprep.subr.mxu0 0.0
    %2088 = vmatpush1.msra.mxu0 0.0
    %2089 = vmatprep.subr.mxu0 0.0
    %2090 = vmatpush1.msra.mxu0 0.0
    %2091 = vmatprep.subr.mxu0 0.0
    %2092 = vmatpush1.msra.mxu0 0.0
    %2093 = vmatprep.subr.mxu0 0.0
    %2094 = vmatpush1.msra.mxu0 0.0
    %2095 = vmatprep.subr.mxu0 0.0
    %2096 = vmatpush1.msra.mxu0 0.0
    %2097 = vmatprep.subr.mxu0 0.0
    %2098 = vmatpush1.msra.mxu0 0.0
    %2099 = vmatprep.subr.mxu0 0.0
    %2100 = vmatpush1.msra.mxu0 0.0
    %2101 = vmatprep.subr.mxu0 0.0
    %2102 = vmatpush1.msra.mxu0 0.0
    %2103 = vmatprep.subr.mxu0 0.0
    %2104 = vmatpush1.msra.mxu0 0.0
    %2105 = vmatprep.subr.mxu0 0.0
    %2106 = vmatpush1.msra.mxu0 0.0
    %2107 = vmatprep.subr.mxu0 0.0
    %2108 = vmatpush1.msra.mxu0 0.0
    %2109 = vmatprep.subr.mxu0 0.0
    %2110 = vmatpush1.msra.mxu0 0.0
    %2111 = vmatprep.subr.mxu0 0.0
    %2112 = vmatpush1.msra.mxu0 0.0
    %2113 = vmatprep.subr.mxu0 0.0
    %2114 = vmatpush1.msra.mxu0 0.0
    %2115 = vmatprep.subr.mxu0 0.0
    %2116 = vmatpush1.msra.mxu0 0.0
    %2117 = vmatprep.subr.mxu0 0.0
    %2118 = vmatpush1.msra.mxu0 0.0
    %2119 = vmatprep.subr.mxu0 0.0
    %2120 = vmatpush1.msra.mxu0 0.0
    %2121 = vmatprep.subr.mxu0 0.0
    %2122 = vmatpush1.msra.mxu0 0.0
    %2123 = vmatprep.mubr.f32.mxu0 0.0
    %2124 = vmatmul.mubr.f32.gmra.mrb[0].mxu0 %v2057
    %v2125 = vpop.f32.mrb[0].mxu0
    %v2126 = vadd.f32 0.0, %v2125
    %v2127 = vpop.f32.mrb[0].mxu0
    %v2128 = vadd.f32 0.0, %v2127
    %2129 = vdwg.mxu0
    %v2130 = vadd.f32 %v2050, %v2126
    %v2131 = vadd.f32 %v2051, %v2128
    %v2132 = vld [vmem:[#allocation2 + $0x8] sm:$0x3]
    %s2133 = scalar_lea.vmem [#allocation3], 64
    %v2134 = vld [vmem:[%s2133] sm:$0xff]
    %v2135 = vld [vmem:[%s2133 + $0x8] sm:$0xff]
    %v2137 = vsel %vm90, %v2132, 0
    %2139 = vmatprep.subr.mxu0 %v2135
    %2140 = vmatpush1.msra.mxu0 %v2134
    %2141 = vmatprep.subr.mxu0 0.0
    %2142 = vmatpush1.msra.mxu0 0.0
    %2143 = vmatprep.subr.mxu0 0.0
    %2144 = vmatpush1.msra.mxu0 0.0
    %2145 = vmatprep.subr.mxu0 0.0
    %2146 = vmatpush1.msra.mxu0 0.0
    %2147 = vmatprep.subr.mxu0 0.0
    %2148 = vmatpush1.msra.mxu0 0.0
    %2149 = vmatprep.subr.mxu0 0.0
    %2150 = vmatpush1.msra.mxu0 0.0
    %2151 = vmatprep.subr.mxu0 0.0
    %2152 = vmatpush1.msra.mxu0 0.0
    %2153 = vmatprep.subr.mxu0 0.0
    %2154 = vmatpush1.msra.mxu0 0.0
    %2155 = vmatprep.subr.mxu0 0.0
    %2156 = vmatpush1.msra.mxu0 0.0
    %2157 = vmatprep.subr.mxu0 0.0
    %2158 = vmatpush1.msra.mxu0 0.0
    %2159 = vmatprep.subr.mxu0 0.0
    %2160 = vmatpush1.msra.mxu0 0.0
    %2161 = vmatprep.subr.mxu0 0.0
    %2162 = vmatpush1.msra.mxu0 0.0
    %2163 = vmatprep.subr.mxu0 0.0
    %2164 = vmatpush1.msra.mxu0 0.0
    %2165 = vmatprep.subr.mxu0 0.0
    %2166 = vmatpush1.msra.mxu0 0.0
    %2167 = vmatprep.subr.mxu0 0.0
    %2168 = vmatpush1.msra.mxu0 0.0
    %2169 = vmatprep.subr.mxu0 0.0
    %2170 = vmatpush1.msra.mxu0 0.0
    %2171 = vmatprep.subr.mxu0 0.0
    %2172 = vmatpush1.msra.mxu0 0.0
    %2173 = vmatprep.subr.mxu0 0.0
    %2174 = vmatpush1.msra.mxu0 0.0
    %2175 = vmatprep.subr.mxu0 0.0
    %2176 = vmatpush1.msra.mxu0 0.0
    %2177 = vmatprep.subr.mxu0 0.0
    %2178 = vmatpush1.msra.mxu0 0.0
    %2179 = vmatprep.subr.mxu0 0.0
    %2180 = vmatpush1.msra.mxu0 0.0
    %2181 = vmatprep.subr.mxu0 0.0
    %2182 = vmatpush1.msra.mxu0 0.0
    %2183 = vmatprep.subr.mxu0 0.0
    %2184 = vmatpush1.msra.mxu0 0.0
    %2185 = vmatprep.subr.mxu0 0.0
    %2186 = vmatpush1.msra.mxu0 0.0
    %2187 = vmatprep.subr.mxu0 0.0
    %2188 = vmatpush1.msra.mxu0 0.0
    %2189 = vmatprep.subr.mxu0 0.0
    %2190 = vmatpush1.msra.mxu0 0.0
    %2191 = vmatprep.subr.mxu0 0.0
    %2192 = vmatpush1.msra.mxu0 0.0
    %2193 = vmatprep.subr.mxu0 0.0
    %2194 = vmatpush1.msra.mxu0 0.0
    %2195 = vmatprep.subr.mxu0 0.0
    %2196 = vmatpush1.msra.mxu0 0.0
    %2197 = vmatprep.subr.mxu0 0.0
    %2198 = vmatpush1.msra.mxu0 0.0
    %2199 = vmatprep.subr.mxu0 0.0
    %2200 = vmatpush1.msra.mxu0 0.0
    %2201 = vmatprep.subr.mxu0 0.0
    %2202 = vmatpush1.msra.mxu0 0.0
    %2203 = vmatprep.mubr.f32.mxu0 0.0
    %2204 = vmatmul.mubr.f32.gmra.mrb[0].mxu0 %v2137
    %v2205 = vpop.f32.mrb[0].mxu0
    %v2206 = vadd.f32 0.0, %v2205
    %v2207 = vpop.f32.mrb[0].mxu0
    %v2208 = vadd.f32 0.0, %v2207
    %2209 = vdwg.mxu0
    %v2210 = vadd.f32 %v2130, %v2206
    %v2211 = vadd.f32 %v2131, %v2208
    %v2212 = vld [vmem:[#allocation2 + $0xa] sm:$0x3]
    %s2213 = scalar_lea.vmem [#allocation3], 80
    %v2214 = vld [vmem:[%s2213] sm:$0xff]
    %v2215 = vld [vmem:[%s2213 + $0x8] sm:$0xff]
    %v2217 = vsel %vm90, %v2212, 0
    %2219 = vmatprep.subr.mxu0 %v2215
    %2220 = vmatpush1.msra.mxu0 %v2214
    %2221 = vmatprep.subr.mxu0 0.0
    %2222 = vmatpush1.msra.mxu0 0.0
    %2223 = vmatprep.subr.mxu0 0.0
    %2224 = vmatpush1.msra.mxu0 0.0
    %2225 = vmatprep.subr.mxu0 0.0
    %2226 = vmatpush1.msra.mxu0 0.0
    %2227 = vmatprep.subr.mxu0 0.0
    %2228 = vmatpush1.msra.mxu0 0.0
    %2229 = vmatprep.subr.mxu0 0.0
    %2230 = vmatpush1.msra.mxu0 0.0
    %2231 = vmatprep.subr.mxu0 0.0
    %2232 = vmatpush1.msra.mxu0 0.0
    %2233 = vmatprep.subr.mxu0 0.0
    %2234 = vmatpush1.msra.mxu0 0.0
    %2235 = vmatprep.subr.mxu0 0.0
    %2236 = vmatpush1.msra.mxu0 0.0
    %2237 = vmatprep.subr.mxu0 0.0
    %2238 = vmatpush1.msra.mxu0 0.0
    %2239 = vmatprep.subr.mxu0 0.0
    %2240 = vmatpush1.msra.mxu0 0.0
    %2241 = vmatprep.subr.mxu0 0.0
    %2242 = vmatpush1.msra.mxu0 0.0
    %2243 = vmatprep.subr.mxu0 0.0
    %2244 = vmatpush1.msra.mxu0 0.0
    %2245 = vmatprep.subr.mxu0 0.0
    %2246 = vmatpush1.msra.mxu0 0.0
    %2247 = vmatprep.subr.mxu0 0.0
    %2248 = vmatpush1.msra.mxu0 0.0
    %2249 = vmatprep.subr.mxu0 0.0
    %2250 = vmatpush1.msra.mxu0 0.0
    %2251 = vmatprep.subr.mxu0 0.0
    %2252 = vmatpush1.msra.mxu0 0.0
    %2253 = vmatprep.subr.mxu0 0.0
    %2254 = vmatpush1.msra.mxu0 0.0
    %2255 = vmatprep.subr.mxu0 0.0
    %2256 = vmatpush1.msra.mxu0 0.0
    %2257 = vmatprep.subr.mxu0 0.0
    %2258 = vmatpush1.msra.mxu0 0.0
    %2259 = vmatprep.subr.mxu0 0.0
    %2260 = vmatpush1.msra.mxu0 0.0
    %2261 = vmatprep.subr.mxu0 0.0
    %2262 = vmatpush1.msra.mxu0 0.0
    %2263 = vmatprep.subr.mxu0 0.0
    %2264 = vmatpush1.msra.mxu0 0.0
    %2265 = vmatprep.subr.mxu0 0.0
    %2266 = vmatpush1.msra.mxu0 0.0
    %2267 = vmatprep.subr.mxu0 0.0
    %2268 = vmatpush1.msra.mxu0 0.0
    %2269 = vmatprep.subr.mxu0 0.0
    %2270 = vmatpush1.msra.mxu0 0.0
    %2271 = vmatprep.subr.mxu0 0.0
    %2272 = vmatpush1.msra.mxu0 0.0
    %2273 = vmatprep.subr.mxu0 0.0
    %2274 = vmatpush1.msra.mxu0 0.0
    %2275 = vmatprep.subr.mxu0 0.0
    %2276 = vmatpush1.msra.mxu0 0.0
    %2277 = vmatprep.subr.mxu0 0.0
    %2278 = vmatpush1.msra.mxu0 0.0
    %2279 = vmatprep.subr.mxu0 0.0
    %2280 = vmatpush1.msra.mxu0 0.0
    %2281 = vmatprep.subr.mxu0 0.0
    %2282 = vmatpush1.msra.mxu0 0.0
    %2283 = vmatprep.mubr.f32.mxu0 0.0
    %2284 = vmatmul.mubr.f32.gmra.mrb[0].mxu0 %v2217
    %v2285 = vpop.f32.mrb[0].mxu0
    %v2286 = vadd.f32 0.0, %v2285
    %v2287 = vpop.f32.mrb[0].mxu0
    %v2288 = vadd.f32 0.0, %v2287
    %2289 = vdwg.mxu0
    %v2290 = vadd.f32 %v2210, %v2286
    %v2291 = vadd.f32 %v2211, %v2288
    %v2292 = vld [vmem:[#allocation2 + $0xc] sm:$0x3]
    %s2293 = scalar_lea.vmem [#allocation3], 96
    %v2294 = vld [vmem:[%s2293] sm:$0xff]
    %v2295 = vld [vmem:[%s2293 + $0x8] sm:$0xff]
    %v2297 = vsel %vm90, %v2292, 0
    %2299 = vmatprep.subr.mxu0 %v2295
    %2300 = vmatpush1.msra.mxu0 %v2294
    %2301 = vmatprep.subr.mxu0 0.0
    %2302 = vmatpush1.msra.mxu0 0.0
    %2303 = vmatprep.subr.mxu0 0.0
    %2304 = vmatpush1.msra.mxu0 0.0
    %2305 = vmatprep.subr.mxu0 0.0
    %2306 = vmatpush1.msra.mxu0 0.0
    %2307 = vmatprep.subr.mxu0 0.0
    %2308 = vmatpush1.msra.mxu0 0.0
    %2309 = vmatprep.subr.mxu0 0.0
    %2310 = vmatpush1.msra.mxu0 0.0
    %2311 = vmatprep.subr.mxu0 0.0
    %2312 = vmatpush1.msra.mxu0 0.0
    %2313 = vmatprep.subr.mxu0 0.0
    %2314 = vmatpush1.msra.mxu0 0.0
    %2315 = vmatprep.subr.mxu0 0.0
    %2316 = vmatpush1.msra.mxu0 0.0
    %2317 = vmatprep.subr.mxu0 0.0
    %2318 = vmatpush1.msra.mxu0 0.0
    %2319 = vmatprep.subr.mxu0 0.0
    %2320 = vmatpush1.msra.mxu0 0.0
    %2321 = vmatprep.subr.mxu0 0.0
    %2322 = vmatpush1.msra.mxu0 0.0
    %2323 = vmatprep.subr.mxu0 0.0
    %2324 = vmatpush1.msra.mxu0 0.0
    %2325 = vmatprep.subr.mxu0 0.0
    %2326 = vmatpush1.msra.mxu0 0.0
    %2327 = vmatprep.subr.mxu0 0.0
    %2328 = vmatpush1.msra.mxu0 0.0
    %2329 = vmatprep.subr.mxu0 0.0
    %2330 = vmatpush1.msra.mxu0 0.0
    %2331 = vmatprep.subr.mxu0 0.0
    %2332 = vmatpush1.msra.mxu0 0.0
    %2333 = vmatprep.subr.mxu0 0.0
    %2334 = vmatpush1.msra.mxu0 0.0
    %2335 = vmatprep.subr.mxu0 0.0
    %2336 = vmatpush1.msra.mxu0 0.0
    %2337 = vmatprep.subr.mxu0 0.0
    %2338 = vmatpush1.msra.mxu0 0.0
    %2339 = vmatprep.subr.mxu0 0.0
    %2340 = vmatpush1.msra.mxu0 0.0
    %2341 = vmatprep.subr.mxu0 0.0
    %2342 = vmatpush1.msra.mxu0 0.0
    %2343 = vmatprep.subr.mxu0 0.0
    %2344 = vmatpush1.msra.mxu0 0.0
    %2345 = vmatprep.subr.mxu0 0.0
    %2346 = vmatpush1.msra.mxu0 0.0
    %2347 = vmatprep.subr.mxu0 0.0
    %2348 = vmatpush1.msra.mxu0 0.0
    %2349 = vmatprep.subr.mxu0 0.0
    %2350 = vmatpush1.msra.mxu0 0.0
    %2351 = vmatprep.subr.mxu0 0.0
    %2352 = vmatpush1.msra.mxu0 0.0
    %2353 = vmatprep.subr.mxu0 0.0
    %2354 = vmatpush1.msra.mxu0 0.0
    %2355 = vmatprep.subr.mxu0 0.0
    %2356 = vmatpush1.msra.mxu0 0.0
    %2357 = vmatprep.subr.mxu0 0.0
    %2358 = vmatpush1.msra.mxu0 0.0
    %2359 = vmatprep.subr.mxu0 0.0
    %2360 = vmatpush1.msra.mxu0 0.0
    %2361 = vmatprep.subr.mxu0 0.0
    %2362 = vmatpush1.msra.mxu0 0.0
    %2363 = vmatprep.mubr.f32.mxu0 0.0
    %2364 = vmatmul.mubr.f32.gmra.mrb[0].mxu0 %v2297
    %v2365 = vpop.f32.mrb[0].mxu0
    %v2366 = vadd.f32 0.0, %v2365
    %v2367 = vpop.f32.mrb[0].mxu0
    %v2368 = vadd.f32 0.0, %v2367
    %2369 = vdwg.mxu0
    %v2370 = vadd.f32 %v2290, %v2366
    %v2371 = vadd.f32 %v2291, %v2368
    %v2372 = vld [vmem:[#allocation2 + $0xe] sm:$0x3]
    %s2373 = scalar_lea.vmem [#allocation3], 112
    %v2374 = vld [vmem:[%s2373] sm:$0xff]
    %v2375 = vld [vmem:[%s2373 + $0x8] sm:$0xff]
    %v2377 = vsel %vm90, %v2372, 0
    %2379 = vmatprep.subr.mxu0 %v2375
    %2380 = vmatpush1.msra.mxu0 %v2374
    %2381 = vmatprep.subr.mxu0 0.0
    %2382 = vmatpush1.msra.mxu0 0.0
    %2383 = vmatprep.subr.mxu0 0.0
    %2384 = vmatpush1.msra.mxu0 0.0
    %2385 = vmatprep.subr.mxu0 0.0
    %2386 = vmatpush1.msra.mxu0 0.0
    %2387 = vmatprep.subr.mxu0 0.0
    %2388 = vmatpush1.msra.mxu0 0.0
    %2389 = vmatprep.subr.mxu0 0.0
    %2390 = vmatpush1.msra.mxu0 0.0
    %2391 = vmatprep.subr.mxu0 0.0
    %2392 = vmatpush1.msra.mxu0 0.0
    %2393 = vmatprep.subr.mxu0 0.0
    %2394 = vmatpush1.msra.mxu0 0.0
    %2395 = vmatprep.subr.mxu0 0.0
    %2396 = vmatpush1.msra.mxu0 0.0
    %2397 = vmatprep.subr.mxu0 0.0
    %2398 = vmatpush1.msra.mxu0 0.0
    %2399 = vmatprep.subr.mxu0 0.0
    %2400 = vmatpush1.msra.mxu0 0.0
    %2401 = vmatprep.subr.mxu0 0.0
    %2402 = vmatpush1.msra.mxu0 0.0
    %2403 = vmatprep.subr.mxu0 0.0
    %2404 = vmatpush1.msra.mxu0 0.0
    %2405 = vmatprep.subr.mxu0 0.0
    %2406 = vmatpush1.msra.mxu0 0.0
    %2407 = vmatprep.subr.mxu0 0.0
    %2408 = vmatpush1.msra.mxu0 0.0
    %2409 = vmatprep.subr.mxu0 0.0
    %2410 = vmatpush1.msra.mxu0 0.0
    %2411 = vmatprep.subr.mxu0 0.0
    %2412 = vmatpush1.msra.mxu0 0.0
    %2413 = vmatprep.subr.mxu0 0.0
    %2414 = vmatpush1.msra.mxu0 0.0
    %2415 = vmatprep.subr.mxu0 0.0
    %2416 = vmatpush1.msra.mxu0 0.0
    %2417 = vmatprep.subr.mxu0 0.0
    %2418 = vmatpush1.msra.mxu0 0.0
    %2419 = vmatprep.subr.mxu0 0.0
    %2420 = vmatpush1.msra.mxu0 0.0
    %2421 = vmatprep.subr.mxu0 0.0
    %2422 = vmatpush1.msra.mxu0 0.0
    %2423 = vmatprep.subr.mxu0 0.0
    %2424 = vmatpush1.msra.mxu0 0.0
    %2425 = vmatprep.subr.mxu0 0.0
    %2426 = vmatpush1.msra.mxu0 0.0
    %2427 = vmatprep.subr.mxu0 0.0
    %2428 = vmatpush1.msra.mxu0 0.0
    %2429 = vmatprep.subr.mxu0 0.0
    %2430 = vmatpush1.msra.mxu0 0.0
    %2431 = vmatprep.subr.mxu0 0.0
    %2432 = vmatpush1.msra.mxu0 0.0
    %2433 = vmatprep.subr.mxu0 0.0
    %2434 = vmatpush1.msra.mxu0 0.0
    %2435 = vmatprep.subr.mxu0 0.0
    %2436 = vmatpush1.msra.mxu0 0.0
    %2437 = vmatprep.subr.mxu0 0.0
    %2438 = vmatpush1.msra.mxu0 0.0
    %2439 = vmatprep.subr.mxu0 0.0
    %2440 = vmatpush1.msra.mxu0 0.0
    %2441 = vmatprep.subr.mxu0 0.0
    %2442 = vmatpush1.msra.mxu0 0.0
    %2443 = vmatprep.mubr.f32.mxu0 0.0
    %2444 = vmatmul.mubr.f32.gmra.mrb[0].mxu0 %v2377
    %v2445 = vpop.f32.mrb[0].mxu0
    %v2446 = vadd.f32 0.0, %v2445
    %v2447 = vpop.f32.mrb[0].mxu0
    %v2448 = vadd.f32 0.0, %v2447
    %2449 = vdwg.mxu0
    %v2450 = vadd.f32 %v2370, %v2446
    %v2451 = vadd.f32 %v2371, %v2448
    %v2452 = vld [vmem:[#allocation2 + $0x10] sm:$0x3]
    %s2453 = scalar_lea.vmem [#allocation3], 128
    %v2454 = vld [vmem:[%s2453] sm:$0xff]
    %v2455 = vld [vmem:[%s2453 + $0x8] sm:$0xff]
    %v2457 = vsel %vm90, %v2452, 0
    %2459 = vmatprep.subr.mxu0 %v2455
    %2460 = vmatpush1.msra.mxu0 %v2454
    %2461 = vmatprep.subr.mxu0 0.0
    %2462 = vmatpush1.msra.mxu0 0.0
    %2463 = vmatprep.subr.mxu0 0.0
    %2464 = vmatpush1.msra.mxu0 0.0
    %2465 = vmatprep.subr.mxu0 0.0
    %2466 = vmatpush1.msra.mxu0 0.0
    %2467 = vmatprep.subr.mxu0 0.0
    %2468 = vmatpush1.msra.mxu0 0.0
    %2469 = vmatprep.subr.mxu0 0.0
    %2470 = vmatpush1.msra.mxu0 0.0
    %2471 = vmatprep.subr.mxu0 0.0
    %2472 = vmatpush1.msra.mxu0 0.0
    %2473 = vmatprep.subr.mxu0 0.0
    %2474 = vmatpush1.msra.mxu0 0.0
    %2475 = vmatprep.subr.mxu0 0.0
    %2476 = vmatpush1.msra.mxu0 0.0
    %2477 = vmatprep.subr.mxu0 0.0
    %2478 = vmatpush1.msra.mxu0 0.0
    %2479 = vmatprep.subr.mxu0 0.0
    %2480 = vmatpush1.msra.mxu0 0.0
    %2481 = vmatprep.subr.mxu0 0.0
    %2482 = vmatpush1.msra.mxu0 0.0
    %2483 = vmatprep.subr.mxu0 0.0
    %2484 = vmatpush1.msra.mxu0 0.0
    %2485 = vmatprep.subr.mxu0 0.0
    %2486 = vmatpush1.msra.mxu0 0.0
    %2487 = vmatprep.subr.mxu0 0.0
    %2488 = vmatpush1.msra.mxu0 0.0
    %2489 = vmatprep.subr.mxu0 0.0
    %2490 = vmatpush1.msra.mxu0 0.0
    %2491 = vmatprep.subr.mxu0 0.0
    %2492 = vmatpush1.msra.mxu0 0.0
    %2493 = vmatprep.subr.mxu0 0.0
    %2494 = vmatpush1.msra.mxu0 0.0
    %2495 = vmatprep.subr.mxu0 0.0
    %2496 = vmatpush1.msra.mxu0 0.0
    %2497 = vmatprep.subr.mxu0 0.0
    %2498 = vmatpush1.msra.mxu0 0.0
    %2499 = vmatprep.subr.mxu0 0.0
    %2500 = vmatpush1.msra.mxu0 0.0
    %2501 = vmatprep.subr.mxu0 0.0
    %2502 = vmatpush1.msra.mxu0 0.0
    %2503 = vmatprep.subr.mxu0 0.0
    %2504 = vmatpush1.msra.mxu0 0.0
    %2505 = vmatprep.subr.mxu0 0.0
    %2506 = vmatpush1.msra.mxu0 0.0
    %2507 = vmatprep.subr.mxu0 0.0
    %2508 = vmatpush1.msra.mxu0 0.0
    %2509 = vmatprep.subr.mxu0 0.0
    %2510 = vmatpush1.msra.mxu0 0.0
    %2511 = vmatprep.subr.mxu0 0.0
    %2512 = vmatpush1.msra.mxu0 0.0
    %2513 = vmatprep.subr.mxu0 0.0
    %2514 = vmatpush1.msra.mxu0 0.0
    %2515 = vmatprep.subr.mxu0 0.0
    %2516 = vmatpush1.msra.mxu0 0.0
    %2517 = vmatprep.subr.mxu0 0.0
    %2518 = vmatpush1.msra.mxu0 0.0
    %2519 = vmatprep.subr.mxu0 0.0
    %2520 = vmatpush1.msra.mxu0 0.0
    %2521 = vmatprep.subr.mxu0 0.0
    %2522 = vmatpush1.msra.mxu0 0.0
    %2523 = vmatprep.mubr.f32.mxu0 0.0
    %2524 = vmatmul.mubr.f32.gmra.mrb[0].mxu0 %v2457
    %v2525 = vpop.f32.mrb[0].mxu0
    %v2526 = vadd.f32 0.0, %v2525
    %v2527 = vpop.f32.mrb[0].mxu0
    %v2528 = vadd.f32 0.0, %v2527
    %2529 = vdwg.mxu0
    %v2530 = vadd.f32 %v2450, %v2526
    %v2531 = vadd.f32 %v2451, %v2528
    %v2532 = vld [vmem:[#allocation2 + $0x12] sm:$0x3]
    %s2533 = scalar_lea.vmem [#allocation3], 144
    %v2534 = vld [vmem:[%s2533] sm:$0xff]
    %v2535 = vld [vmem:[%s2533 + $0x8] sm:$0xff]
    %v2537 = vsel %vm90, %v2532, 0
    %2539 = vmatprep.subr.mxu0 %v2535
    %2540 = vmatpush1.msra.mxu0 %v2534
    %2541 = vmatprep.subr.mxu0 0.0
    %2542 = vmatpush1.msra.mxu0 0.0
    %2543 = vmatprep.subr.mxu0 0.0
    %2544 = vmatpush1.msra.mxu0 0.0
    %2545 = vmatprep.subr.mxu0 0.0
    %2546 = vmatpush1.msra.mxu0 0.0
    %2547 = vmatprep.subr.mxu0 0.0
    %2548 = vmatpush1.msra.mxu0 0.0
    %2549 = vmatprep.subr.mxu0 0.0
    %2550 = vmatpush1.msra.mxu0 0.0
    %2551 = vmatprep.subr.mxu0 0.0
    %2552 = vmatpush1.msra.mxu0 0.0
    %2553 = vmatprep.subr.mxu0 0.0
    %2554 = vmatpush1.msra.mxu0 0.0
    %2555 = vmatprep.subr.mxu0 0.0
    %2556 = vmatpush1.msra.mxu0 0.0
    %2557 = vmatprep.subr.mxu0 0.0
    %2558 = vmatpush1.msra.mxu0 0.0
    %2559 = vmatprep.subr.mxu0 0.0
    %2560 = vmatpush1.msra.mxu0 0.0
    %2561 = vmatprep.subr.mxu0 0.0
    %2562 = vmatpush1.msra.mxu0 0.0
    %2563 = vmatprep.subr.mxu0 0.0
    %2564 = vmatpush1.msra.mxu0 0.0
    %2565 = vmatprep.subr.mxu0 0.0
    %2566 = vmatpush1.msra.mxu0 0.0
    %2567 = vmatprep.subr.mxu0 0.0
    %2568 = vmatpush1.msra.mxu0 0.0
    %2569 = vmatprep.subr.mxu0 0.0
    %2570 = vmatpush1.msra.mxu0 0.0
    %2571 = vmatprep.subr.mxu0 0.0
    %2572 = vmatpush1.msra.mxu0 0.0
    %2573 = vmatprep.subr.mxu0 0.0
    %2574 = vmatpush1.msra.mxu0 0.0
    %2575 = vmatprep.subr.mxu0 0.0
    %2576 = vmatpush1.msra.mxu0 0.0
    %2577 = vmatprep.subr.mxu0 0.0
    %2578 = vmatpush1.msra.mxu0 0.0
    %2579 = vmatprep.subr.mxu0 0.0
    %2580 = vmatpush1.msra.mxu0 0.0
    %2581 = vmatprep.subr.mxu0 0.0
    %2582 = vmatpush1.msra.mxu0 0.0
    %2583 = vmatprep.subr.mxu0 0.0
    %2584 = vmatpush1.msra.mxu0 0.0
    %2585 = vmatprep.subr.mxu0 0.0
    %2586 = vmatpush1.msra.mxu0 0.0
    %2587 = vmatprep.subr.mxu0 0.0
    %2588 = vmatpush1.msra.mxu0 0.0
    %2589 = vmatprep.subr.mxu0 0.0
    %2590 = vmatpush1.msra.mxu0 0.0
    %2591 = vmatprep.subr.mxu0 0.0
    %2592 = vmatpush1.msra.mxu0 0.0
    %2593 = vmatprep.subr.mxu0 0.0
    %2594 = vmatpush1.msra.mxu0 0.0
    %2595 = vmatprep.subr.mxu0 0.0
    %2596 = vmatpush1.msra.mxu0 0.0
    %2597 = vmatprep.subr.mxu0 0.0
    %2598 = vmatpush1.msra.mxu0 0.0
    %2599 = vmatprep.subr.mxu0 0.0
    %2600 = vmatpush1.msra.mxu0 0.0
    %2601 = vmatprep.subr.mxu0 0.0
    %2602 = vmatpush1.msra.mxu0 0.0
    %2603 = vmatprep.mubr.f32.mxu0 0.0
    %2604 = vmatmul.mubr.f32.gmra.mrb[0].mxu0 %v2537
    %v2605 = vpop.f32.mrb[0].mxu0
    %v2606 = vadd.f32 0.0, %v2605
    %v2607 = vpop.f32.mrb[0].mxu0
    %v2608 = vadd.f32 0.0, %v2607
    %2609 = vdwg.mxu0
    %v2610 = vadd.f32 %v2530, %v2606
    %v2611 = vadd.f32 %v2531, %v2608
    %v2612 = vld [vmem:[#allocation2 + $0x14] sm:$0x3]
    %s2613 = scalar_lea.vmem [#allocation3], 160
    %v2614 = vld [vmem:[%s2613] sm:$0xff]
    %v2615 = vld [vmem:[%s2613 + $0x8] sm:$0xff]
    %v2617 = vsel %vm90, %v2612, 0
    %2619 = vmatprep.subr.mxu0 %v2615
    %2620 = vmatpush1.msra.mxu0 %v2614
    %2621 = vmatprep.subr.mxu0 0.0
    %2622 = vmatpush1.msra.mxu0 0.0
    %2623 = vmatprep.subr.mxu0 0.0
    %2624 = vmatpush1.msra.mxu0 0.0
    %2625 = vmatprep.subr.mxu0 0.0
    %2626 = vmatpush1.msra.mxu0 0.0
    %2627 = vmatprep.subr.mxu0 0.0
    %2628 = vmatpush1.msra.mxu0 0.0
    %2629 = vmatprep.subr.mxu0 0.0
    %2630 = vmatpush1.msra.mxu0 0.0
    %2631 = vmatprep.subr.mxu0 0.0
    %2632 = vmatpush1.msra.mxu0 0.0
    %2633 = vmatprep.subr.mxu0 0.0
    %2634 = vmatpush1.msra.mxu0 0.0
    %2635 = vmatprep.subr.mxu0 0.0
    %2636 = vmatpush1.msra.mxu0 0.0
    %2637 = vmatprep.subr.mxu0 0.0
    %2638 = vmatpush1.msra.mxu0 0.0
    %2639 = vmatprep.subr.mxu0 0.0
    %2640 = vmatpush1.msra.mxu0 0.0
    %2641 = vmatprep.subr.mxu0 0.0
    %2642 = vmatpush1.msra.mxu0 0.0
    %2643 = vmatprep.subr.mxu0 0.0
    %2644 = vmatpush1.msra.mxu0 0.0
    %2645 = vmatprep.subr.mxu0 0.0
    %2646 = vmatpush1.msra.mxu0 0.0
    %2647 = vmatprep.subr.mxu0 0.0
    %2648 = vmatpush1.msra.mxu0 0.0
    %2649 = vmatprep.subr.mxu0 0.0
    %2650 = vmatpush1.msra.mxu0 0.0
    %2651 = vmatprep.subr.mxu0 0.0
    %2652 = vmatpush1.msra.mxu0 0.0
    %2653 = vmatprep.subr.mxu0 0.0
    %2654 = vmatpush1.msra.mxu0 0.0
    %2655 = vmatprep.subr.mxu0 0.0
    %2656 = vmatpush1.msra.mxu0 0.0
    %2657 = vmatprep.subr.mxu0 0.0
    %2658 = vmatpush1.msra.mxu0 0.0
    %2659 = vmatprep.subr.mxu0 0.0
    %2660 = vmatpush1.msra.mxu0 0.0
    %2661 = vmatprep.subr.mxu0 0.0
    %2662 = vmatpush1.msra.mxu0 0.0
    %2663 = vmatprep.subr.mxu0 0.0
    %2664 = vmatpush1.msra.mxu0 0.0
    %2665 = vmatprep.subr.mxu0 0.0
    %2666 = vmatpush1.msra.mxu0 0.0
    %2667 = vmatprep.subr.mxu0 0.0
    %2668 = vmatpush1.msra.mxu0 0.0
    %2669 = vmatprep.subr.mxu0 0.0
    %2670 = vmatpush1.msra.mxu0 0.0
    %2671 = vmatprep.subr.mxu0 0.0
    %2672 = vmatpush1.msra.mxu0 0.0
    %2673 = vmatprep.subr.mxu0 0.0
    %2674 = vmatpush1.msra.mxu0 0.0
    %2675 = vmatprep.subr.mxu0 0.0
    %2676 = vmatpush1.msra.mxu0 0.0
    %2677 = vmatprep.subr.mxu0 0.0
    %2678 = vmatpush1.msra.mxu0 0.0
    %2679 = vmatprep.subr.mxu0 0.0
    %2680 = vmatpush1.msra.mxu0 0.0
    %2681 = vmatprep.subr.mxu0 0.0
    %2682 = vmatpush1.msra.mxu0 0.0
    %2683 = vmatprep.mubr.f32.mxu0 0.0
    %2684 = vmatmul.mubr.f32.gmra.mrb[0].mxu0 %v2617
    %v2685 = vpop.f32.mrb[0].mxu0
    %v2686 = vadd.f32 0.0, %v2685
    %v2687 = vpop.f32.mrb[0].mxu0
    %v2688 = vadd.f32 0.0, %v2687
    %2689 = vdwg.mxu0
    %v2690 = vadd.f32 %v2610, %v2686
    %v2691 = vadd.f32 %v2611, %v2688
    %v2692 = vld [vmem:[#allocation2 + $0x16] sm:$0x3]
    %s2693 = scalar_lea.vmem [#allocation3], 176
    %v2694 = vld [vmem:[%s2693] sm:$0xff]
    %v2695 = vld [vmem:[%s2693 + $0x8] sm:$0xff]
    %v2697 = vsel %vm90, %v2692, 0
    %2699 = vmatprep.subr.mxu0 %v2695
    %2700 = vmatpush1.msra.mxu0 %v2694
    %2701 = vmatprep.subr.mxu0 0.0
    %2702 = vmatpush1.msra.mxu0 0.0
    %2703 = vmatprep.subr.mxu0 0.0
    %2704 = vmatpush1.msra.mxu0 0.0
    %2705 = vmatprep.subr.mxu0 0.0
    %2706 = vmatpush1.msra.mxu0 0.0
    %2707 = vmatprep.subr.mxu0 0.0
    %2708 = vmatpush1.msra.mxu0 0.0
    %2709 = vmatprep.subr.mxu0 0.0
    %2710 = vmatpush1.msra.mxu0 0.0
    %2711 = vmatprep.subr.mxu0 0.0
    %2712 = vmatpush1.msra.mxu0 0.0
    %2713 = vmatprep.subr.mxu0 0.0
    %2714 = vmatpush1.msra.mxu0 0.0
    %2715 = vmatprep.subr.mxu0 0.0
    %2716 = vmatpush1.msra.mxu0 0.0
    %2717 = vmatprep.subr.mxu0 0.0
    %2718 = vmatpush1.msra.mxu0 0.0
    %2719 = vmatprep.subr.mxu0 0.0
    %2720 = vmatpush1.msra.mxu0 0.0
    %2721 = vmatprep.subr.mxu0 0.0
    %2722 = vmatpush1.msra.mxu0 0.0
    %2723 = vmatprep.subr.mxu0 0.0
    %2724 = vmatpush1.msra.mxu0 0.0
    %2725 = vmatprep.subr.mxu0 0.0
    %2726 = vmatpush1.msra.mxu0 0.0
    %2727 = vmatprep.subr.mxu0 0.0
    %2728 = vmatpush1.msra.mxu0 0.0
    %2729 = vmatprep.subr.mxu0 0.0
    %2730 = vmatpush1.msra.mxu0 0.0
    %2731 = vmatprep.subr.mxu0 0.0
    %2732 = vmatpush1.msra.mxu0 0.0
    %2733 = vmatprep.subr.mxu0 0.0
    %2734 = vmatpush1.msra.mxu0 0.0
    %2735 = vmatprep.subr.mxu0 0.0
    %2736 = vmatpush1.msra.mxu0 0.0
    %2737 = vmatprep.subr.mxu0 0.0
    %2738 = vmatpush1.msra.mxu0 0.0
    %2739 = vmatprep.subr.mxu0 0.0
    %2740 = vmatpush1.msra.mxu0 0.0
    %2741 = vmatprep.subr.mxu0 0.0
    %2742 = vmatpush1.msra.mxu0 0.0
    %2743 = vmatprep.subr.mxu0 0.0
    %2744 = vmatpush1.msra.mxu0 0.0
    %2745 = vmatprep.subr.mxu0 0.0
    %2746 = vmatpush1.msra.mxu0 0.0
    %2747 = vmatprep.subr.mxu0 0.0
    %2748 = vmatpush1.msra.mxu0 0.0
    %2749 = vmatprep.subr.mxu0 0.0
    %2750 = vmatpush1.msra.mxu0 0.0
    %2751 = vmatprep.subr.mxu0 0.0
    %2752 = vmatpush1.msra.mxu0 0.0
    %2753 = vmatprep.subr.mxu0 0.0
    %2754 = vmatpush1.msra.mxu0 0.0
    %2755 = vmatprep.subr.mxu0 0.0
    %2756 = vmatpush1.msra.mxu0 0.0
    %2757 = vmatprep.subr.mxu0 0.0
    %2758 = vmatpush1.msra.mxu0 0.0
    %2759 = vmatprep.subr.mxu0 0.0
    %2760 = vmatpush1.msra.mxu0 0.0
    %2761 = vmatprep.subr.mxu0 0.0
    %2762 = vmatpush1.msra.mxu0 0.0
    %2763 = vmatprep.mubr.f32.mxu0 0.0
    %2764 = vmatmul.mubr.f32.gmra.mrb[0].mxu0 %v2697
    %v2765 = vpop.f32.mrb[0].mxu0
    %v2766 = vadd.f32 0.0, %v2765
    %v2767 = vpop.f32.mrb[0].mxu0
    %v2768 = vadd.f32 0.0, %v2767
    %2769 = vdwg.mxu0
    %v2770 = vadd.f32 %v2690, %v2766
    %v2771 = vadd.f32 %v2691, %v2768
    %v2772 = vld [vmem:[#allocation2 + $0x18] sm:$0x3]
    %s2773 = scalar_lea.vmem [#allocation3], 192
    %v2774 = vld [vmem:[%s2773] sm:$0xff]
    %v2775 = vld [vmem:[%s2773 + $0x8] sm:$0xff]
    %v2777 = vsel %vm90, %v2772, 0
    %2779 = vmatprep.subr.mxu0 %v2775
    %2780 = vmatpush1.msra.mxu0 %v2774
    %2781 = vmatprep.subr.mxu0 0.0
    %2782 = vmatpush1.msra.mxu0 0.0
    %2783 = vmatprep.subr.mxu0 0.0
    %2784 = vmatpush1.msra.mxu0 0.0
    %2785 = vmatprep.subr.mxu0 0.0
    %2786 = vmatpush1.msra.mxu0 0.0
    %2787 = vmatprep.subr.mxu0 0.0
    %2788 = vmatpush1.msra.mxu0 0.0
    %2789 = vmatprep.subr.mxu0 0.0
    %2790 = vmatpush1.msra.mxu0 0.0
    %2791 = vmatprep.subr.mxu0 0.0
    %2792 = vmatpush1.msra.mxu0 0.0
    %2793 = vmatprep.subr.mxu0 0.0
    %2794 = vmatpush1.msra.mxu0 0.0
    %2795 = vmatprep.subr.mxu0 0.0
    %2796 = vmatpush1.msra.mxu0 0.0
    %2797 = vmatprep.subr.mxu0 0.0
    %2798 = vmatpush1.msra.mxu0 0.0
    %2799 = vmatprep.subr.mxu0 0.0
    %2800 = vmatpush1.msra.mxu0 0.0
    %2801 = vmatprep.subr.mxu0 0.0
    %2802 = vmatpush1.msra.mxu0 0.0
    %2803 = vmatprep.subr.mxu0 0.0
    %2804 = vmatpush1.msra.mxu0 0.0
    %2805 = vmatprep.subr.mxu0 0.0
    %2806 = vmatpush1.msra.mxu0 0.0
    %2807 = vmatprep.subr.mxu0 0.0
    %2808 = vmatpush1.msra.mxu0 0.0
    %2809 = vmatprep.subr.mxu0 0.0
    %2810 = vmatpush1.msra.mxu0 0.0
    %2811 = vmatprep.subr.mxu0 0.0
    %2812 = vmatpush1.msra.mxu0 0.0
    %2813 = vmatprep.subr.mxu0 0.0
    %2814 = vmatpush1.msra.mxu0 0.0
    %2815 = vmatprep.subr.mxu0 0.0
    %2816 = vmatpush1.msra.mxu0 0.0
    %2817 = vmatprep.subr.mxu0 0.0
    %2818 = vmatpush1.msra.mxu0 0.0
    %2819 = vmatprep.subr.mxu0 0.0
    %2820 = vmatpush1.msra.mxu0 0.0
    %2821 = vmatprep.subr.mxu0 0.0
    %2822 = vmatpush1.msra.mxu0 0.0
    %2823 = vmatprep.subr.mxu0 0.0
    %2824 = vmatpush1.msra.mxu0 0.0
    %2825 = vmatprep.subr.mxu0 0.0
    %2826 = vmatpush1.msra.mxu0 0.0
    %2827 = vmatprep.subr.mxu0 0.0
    %2828 = vmatpush1.msra.mxu0 0.0
    %2829 = vmatprep.subr.mxu0 0.0
    %2830 = vmatpush1.msra.mxu0 0.0
    %2831 = vmatprep.subr.mxu0 0.0
    %2832 = vmatpush1.msra.mxu0 0.0
    %2833 = vmatprep.subr.mxu0 0.0
    %2834 = vmatpush1.msra.mxu0 0.0
    %2835 = vmatprep.subr.mxu0 0.0
    %2836 = vmatpush1.msra.mxu0 0.0
    %2837 = vmatprep.subr.mxu0 0.0
    %2838 = vmatpush1.msra.mxu0 0.0
    %2839 = vmatprep.subr.mxu0 0.0
    %2840 = vmatpush1.msra.mxu0 0.0
    %2841 = vmatprep.subr.mxu0 0.0
    %2842 = vmatpush1.msra.mxu0 0.0
    %2843 = vmatprep.mubr.f32.mxu0 0.0
    %2844 = vmatmul.mubr.f32.gmra.mrb[0].mxu0 %v2777
    %v2845 = vpop.f32.mrb[0].mxu0
    %v2846 = vadd.f32 0.0, %v2845
    %v2847 = vpop.f32.mrb[0].mxu0
    %v2848 = vadd.f32 0.0, %v2847
    %2849 = vdwg.mxu0
    %v2850 = vadd.f32 %v2770, %v2846
    %v2851 = vadd.f32 %v2771, %v2848
    %v2852 = vld [vmem:[#allocation2 + $0x1a] sm:$0x3]
    %s2853 = scalar_lea.vmem [#allocation3], 208
    %v2854 = vld [vmem:[%s2853] sm:$0xff]
    %v2855 = vld [vmem:[%s2853 + $0x8] sm:$0xff]
    %v2857 = vsel %vm90, %v2852, 0
    %2859 = vmatprep.subr.mxu0 %v2855
    %2860 = vmatpush1.msra.mxu0 %v2854
    %2861 = vmatprep.subr.mxu0 0.0
    %2862 = vmatpush1.msra.mxu0 0.0
    %2863 = vmatprep.subr.mxu0 0.0
    %2864 = vmatpush1.msra.mxu0 0.0
    %2865 = vmatprep.subr.mxu0 0.0
    %2866 = vmatpush1.msra.mxu0 0.0
    %2867 = vmatprep.subr.mxu0 0.0
    %2868 = vmatpush1.msra.mxu0 0.0
    %2869 = vmatprep.subr.mxu0 0.0
    %2870 = vmatpush1.msra.mxu0 0.0
    %2871 = vmatprep.subr.mxu0 0.0
    %2872 = vmatpush1.msra.mxu0 0.0
    %2873 = vmatprep.subr.mxu0 0.0
    %2874 = vmatpush1.msra.mxu0 0.0
    %2875 = vmatprep.subr.mxu0 0.0
    %2876 = vmatpush1.msra.mxu0 0.0
    %2877 = vmatprep.subr.mxu0 0.0
    %2878 = vmatpush1.msra.mxu0 0.0
    %2879 = vmatprep.subr.mxu0 0.0
    %2880 = vmatpush1.msra.mxu0 0.0
    %2881 = vmatprep.subr.mxu0 0.0
    %2882 = vmatpush1.msra.mxu0 0.0
    %2883 = vmatprep.subr.mxu0 0.0
    %2884 = vmatpush1.msra.mxu0 0.0
    %2885 = vmatprep.subr.mxu0 0.0
    %2886 = vmatpush1.msra.mxu0 0.0
    %2887 = vmatprep.subr.mxu0 0.0
    %2888 = vmatpush1.msra.mxu0 0.0
    %2889 = vmatprep.subr.mxu0 0.0
    %2890 = vmatpush1.msra.mxu0 0.0
    %2891 = vmatprep.subr.mxu0 0.0
    %2892 = vmatpush1.msra.mxu0 0.0
    %2893 = vmatprep.subr.mxu0 0.0
    %2894 = vmatpush1.msra.mxu0 0.0
    %2895 = vmatprep.subr.mxu0 0.0
    %2896 = vmatpush1.msra.mxu0 0.0
    %2897 = vmatprep.subr.mxu0 0.0
    %2898 = vmatpush1.msra.mxu0 0.0
    %2899 = vmatprep.subr.mxu0 0.0
    %2900 = vmatpush1.msra.mxu0 0.0
    %2901 = vmatprep.subr.mxu0 0.0
    %2902 = vmatpush1.msra.mxu0 0.0
    %2903 = vmatprep.subr.mxu0 0.0
    %2904 = vmatpush1.msra.mxu0 0.0
    %2905 = vmatprep.subr.mxu0 0.0
    %2906 = vmatpush1.msra.mxu0 0.0
    %2907 = vmatprep.subr.mxu0 0.0
    %2908 = vmatpush1.msra.mxu0 0.0
    %2909 = vmatprep.subr.mxu0 0.0
    %2910 = vmatpush1.msra.mxu0 0.0
    %2911 = vmatprep.subr.mxu0 0.0
    %2912 = vmatpush1.msra.mxu0 0.0
    %2913 = vmatprep.subr.mxu0 0.0
    %2914 = vmatpush1.msra.mxu0 0.0
    %2915 = vmatprep.subr.mxu0 0.0
    %2916 = vmatpush1.msra.mxu0 0.0
    %2917 = vmatprep.subr.mxu0 0.0
    %2918 = vmatpush1.msra.mxu0 0.0
    %2919 = vmatprep.subr.mxu0 0.0
    %2920 = vmatpush1.msra.mxu0 0.0
    %2921 = vmatprep.subr.mxu0 0.0
    %2922 = vmatpush1.msra.mxu0 0.0
    %2923 = vmatprep.mubr.f32.mxu0 0.0
    %2924 = vmatmul.mubr.f32.gmra.mrb[0].mxu0 %v2857
    %v2925 = vpop.f32.mrb[0].mxu0
    %v2926 = vadd.f32 0.0, %v2925
    %v2927 = vpop.f32.mrb[0].mxu0
    %v2928 = vadd.f32 0.0, %v2927
    %2929 = vdwg.mxu0
    %v2930 = vadd.f32 %v2850, %v2926
    %v2931 = vadd.f32 %v2851, %v2928
    %v2932 = vld [vmem:[#allocation2 + $0x1c] sm:$0x3]
    %s2933 = scalar_lea.vmem [#allocation3], 224
    %v2934 = vld [vmem:[%s2933] sm:$0xff]
    %v2935 = vld [vmem:[%s2933 + $0x8] sm:$0xff]
    %v2937 = vsel %vm90, %v2932, 0
    %2939 = vmatprep.subr.mxu0 %v2935
    %2940 = vmatpush1.msra.mxu0 %v2934
    %2941 = vmatprep.subr.mxu0 0.0
    %2942 = vmatpush1.msra.mxu0 0.0
    %2943 = vmatprep.subr.mxu0 0.0
    %2944 = vmatpush1.msra.mxu0 0.0
    %2945 = vmatprep.subr.mxu0 0.0
    %2946 = vmatpush1.msra.mxu0 0.0
    %2947 = vmatprep.subr.mxu0 0.0
    %2948 = vmatpush1.msra.mxu0 0.0
    %2949 = vmatprep.subr.mxu0 0.0
    %2950 = vmatpush1.msra.mxu0 0.0
    %2951 = vmatprep.subr.mxu0 0.0
    %2952 = vmatpush1.msra.mxu0 0.0
    %2953 = vmatprep.subr.mxu0 0.0
    %2954 = vmatpush1.msra.mxu0 0.0
    %2955 = vmatprep.subr.mxu0 0.0
    %2956 = vmatpush1.msra.mxu0 0.0
    %2957 = vmatprep.subr.mxu0 0.0
    %2958 = vmatpush1.msra.mxu0 0.0
    %2959 = vmatprep.subr.mxu0 0.0
    %2960 = vmatpush1.msra.mxu0 0.0
    %2961 = vmatprep.subr.mxu0 0.0
    %2962 = vmatpush1.msra.mxu0 0.0
    %2963 = vmatprep.subr.mxu0 0.0
    %2964 = vmatpush1.msra.mxu0 0.0
    %2965 = vmatprep.subr.mxu0 0.0
    %2966 = vmatpush1.msra.mxu0 0.0
    %2967 = vmatprep.subr.mxu0 0.0
    %2968 = vmatpush1.msra.mxu0 0.0
    %2969 = vmatprep.subr.mxu0 0.0
    %2970 = vmatpush1.msra.mxu0 0.0
    %2971 = vmatprep.subr.mxu0 0.0
    %2972 = vmatpush1.msra.mxu0 0.0
    %2973 = vmatprep.subr.mxu0 0.0
    %2974 = vmatpush1.msra.mxu0 0.0
    %2975 = vmatprep.subr.mxu0 0.0
    %2976 = vmatpush1.msra.mxu0 0.0
    %2977 = vmatprep.subr.mxu0 0.0
    %2978 = vmatpush1.msra.mxu0 0.0
    %2979 = vmatprep.subr.mxu0 0.0
    %2980 = vmatpush1.msra.mxu0 0.0
    %2981 = vmatprep.subr.mxu0 0.0
    %2982 = vmatpush1.msra.mxu0 0.0
    %2983 = vmatprep.subr.mxu0 0.0
    %2984 = vmatpush1.msra.mxu0 0.0
    %2985 = vmatprep.subr.mxu0 0.0
    %2986 = vmatpush1.msra.mxu0 0.0
    %2987 = vmatprep.subr.mxu0 0.0
    %2988 = vmatpush1.msra.mxu0 0.0
    %2989 = vmatprep.subr.mxu0 0.0
    %2990 = vmatpush1.msra.mxu0 0.0
    %2991 = vmatprep.subr.mxu0 0.0
    %2992 = vmatpush1.msra.mxu0 0.0
    %2993 = vmatprep.subr.mxu0 0.0
    %2994 = vmatpush1.msra.mxu0 0.0
    %2995 = vmatprep.subr.mxu0 0.0
    %2996 = vmatpush1.msra.mxu0 0.0
    %2997 = vmatprep.subr.mxu0 0.0
    %2998 = vmatpush1.msra.mxu0 0.0
    %2999 = vmatprep.subr.mxu0 0.0
    %3000 = vmatpush1.msra.mxu0 0.0
    %3001 = vmatprep.subr.mxu0 0.0
    %3002 = vmatpush1.msra.mxu0 0.0
    %3003 = vmatprep.mubr.f32.mxu0 0.0
    %3004 = vmatmul.mubr.f32.gmra.mrb[0].mxu0 %v2937
    %v3005 = vpop.f32.mrb[0].mxu0
    %v3006 = vadd.f32 0.0, %v3005
    %v3007 = vpop.f32.mrb[0].mxu0
    %v3008 = vadd.f32 0.0, %v3007
    %3009 = vdwg.mxu0
    %v3010 = vadd.f32 %v2930, %v3006
    %v3011 = vadd.f32 %v2931, %v3008
    %v3012 = vld [vmem:[#allocation2 + $0x1e] sm:$0x3]
    %s3013 = scalar_lea.vmem [#allocation3], 240
    %v3014 = vld [vmem:[%s3013] sm:$0xff]
    %v3015 = vld [vmem:[%s3013 + $0x8] sm:$0xff]
    %v3017 = vsel %vm90, %v3012, 0
    %3019 = vmatprep.subr.mxu0 %v3015
    %3020 = vmatpush1.msra.mxu0 %v3014
    %3021 = vmatprep.subr.mxu0 0.0
    %3022 = vmatpush1.msra.mxu0 0.0
    %3023 = vmatprep.subr.mxu0 0.0
    %3024 = vmatpush1.msra.mxu0 0.0
    %3025 = vmatprep.subr.mxu0 0.0
    %3026 = vmatpush1.msra.mxu0 0.0
    %3027 = vmatprep.subr.mxu0 0.0
    %3028 = vmatpush1.msra.mxu0 0.0
    %3029 = vmatprep.subr.mxu0 0.0
    %3030 = vmatpush1.msra.mxu0 0.0
    %3031 = vmatprep.subr.mxu0 0.0
    %3032 = vmatpush1.msra.mxu0 0.0
    %3033 = vmatprep.subr.mxu0 0.0
    %3034 = vmatpush1.msra.mxu0 0.0
    %3035 = vmatprep.subr.mxu0 0.0
    %3036 = vmatpush1.msra.mxu0 0.0
    %3037 = vmatprep.subr.mxu0 0.0
    %3038 = vmatpush1.msra.mxu0 0.0
    %3039 = vmatprep.subr.mxu0 0.0
    %3040 = vmatpush1.msra.mxu0 0.0
    %3041 = vmatprep.subr.mxu0 0.0
    %3042 = vmatpush1.msra.mxu0 0.0
    %3043 = vmatprep.subr.mxu0 0.0
    %3044 = vmatpush1.msra.mxu0 0.0
    %3045 = vmatprep.subr.mxu0 0.0
    %3046 = vmatpush1.msra.mxu0 0.0
    %3047 = vmatprep.subr.mxu0 0.0
    %3048 = vmatpush1.msra.mxu0 0.0
    %3049 = vmatprep.subr.mxu0 0.0
    %3050 = vmatpush1.msra.mxu0 0.0
    %3051 = vmatprep.subr.mxu0 0.0
    %3052 = vmatpush1.msra.mxu0 0.0
    %3053 = vmatprep.subr.mxu0 0.0
    %3054 = vmatpush1.msra.mxu0 0.0
    %3055 = vmatprep.subr.mxu0 0.0
    %3056 = vmatpush1.msra.mxu0 0.0
    %3057 = vmatprep.subr.mxu0 0.0
    %3058 = vmatpush1.msra.mxu0 0.0
    %3059 = vmatprep.subr.mxu0 0.0
    %3060 = vmatpush1.msra.mxu0 0.0
    %3061 = vmatprep.subr.mxu0 0.0
    %3062 = vmatpush1.msra.mxu0 0.0
    %3063 = vmatprep.subr.mxu0 0.0
    %3064 = vmatpush1.msra.mxu0 0.0
    %3065 = vmatprep.subr.mxu0 0.0
    %3066 = vmatpush1.msra.mxu0 0.0
    %3067 = vmatprep.subr.mxu0 0.0
    %3068 = vmatpush1.msra.mxu0 0.0
    %3069 = vmatprep.subr.mxu0 0.0
    %3070 = vmatpush1.msra.mxu0 0.0
    %3071 = vmatprep.subr.mxu0 0.0
    %3072 = vmatpush1.msra.mxu0 0.0
    %3073 = vmatprep.subr.mxu0 0.0
    %3074 = vmatpush1.msra.mxu0 0.0
    %3075 = vmatprep.subr.mxu0 0.0
    %3076 = vmatpush1.msra.mxu0 0.0
    %3077 = vmatprep.subr.mxu0 0.0
    %3078 = vmatpush1.msra.mxu0 0.0
    %3079 = vmatprep.subr.mxu0 0.0
    %3080 = vmatpush1.msra.mxu0 0.0
    %3081 = vmatprep.subr.mxu0 0.0
    %3082 = vmatpush1.msra.mxu0 0.0
    %3083 = vmatprep.mubr.f32.mxu0 0.0
    %3084 = vmatmul.mubr.f32.gmra.mrb[0].mxu0 %v3017
    %v3085 = vpop.f32.mrb[0].mxu0
    %v3086 = vadd.f32 0.0, %v3085
    %v3087 = vpop.f32.mrb[0].mxu0
    %v3088 = vadd.f32 0.0, %v3087
    %3089 = vdwg.mxu0
    %v3090 = vadd.f32 %v3010, %v3086
    %v3091 = vadd.f32 %v3011, %v3088
    %s3092 = scalar_lea.vmem %s7, 6
    %v3093 = vld [vmem:[%s3092] ss:$8 sm:$0x3]
    %v3095 = vlaneseq
    %v3096 = vshrl.u32 %v3095, 7
    %v3097 = vsub.s32 0, %v3096
    %v3098 = vrot.slane %v3093, %v3097
    %v3099 = vlaneseq
    %v3100 = vshrl.u32 %v3099, 7
    %v3101 = vsub.s32 1, %v3100
    %v3102 = vrot.slane %v3093, %v3101
    %v3105 = vadd.f32 %v3090, %v3098
    %v3106 = vadd.f32 %v3091, %v3102
    %v3107 = vmax.f32 %v3105, 0.0
    %v3108 = vmax.f32 %v3106, 0.0
    %v3109 = vpack.c.bf16 %v3107, %v3107
    %v3110 = vpack.c.bf16 %v3108, %v3108
    %s3111 = scalar_lea.vmem %s2, 96
    %v3112 = vld [vmem:[%s3111] sm:$0xf]
    %v3113 = vld [vmem:[%s3111 + $0x4] sm:$0xf]
    %v3114 = vld [vmem:[%s3111 + $0x8] sm:$0xf]
    %v3115 = vld [vmem:[%s3111 + $0xc] sm:$0xf]
    %v3116 = vld [vmem:[%s3111 + $0x10] sm:$0xf]
    %v3117 = vld [vmem:[%s3111 + $0x14] sm:$0xf]
    %v3118 = vld [vmem:[%s3111 + $0x18] sm:$0xf]
    %v3119 = vld [vmem:[%s3111 + $0x1c] sm:$0xf]
    %v3120 = vld [vmem:[%s3111 + $0x20] sm:$0xf]
    %v3121 = vld [vmem:[%s3111 + $0x24] sm:$0xf]
    %v3122 = vld [vmem:[%s3111 + $0x28] sm:$0xf]
    %v3123 = vld [vmem:[%s3111 + $0x2c] sm:$0xf]
    %v3124 = vld [vmem:[%s3111 + $0x30] sm:$0xf]
    %v3125 = vld [vmem:[%s3111 + $0x34] sm:$0xf]
    %v3126 = vld [vmem:[%s3111 + $0x38] sm:$0xf]
    %v3127 = vld [vmem:[%s3111 + $0x3c] sm:$0xf]
    %v3128 = vld [vmem:[%s3111 + $0x40] sm:$0xf]
    %v3129 = vld [vmem:[%s3111 + $0x44] sm:$0xf]
    %v3130 = vld [vmem:[%s3111 + $0x48] sm:$0xf]
    %v3131 = vld [vmem:[%s3111 + $0x4c] sm:$0xf]
    %v3132 = vld [vmem:[%s3111 + $0x50] sm:$0xf]
    %v3133 = vld [vmem:[%s3111 + $0x54] sm:$0xf]
    %v3134 = vld [vmem:[%s3111 + $0x58] sm:$0xf]
    %v3135 = vld [vmem:[%s3111 + $0x5c] sm:$0xf]
    %v3136 = vld [vmem:[%s7 + $0x7] ss:$0 sm:$0xff]
    %v3161 = vunpack.c.l.b16 %v3112
    %v3162 = vunpack.c.l.b16 %v3113
    %v3163 = vunpack.c.l.b16 %v3114
    %v3164 = vunpack.c.l.b16 %v3115
    %v3165 = vunpack.c.l.b16 %v3116
    %v3166 = vunpack.c.l.b16 %v3117
    %v3167 = vunpack.c.l.b16 %v3118
    %v3168 = vunpack.c.l.b16 %v3119
    %v3169 = vunpack.c.l.b16 %v3120
    %v3170 = vunpack.c.l.b16 %v3121
    %v3171 = vunpack.c.l.b16 %v3122
    %v3172 = vunpack.c.l.b16 %v3123
    %v3173 = vunpack.c.l.b16 %v3124
    %v3174 = vunpack.c.l.b16 %v3125
    %v3175 = vunpack.c.l.b16 %v3126
    %v3176 = vunpack.c.l.b16 %v3127
    %v3177 = vunpack.c.l.b16 %v3128
    %v3178 = vunpack.c.l.b16 %v3129
    %v3179 = vunpack.c.l.b16 %v3130
    %v3180 = vunpack.c.l.b16 %v3131
    %v3181 = vunpack.c.l.b16 %v3132
    %v3182 = vunpack.c.l.b16 %v3133
    %v3183 = vunpack.c.l.b16 %v3134
    %v3184 = vunpack.c.l.b16 %v3135
    %v3185 = vpack.c.b16 %v3162, %v3161
    %v3186 = vpack.c.b16 %v3164, %v3163
    %v3187 = vpack.c.b16 %v3166, %v3165
    %v3188 = vpack.c.b16 %v3168, %v3167
    %v3189 = vpack.c.b16 %v3170, %v3169
    %v3190 = vpack.c.b16 %v3172, %v3171
    %v3191 = vpack.c.b16 %v3174, %v3173
    %v3192 = vpack.c.b16 %v3176, %v3175
    %v3193 = vpack.c.b16 %v3178, %v3177
    %v3194 = vpack.c.b16 %v3180, %v3179
    %v3195 = vpack.c.b16 %v3182, %v3181
    %v3196 = vpack.c.b16 %v3184, %v3183
    %v3210 = vsel %vm266, %v3110, 0
    %3212 = vmatprep.subr.bf16.mxu0 0
    %3213 = vmatpush1.bf16.msra.mxu0 %v3185
    %3214 = vmatprep.subr.bf16.mxu0 0
    %3215 = vmatpush1.bf16.msra.mxu0 %v3186
    %3216 = vmatprep.subr.bf16.mxu0 0
    %3217 = vmatpush1.bf16.msra.mxu0 %v3187
    %3218 = vmatprep.subr.bf16.mxu0 0
    %3219 = vmatpush1.bf16.msra.mxu0 %v3188
    %3220 = vmatprep.subr.bf16.mxu0 0
    %3221 = vmatpush1.bf16.msra.mxu0 %v3189
    %3222 = vmatprep.subr.bf16.mxu0 0
    %3223 = vmatpush1.bf16.msra.mxu0 %v3190
    %3224 = vmatprep.subr.bf16.mxu0 0
    %3225 = vmatpush1.bf16.msra.mxu0 %v3191
    %3226 = vmatprep.subr.bf16.mxu0 0
    %3227 = vmatpush1.bf16.msra.mxu0 %v3192
    %3228 = vmatprep.subr.bf16.mxu0 0
    %3229 = vmatpush1.bf16.msra.mxu0 %v3193
    %3230 = vmatprep.subr.bf16.mxu0 0
    %3231 = vmatpush1.bf16.msra.mxu0 %v3194
    %3232 = vmatprep.subr.bf16.mxu0 0
    %3233 = vmatpush1.bf16.msra.mxu0 %v3195
    %3234 = vmatprep.subr.bf16.mxu0 0
    %3235 = vmatpush1.bf16.msra.mxu0 %v3196
    %3236 = vmatprep.subr.bf16.mxu0 0
    %3237 = vmatpush1.bf16.msra.mxu0 0
    %3238 = vmatprep.subr.bf16.mxu0 0
    %3239 = vmatpush1.bf16.msra.mxu0 0
    %3240 = vmatprep.subr.bf16.mxu0 0
    %3241 = vmatpush1.bf16.msra.mxu0 0
    %3242 = vmatprep.subr.bf16.mxu0 0
    %3243 = vmatpush1.bf16.msra.mxu0 0
    %3244 = vmatprep.mubr.bf16.mxu0 %v3210
    %3245 = vmatmul.mubr.bf16.gmra.mrb[0].mxu0 %v3109
    %v3246 = vpop.f32.mrb[0].mxu0
    %v3247 = vadd.f32 %v3136, %v3246
    %v3248 = vpop.f32.mrb[0].mxu0
    %v3249 = vpop.f32.mrb[0].mxu0
    %v3250 = vpop.f32.mrb[0].mxu0
    %3251 = vdwg.mxu0
    %3252 = vst [vmem:[#allocation6] sm:$0x3] %v3247
    // Predicated region
    $region38: #{denoise_forward.1} parent=1 // pred_check
      _
    $region39: #{denoise_forward.1} parent=1 // pred_check_branch
      %3254 = sbr.rel (0) target = $region41
    $region40: #{denoise_forward.1} parent=1 // pred_region
      %s3256 = ssub.s32 32, 32
      %3257 = vsyncadd [#allocation5], %s3256
      %s3259 = sshll.u32 [#allocation6], 4
      %s3260 = int_to_ptr.vmem [resolvable:$true] %s3259
      %3262 = dma.vmem_to_hbm [thread:$0]  %s3260, 32, %s8, [#allocation5]
    $region41: #{denoise_forward.1} parent=1 // pred_fallthru
      _
    // Predicated region
    $region42: #{denoise_forward.1} parent=1 // pred_check
      _
    $region43: #{denoise_forward.1} parent=1 // pred_check_branch
      %3264 = sbr.rel (0) target = $region45
    $region44: #{denoise_forward.1} parent=1 // pred_region
      %3265 = dma.done [#allocation5], 32
    $region45: #{denoise_forward.1} parent=1 // pred_fallthru
      _
    %3266 = vsyncpa [#allocation4], 1
    %3267 = vsyncpa [#allocation5], 1

</llo_original>
